<compile_context>
chip_gen: v7x
topology: tpu7x:2x2x1
jax: 0.10.0
libtpu: 0.0.40
codegen_flags: <defaults>
</compile_context>

<pallas_src>
import functools

import jax
import jax.numpy as jnp
from jax import lax
from jax.experimental import pallas as pl
from jax.experimental.pallas import tpu as pltpu


# Left padding (in the sublane/W axis) used by the in-kernel halo scratch so the
# interior write lands at a tile-aligned sublane offset (8) instead of offset 1.
_LPAD = 8


# ---------------------------------------------------------------------------
# Fused Pallas kernel
# ---------------------------------------------------------------------------

def _basic_block_kernel(*refs, has_proj):
    if has_proj:
        (x_ref, w1_ref, s1_ref, b1_ref, wp_ref, sp_ref, bp_ref,
         w2_ref, s2_ref, b2_ref, o_ref, xpad_ref, fpad_ref) = refs
    else:
        (x_ref, w1_ref, s1_ref, b1_ref,
         w2_ref, s2_ref, b2_ref, o_ref, xpad_ref, fpad_ref) = refs

    _, h, w, cin = x_ref.shape
    cout = w2_ref.shape[1]

    def im2col(pad_ref, c):
        # padded map in VMEM scratch -> (H*W, 9*c) patch matrix.
        # Column-block order is (dy, dx) major / channel minor, matching
        # _oihw_to_im2col() on the host side.
        cols = []
        for dy in range(3):
            for dx in range(3):
                cols.append(
                    pad_ref[dy:dy + h, _LPAD - 1 + dx:_LPAD - 1 + dx + w, :]
                    .reshape(h * w, c))
        return jnp.concatenate(cols, axis=-1)

    # ---- build the 1-pixel halo for x in VMEM (no HBM jnp.pad pre-pass) ----
    xpad_ref[...] = jnp.zeros_like(xpad_ref)
    xpad_ref[1:h + 1, _LPAD:_LPAD + w, :] = x_ref[0]

    # ---- conv1 (3x3, no bias) + BN1 + ReLU : single im2col matmul ----------
    p1 = im2col(xpad_ref, cin).astype(jnp.bfloat16)            # (h*w, 9*cin)
    acc1 = jnp.dot(p1, w1_ref[...], preferred_element_type=jnp.float32)
    feat = jnp.maximum(acc1 * s1_ref[...] + b1_ref[...], 0.0)  # (h*w, cout) f32

    # ---- stash feat with its halo for conv2 --------------------------------
    fpad_ref[...] = jnp.zeros_like(fpad_ref)
    fpad_ref[1:h + 1, _LPAD:_LPAD + w, :] = feat.reshape(h, w, cout)

    # ---- residual branch ----------------------------------------------------
    if has_proj:
        xm = x_ref[0].reshape(h * w, cin).astype(jnp.bfloat16)
        res = jnp.dot(xm, wp_ref[...], preferred_element_type=jnp.float32)
        res = res * sp_ref[...] + bp_ref[...]
    else:
        res = x_ref[0].reshape(h * w, cin).astype(jnp.float32)

    # ---- conv2 (3x3, bias) + BN2, fused residual add + ReLU ----------------
    p2 = im2col(fpad_ref, cout).astype(jnp.bfloat16)           # (h*w, 9*cout)
    acc2 = jnp.dot(p2, w2_ref[...], preferred_element_type=jnp.float32)
    out = jnp.maximum(acc2 * s2_ref[...] + b2_ref[...] + res, 0.0)

    # matmul-native layout store; (N, H*W, Cout) -> NHWC is a free reshape outside.
    o_ref[...] = out.reshape(1, h * w, cout).astype(o_ref.dtype)


# ---------------------------------------------------------------------------
# Host-side glue: BN folding, weight layout, pallas_call wrapper
# ---------------------------------------------------------------------------

def _fold_bn(gamma, beta, mean, var, conv_bias=None, eps=1e-5):
    scale = gamma / jnp.sqrt(var + eps)
    b = conv_bias if conv_bias is not None else jnp.zeros_like(mean)
    shift = beta + scale * (b - mean)
    return scale, shift


def _oihw_to_im2col(w_oihw):
    # (O, I, 3, 3) -> (9*I, O); row order (dy, dx, cin) matches kernel im2col.
    o, i, kh, kw = w_oihw.shape
    return jnp.transpose(w_oihw, (2, 3, 1, 0)).reshape(kh * kw * i, o)


def basic_block_forward(x_nchw, p):
    """BasicBlock forward. Input/output NCHW (PyTorch convention)."""
    x = jnp.transpose(x_nchw, (0, 2, 3, 1)).astype(jnp.float32)   # -> NHWC
    n, h, w, cin = x.shape
    cout = p["conv1_w"].shape[0]
    has_proj = "proj_w" in p
    if not has_proj and cin != cout:
        raise ValueError("identity residual requires in_chan == out_chan")

    vec = lambda v: v.reshape(1, cout).astype(jnp.float32)

    s1, b1 = _fold_bn(p["bn1_g"], p["bn1_b"], p["bn1_m"], p["bn1_v"])
    s2, b2 = _fold_bn(p["bn2_g"], p["bn2_b"], p["bn2_m"], p["bn2_v"],
                      conv_bias=p["conv2_b"])
    w1 = _oihw_to_im2col(p["conv1_w"]).astype(jnp.bfloat16)
    w2 = _oihw_to_im2col(p["conv2_w"]).astype(jnp.bfloat16)

    args = [x, w1, vec(s1), vec(b1)]
    in_specs = [
        pl.BlockSpec((1, h, w, cin), lambda i: (i, 0, 0, 0)),
        pl.BlockSpec((9 * cin, cout), lambda i: (0, 0)),
        pl.BlockSpec((1, cout), lambda i: (0, 0)),
        pl.BlockSpec((1, cout), lambda i: (0, 0)),
    ]
    if has_proj:
        sp, bp = _fold_bn(p["projbn_g"], p["projbn_b"], p["projbn_m"],
                          p["projbn_v"], conv_bias=p["proj_b"])
        wp = jnp.transpose(p["proj_w"][:, :, 0, 0], (1, 0)).astype(jnp.bfloat16)
        args += [wp, vec(sp), vec(bp)]
        in_specs += [
            pl.BlockSpec((cin, cout), lambda i: (0, 0)),
            pl.BlockSpec((1, cout), lambda i: (0, 0)),
            pl.BlockSpec((1, cout), lambda i: (0, 0)),
        ]
    args += [w2, vec(s2), vec(b2)]
    in_specs += [
        pl.BlockSpec((9 * cout, cout), lambda i: (0, 0)),
        pl.BlockSpec((1, cout), lambda i: (0, 0)),
        pl.BlockSpec((1, cout), lambda i: (0, 0)),
    ]

    flops = 2 * n * h * w * (9 * cin * cout + 9 * cout * cout
                             + (cin * cout if has_proj else 0))
    bytes_accessed = (4 * n * h * w * (cin + cout)
                      + 2 * (9 * cin * cout + 9 * cout * cout + cin * cout)
                      + 6 * 4 * cout)

    y = pl.pallas_call(
        functools.partial(_basic_block_kernel, has_proj=has_proj),
        out_shape=jax.ShapeDtypeStruct((n, h * w, cout), x.dtype),
        grid=(n,),
        in_specs=in_specs,
        out_specs=pl.BlockSpec((1, h * w, cout), lambda i: (i, 0, 0)),
        scratch_shapes=[
            pltpu.VMEM((h + 2, w + 2 * _LPAD, cin), jnp.float32),   # padded x
            pltpu.VMEM((h + 2, w + 2 * _LPAD, cout), jnp.float32),  # padded feat
        ],
        compiler_params=pltpu.CompilerParams(
            dimension_semantics=("parallel",),
            vmem_limit_bytes=32 * 1024 * 1024),
        cost_estimate=pl.CostEstimate(flops=flops, transcendentals=0,
                                      bytes_accessed=bytes_accessed),
    )(*args)

    y = y.reshape(n, h, w, cout)            # free: same memory order as NHWC
    return jnp.transpose(y, (0, 3, 1, 2))   # NHWC -> NCHW


# ---------------------------------------------------------------------------
# Pure-JAX reference (lax.conv, f32 HIGHEST) for correctness check
# ---------------------------------------------------------------------------

def _ref_forward(x, p, eps=1e-5):
    def conv(x, w, b=None, pad=1):
        y = lax.conv_general_dilated(
            x, w, (1, 1), [(pad, pad), (pad, pad)],
            dimension_numbers=("NCHW", "OIHW", "NCHW"),
            precision=lax.Precision.HIGHEST)
        if b is not None:
            y = y + b[None, :, None, None]
        return y

    def bn(x, g, be, m, v):
        return ((x - m[None, :, None, None]) /
                jnp.sqrt(v[None, :, None, None] + eps) *
                g[None, :, None, None] + be[None, :, None, None])

    feat = jnp.maximum(bn(conv(x, p["conv1_w"]),
                          p["bn1_g"], p["bn1_b"], p["bn1_m"], p["bn1_v"]), 0.0)
    feat = bn(conv(feat, p["conv2_w"], p["conv2_b"]),
              p["bn2_g"], p["bn2_b"], p["bn2_m"], p["bn2_v"])
    res = bn(conv(x, p["proj_w"], p["proj_b"], pad=0),
             p["projbn_g"], p["projbn_b"], p["projbn_m"], p["projbn_v"])
    return jnp.maximum(res + feat, 0.0)


# ---------------------------------------------------------------------------
# Deterministic parameter construction + driver
# ---------------------------------------------------------------------------

def make_params(key, in_chan, out_chan):
    ks = jax.random.split(key, 16)
    kn = lambda k, shape, std: std * jax.random.normal(k, shape, jnp.float32)
    kaiming1 = (2.0 / (in_chan * 9)) ** 0.5

    def bn_params(k):
        a, b, c, d = jax.random.split(k, 4)
        return (1.0 + 0.1 * jax.random.normal(a, (out_chan,), jnp.float32),
                0.1 * jax.random.normal(b, (out_chan,), jnp.float32),
                0.1 * jax.random.normal(c, (out_chan,), jnp.float32),
                0.9 + 0.2 * jnp.abs(jax.random.normal(d, (out_chan,), jnp.float32)))

    p = {}
    p["conv1_w"] = kn(ks[0], (out_chan, in_chan, 3, 3), kaiming1)
    p["bn1_g"], p["bn1_b"], p["bn1_m"], p["bn1_v"] = bn_params(ks[1])
    p["conv2_w"] = kn(ks[2], (out_chan, out_chan, 3, 3), 0.1)
    p["conv2_b"] = kn(ks[3], (out_chan,), 0.1)
    p["bn2_g"], p["bn2_b"], p["bn2_m"], p["bn2_v"] = bn_params(ks[4])
    p["proj_w"] = kn(ks[5], (out_chan, in_chan, 1, 1), 0.2)
    p["proj_b"] = kn(ks[6], (out_chan,), 0.1)
    p["projbn_g"], p["projbn_b"], p["projbn_m"], p["projbn_v"] = bn_params(ks[7])
    return p


if __name__ == "__main__":
    N, IN_C, OUT_C, H, W = 2, 4, 8, 16, 16
    key = jax.random.PRNGKey(0)
    kx, kp = jax.random.split(key)
    x = jax.random.normal(kx, (N, IN_C, H, W), jnp.float32)
    params = make_params(kp, IN_C, OUT_C)

    out = jax.jit(basic_block_forward)(x, params)
    out = jax.block_until_ready(out)
    assert out.shape == (N, OUT_C, H, W), out.shape

    ref = jax.block_until_ready(_ref_forward(x, params))
    # bf16 MXU operands (f32 accumulation) -> looser tolerance vs. f32 reference.
    max_err = float(jnp.max(jnp.abs(out - ref)))
    assert jnp.allclose(out, ref, atol=5e-2, rtol=5e-2), max_err

    print("KERNEL_OK")
</pallas_src>

<mosaic_0001>
module attributes {stable_mosaic.version = 11 : i64} {
  func.func @_basic_block_kernel(%arg0: i32, %arg1: memref<1x16x16x4xf32, #tpu.memory_space<vmem>>, %arg2: memref<36x8xbf16, #tpu.memory_space<vmem>>, %arg3: memref<1x8xf32, #tpu.memory_space<vmem>>, %arg4: memref<1x8xf32, #tpu.memory_space<vmem>>, %arg5: memref<4x8xbf16, #tpu.memory_space<vmem>>, %arg6: memref<1x8xf32, #tpu.memory_space<vmem>>, %arg7: memref<1x8xf32, #tpu.memory_space<vmem>>, %arg8: memref<72x8xbf16, #tpu.memory_space<vmem>>, %arg9: memref<1x8xf32, #tpu.memory_space<vmem>>, %arg10: memref<1x8xf32, #tpu.memory_space<vmem>>, %arg11: memref<1x256x8xf32, #tpu.memory_space<vmem>>, %arg12: memref<18x32x4xf32, #tpu.memory_space<vmem>>, %arg13: memref<18x32x8xf32, #tpu.memory_space<vmem>>) attributes {dimension_semantics = [#tpu.dimension_semantics<parallel>], iteration_bounds = array<i64: 2>, scalar_prefetch = 0 : i64, scratch_operands = 2 : i64, tpu.core_type = #tpu.core_type<tc>, window_params = [{transform_indices = @transform_0, window_bounds = array<i64: 1, 16, 16, 4>}, {pipeline_mode = #tpu.pipeline_mode<synchronous>, transform_indices = @transform_1, window_bounds = array<i64: 36, 8>}, {pipeline_mode = #tpu.pipeline_mode<synchronous>, transform_indices = @transform_2, window_bounds = array<i64: 1, 8>}, {pipeline_mode = #tpu.pipeline_mode<synchronous>, transform_indices = @transform_3, window_bounds = array<i64: 1, 8>}, {pipeline_mode = #tpu.pipeline_mode<synchronous>, transform_indices = @transform_4, window_bounds = array<i64: 4, 8>}, {pipeline_mode = #tpu.pipeline_mode<synchronous>, transform_indices = @transform_5, window_bounds = array<i64: 1, 8>}, {pipeline_mode = #tpu.pipeline_mode<synchronous>, transform_indices = @transform_6, window_bounds = array<i64: 1, 8>}, {pipeline_mode = #tpu.pipeline_mode<synchronous>, transform_indices = @transform_7, window_bounds = array<i64: 72, 8>}, {pipeline_mode = #tpu.pipeline_mode<synchronous>, transform_indices = @transform_8, window_bounds = array<i64: 1, 8>}, {pipeline_mode = #tpu.pipeline_mode<synchronous>, transform_indices = @transform_9, window_bounds = array<i64: 1, 8>}, {transform_indices = @transform_10, window_bounds = array<i64: 1, 256, 8>}]} {
    %cst = arith.constant 0.000000e+00 : f32
    %0 = vector.broadcast %cst : f32 to vector<18x32x4xf32>
    %c0 = arith.constant 0 : index
    %c0_0 = arith.constant 0 : index
    %c0_1 = arith.constant 0 : index
    %1 = vector.load %arg12[%c0, %c0_0, %c0_1] : memref<18x32x4xf32, #tpu.memory_space<vmem>>, vector<18x32x4xf32>
    tpu.vector_store %arg12[%c0, %c0_0, %c0_1], %0 {strides = array<i32>} : memref<18x32x4xf32, #tpu.memory_space<vmem>>, vector<18x32x4xf32>,
    %c0_2 = arith.constant 0 : index
    %c0_3 = arith.constant 0 : index
    %c0_4 = arith.constant 0 : index
    %c0_5 = arith.constant 0 : index
    %2 = vector.load %arg1[%c0_2, %c0_3, %c0_4, %c0_5] : memref<1x16x16x4xf32, #tpu.memory_space<vmem>>, vector<1x16x16x4xf32>
    %3 = vector.shape_cast %2 : vector<1x16x16x4xf32> to vector<16x16x4xf32>
    %c1 = arith.constant 1 : index
    %c8 = arith.constant 8 : index
    %c0_6 = arith.constant 0 : index
    %4 = vector.load %arg12[%c1, %c8, %c0_6] : memref<18x32x4xf32, #tpu.memory_space<vmem>>, vector<16x16x4xf32>
    tpu.vector_store %arg12[%c1, %c8, %c0_6], %3 {strides = array<i32>} : memref<18x32x4xf32, #tpu.memory_space<vmem>>, vector<16x16x4xf32>,
    %c0_7 = arith.constant 0 : index
    %c7 = arith.constant 7 : index
    %c0_8 = arith.constant 0 : index
    %5 = vector.load %arg12[%c0_7, %c7, %c0_8] : memref<18x32x4xf32, #tpu.memory_space<vmem>>, vector<16x16x4xf32>
    %6 = vector.shape_cast %5 : vector<16x16x4xf32> to vector<256x4xf32>
    %c0_9 = arith.constant 0 : index
    %c8_10 = arith.constant 8 : index
    %c0_11 = arith.constant 0 : index
    %7 = vector.load %arg12[%c0_9, %c8_10, %c0_11] : memref<18x32x4xf32, #tpu.memory_space<vmem>>, vector<16x16x4xf32>
    %8 = vector.shape_cast %7 : vector<16x16x4xf32> to vector<256x4xf32>
    %c0_12 = arith.constant 0 : index
    %c9 = arith.constant 9 : index
    %c0_13 = arith.constant 0 : index
    %9 = vector.load %arg12[%c0_12, %c9, %c0_13] : memref<18x32x4xf32, #tpu.memory_space<vmem>>, vector<16x16x4xf32>
    %10 = vector.shape_cast %9 : vector<16x16x4xf32> to vector<256x4xf32>
    %c1_14 = arith.constant 1 : index
    %c7_15 = arith.constant 7 : index
    %c0_16 = arith.constant 0 : index
    %11 = vector.load %arg12[%c1_14, %c7_15, %c0_16] : memref<18x32x4xf32, #tpu.memory_space<vmem>>, vector<16x16x4xf32>
    %12 = vector.shape_cast %11 : vector<16x16x4xf32> to vector<256x4xf32>
    %c1_17 = arith.constant 1 : index
    %c8_18 = arith.constant 8 : index
    %c0_19 = arith.constant 0 : index
    %13 = vector.load %arg12[%c1_17, %c8_18, %c0_19] : memref<18x32x4xf32, #tpu.memory_space<vmem>>, vector<16x16x4xf32>
    %14 = vector.shape_cast %13 : vector<16x16x4xf32> to vector<256x4xf32>
    %c1_20 = arith.constant 1 : index
    %c9_21 = arith.constant 9 : index
    %c0_22 = arith.constant 0 : index
    %15 = vector.load %arg12[%c1_20, %c9_21, %c0_22] : memref<18x32x4xf32, #tpu.memory_space<vmem>>, vector<16x16x4xf32>
    %16 = vector.shape_cast %15 : vector<16x16x4xf32> to vector<256x4xf32>
    %c2 = arith.constant 2 : index
    %c7_23 = arith.constant 7 : index
    %c0_24 = arith.constant 0 : index
    %17 = vector.load %arg12[%c2, %c7_23, %c0_24] : memref<18x32x4xf32, #tpu.memory_space<vmem>>, vector<16x16x4xf32>
    %18 = vector.shape_cast %17 : vector<16x16x4xf32> to vector<256x4xf32>
    %c2_25 = arith.constant 2 : index
    %c8_26 = arith.constant 8 : index
    %c0_27 = arith.constant 0 : index
    %19 = vector.load %arg12[%c2_25, %c8_26, %c0_27] : memref<18x32x4xf32, #tpu.memory_space<vmem>>, vector<16x16x4xf32>
    %20 = vector.shape_cast %19 : vector<16x16x4xf32> to vector<256x4xf32>
    %c2_28 = arith.constant 2 : index
    %c9_29 = arith.constant 9 : index
    %c0_30 = arith.constant 0 : index
    %21 = vector.load %arg12[%c2_28, %c9_29, %c0_30] : memref<18x32x4xf32, #tpu.memory_space<vmem>>, vector<16x16x4xf32>
    %22 = vector.shape_cast %21 : vector<16x16x4xf32> to vector<256x4xf32>
    %23 = tpu.concatenate %6, %8, %10, %12, %14, %16, %18, %20, %22 in 1 : vector<256x4xf32>, vector<256x4xf32>, vector<256x4xf32>, vector<256x4xf32>, vector<256x4xf32>, vector<256x4xf32>, vector<256x4xf32>, vector<256x4xf32>, vector<256x4xf32> -> vector<256x36xf32>
    %24 = arith.truncf %23 : vector<256x36xf32> to vector<256x36xbf16>
    %c0_31 = arith.constant 0 : index
    %c0_32 = arith.constant 0 : index
    %25 = vector.load %arg2[%c0_31, %c0_32] : memref<36x8xbf16, #tpu.memory_space<vmem>>, vector<36x8xbf16>
    %cst_33 = arith.constant dense<0.000000e+00> : vector<256x8xf32>
    %26 = tpu.matmul %24, %25, %cst_33 {dimension_numbers = #tpu.dot_dimension_numbers<[1], [0], [0], [1], [0, 0, 1, 1], [], []>} : vector<256x36xbf16>, vector<36x8xbf16>, vector<256x8xf32> -> vector<256x8xf32>
    %c0_34 = arith.constant 0 : index
    %c0_35 = arith.constant 0 : index
    %27 = vector.load %arg3[%c0_34, %c0_35] : memref<1x8xf32, #tpu.memory_space<vmem>>, vector<1x8xf32>
    %28 = vector.broadcast %27 : vector<1x8xf32> to vector<256x8xf32>
    %29 = arith.mulf %26, %28 : vector<256x8xf32>
    %c0_36 = arith.constant 0 : index
    %c0_37 = arith.constant 0 : index
    %30 = vector.load %arg4[%c0_36, %c0_37] : memref<1x8xf32, #tpu.memory_space<vmem>>, vector<1x8xf32>
    %31 = vector.broadcast %30 : vector<1x8xf32> to vector<256x8xf32>
    %32 = arith.addf %29, %31 : vector<256x8xf32>
    %cst_38 = arith.constant 0.000000e+00 : f32
    %33 = vector.broadcast %cst_38 : f32 to vector<256x8xf32>
    %34 = arith.maximumf %32, %33 : vector<256x8xf32>
    %cst_39 = arith.constant 0.000000e+00 : f32
    %35 = vector.broadcast %cst_39 : f32 to vector<18x32x8xf32>
    %c0_40 = arith.constant 0 : index
    %c0_41 = arith.constant 0 : index
    %c0_42 = arith.constant 0 : index
    %36 = vector.load %arg13[%c0_40, %c0_41, %c0_42] : memref<18x32x8xf32, #tpu.memory_space<vmem>>, vector<18x32x8xf32>
    tpu.vector_store %arg13[%c0_40, %c0_41, %c0_42], %35 {strides = array<i32>} : memref<18x32x8xf32, #tpu.memory_space<vmem>>, vector<18x32x8xf32>,
    %37 = vector.shape_cast %34 : vector<256x8xf32> to vector<16x16x8xf32>
    %c1_43 = arith.constant 1 : index
    %c8_44 = arith.constant 8 : index
    %c0_45 = arith.constant 0 : index
    %38 = vector.load %arg13[%c1_43, %c8_44, %c0_45] : memref<18x32x8xf32, #tpu.memory_space<vmem>>, vector<16x16x8xf32>
    tpu.vector_store %arg13[%c1_43, %c8_44, %c0_45], %37 {strides = array<i32>} : memref<18x32x8xf32, #tpu.memory_space<vmem>>, vector<16x16x8xf32>,
    %c0_46 = arith.constant 0 : index
    %c0_47 = arith.constant 0 : index
    %c0_48 = arith.constant 0 : index
    %c0_49 = arith.constant 0 : index
    %39 = vector.load %arg1[%c0_46, %c0_47, %c0_48, %c0_49] : memref<1x16x16x4xf32, #tpu.memory_space<vmem>>, vector<1x16x16x4xf32>
    %40 = vector.shape_cast %39 : vector<1x16x16x4xf32> to vector<16x16x4xf32>
    %41 = vector.shape_cast %40 : vector<16x16x4xf32> to vector<256x4xf32>
    %42 = arith.truncf %41 : vector<256x4xf32> to vector<256x4xbf16>
    %c0_50 = arith.constant 0 : index
    %c0_51 = arith.constant 0 : index
    %43 = vector.load %arg5[%c0_50, %c0_51] : memref<4x8xbf16, #tpu.memory_space<vmem>>, vector<4x8xbf16>
    %cst_52 = arith.constant dense<0.000000e+00> : vector<256x8xf32>
    %44 = tpu.matmul %42, %43, %cst_52 {dimension_numbers = #tpu.dot_dimension_numbers<[1], [0], [0], [1], [0, 0, 1, 1], [], []>} : vector<256x4xbf16>, vector<4x8xbf16>, vector<256x8xf32> -> vector<256x8xf32>
    %c0_53 = arith.constant 0 : index
    %c0_54 = arith.constant 0 : index
    %45 = vector.load %arg6[%c0_53, %c0_54] : memref<1x8xf32, #tpu.memory_space<vmem>>, vector<1x8xf32>
    %46 = vector.broadcast %45 : vector<1x8xf32> to vector<256x8xf32>
    %47 = arith.mulf %44, %46 : vector<256x8xf32>
    %c0_55 = arith.constant 0 : index
    %c0_56 = arith.constant 0 : index
    %48 = vector.load %arg7[%c0_55, %c0_56] : memref<1x8xf32, #tpu.memory_space<vmem>>, vector<1x8xf32>
    %49 = vector.broadcast %48 : vector<1x8xf32> to vector<256x8xf32>
    %50 = arith.addf %47, %49 : vector<256x8xf32>
    %c0_57 = arith.constant 0 : index
    %c7_58 = arith.constant 7 : index
    %c0_59 = arith.constant 0 : index
    %51 = vector.load %arg13[%c0_57, %c7_58, %c0_59] : memref<18x32x8xf32, #tpu.memory_space<vmem>>, vector<16x16x8xf32>
    %52 = vector.shape_cast %51 : vector<16x16x8xf32> to vector<256x8xf32>
    %c0_60 = arith.constant 0 : index
    %c8_61 = arith.constant 8 : index
    %c0_62 = arith.constant 0 : index
    %53 = vector.load %arg13[%c0_60, %c8_61, %c0_62] : memref<18x32x8xf32, #tpu.memory_space<vmem>>, vector<16x16x8xf32>
    %54 = vector.shape_cast %53 : vector<16x16x8xf32> to vector<256x8xf32>
    %c0_63 = arith.constant 0 : index
    %c9_64 = arith.constant 9 : index
    %c0_65 = arith.constant 0 : index
    %55 = vector.load %arg13[%c0_63, %c9_64, %c0_65] : memref<18x32x8xf32, #tpu.memory_space<vmem>>, vector<16x16x8xf32>
    %56 = vector.shape_cast %55 : vector<16x16x8xf32> to vector<256x8xf32>
    %c1_66 = arith.constant 1 : index
    %c7_67 = arith.constant 7 : index
    %c0_68 = arith.constant 0 : index
    %57 = vector.load %arg13[%c1_66, %c7_67, %c0_68] : memref<18x32x8xf32, #tpu.memory_space<vmem>>, vector<16x16x8xf32>
    %58 = vector.shape_cast %57 : vector<16x16x8xf32> to vector<256x8xf32>
    %c1_69 = arith.constant 1 : index
    %c8_70 = arith.constant 8 : index
    %c0_71 = arith.constant 0 : index
    %59 = vector.load %arg13[%c1_69, %c8_70, %c0_71] : memref<18x32x8xf32, #tpu.memory_space<vmem>>, vector<16x16x8xf32>
    %60 = vector.shape_cast %59 : vector<16x16x8xf32> to vector<256x8xf32>
    %c1_72 = arith.constant 1 : index
    %c9_73 = arith.constant 9 : index
    %c0_74 = arith.constant 0 : index
    %61 = vector.load %arg13[%c1_72, %c9_73, %c0_74] : memref<18x32x8xf32, #tpu.memory_space<vmem>>, vector<16x16x8xf32>
    %62 = vector.shape_cast %61 : vector<16x16x8xf32> to vector<256x8xf32>
    %c2_75 = arith.constant 2 : index
    %c7_76 = arith.constant 7 : index
    %c0_77 = arith.constant 0 : index
    %63 = vector.load %arg13[%c2_75, %c7_76, %c0_77] : memref<18x32x8xf32, #tpu.memory_space<vmem>>, vector<16x16x8xf32>
    %64 = vector.shape_cast %63 : vector<16x16x8xf32> to vector<256x8xf32>
    %c2_78 = arith.constant 2 : index
    %c8_79 = arith.constant 8 : index
    %c0_80 = arith.constant 0 : index
    %65 = vector.load %arg13[%c2_78, %c8_79, %c0_80] : memref<18x32x8xf32, #tpu.memory_space<vmem>>, vector<16x16x8xf32>
    %66 = vector.shape_cast %65 : vector<16x16x8xf32> to vector<256x8xf32>
    %c2_81 = arith.constant 2 : index
    %c9_82 = arith.constant 9 : index
    %c0_83 = arith.constant 0 : index
    %67 = vector.load %arg13[%c2_81, %c9_82, %c0_83] : memref<18x32x8xf32, #tpu.memory_space<vmem>>, vector<16x16x8xf32>
    %68 = vector.shape_cast %67 : vector<16x16x8xf32> to vector<256x8xf32>
    %69 = tpu.concatenate %52, %54, %56, %58, %60, %62, %64, %66, %68 in 1 : vector<256x8xf32>, vector<256x8xf32>, vector<256x8xf32>, vector<256x8xf32>, vector<256x8xf32>, vector<256x8xf32>, vector<256x8xf32>, vector<256x8xf32>, vector<256x8xf32> -> vector<256x72xf32>
    %70 = arith.truncf %69 : vector<256x72xf32> to vector<256x72xbf16>
    %c0_84 = arith.constant 0 : index
    %c0_85 = arith.constant 0 : index
    %71 = vector.load %arg8[%c0_84, %c0_85] : memref<72x8xbf16, #tpu.memory_space<vmem>>, vector<72x8xbf16>
    %cst_86 = arith.constant dense<0.000000e+00> : vector<256x8xf32>
    %72 = tpu.matmul %70, %71, %cst_86 {dimension_numbers = #tpu.dot_dimension_numbers<[1], [0], [0], [1], [0, 0, 1, 1], [], []>} : vector<256x72xbf16>, vector<72x8xbf16>, vector<256x8xf32> -> vector<256x8xf32>
    %c0_87 = arith.constant 0 : index
    %c0_88 = arith.constant 0 : index
    %73 = vector.load %arg9[%c0_87, %c0_88] : memref<1x8xf32, #tpu.memory_space<vmem>>, vector<1x8xf32>
    %74 = vector.broadcast %73 : vector<1x8xf32> to vector<256x8xf32>
    %75 = arith.mulf %72, %74 : vector<256x8xf32>
    %c0_89 = arith.constant 0 : index
    %c0_90 = arith.constant 0 : index
    %76 = vector.load %arg10[%c0_89, %c0_90] : memref<1x8xf32, #tpu.memory_space<vmem>>, vector<1x8xf32>
    %77 = vector.broadcast %76 : vector<1x8xf32> to vector<256x8xf32>
    %78 = arith.addf %75, %77 : vector<256x8xf32>
    %79 = arith.addf %78, %50 : vector<256x8xf32>
    %cst_91 = arith.constant 0.000000e+00 : f32
    %80 = vector.broadcast %cst_91 : f32 to vector<256x8xf32>
    %81 = arith.maximumf %79, %80 : vector<256x8xf32>
    %82 = vector.shape_cast %81 : vector<256x8xf32> to vector<1x256x8xf32>
    %c0_92 = arith.constant 0 : index
    %c0_93 = arith.constant 0 : index
    %c0_94 = arith.constant 0 : index
    %83 = vector.load %arg11[%c0_92, %c0_93, %c0_94] : memref<1x256x8xf32, #tpu.memory_space<vmem>>, vector<1x256x8xf32>
    tpu.vector_store %arg11[%c0_92, %c0_93, %c0_94], %82 {strides = array<i32>} : memref<1x256x8xf32, #tpu.memory_space<vmem>>, vector<1x256x8xf32>,
    return
  }
  func.func @transform_0(%arg0: i32) -> (i32, i32, i32, i32) {
    %c0_i32 = arith.constant 0 : i32
    %c0_i32_0 = arith.constant 0 : i32
    %c0_i32_1 = arith.constant 0 : i32
    %c0_i32_2 = arith.constant 0 : i32
    return %arg0, %c0_i32, %c0_i32_0, %c0_i32_1 : i32, i32, i32, i32
  }
  func.func @transform_1(%arg0: i32) -> (i32, i32) {
    %c0_i32 = arith.constant 0 : i32
    %c0_i32_0 = arith.constant 0 : i32
    %c0_i32_1 = arith.constant 0 : i32
    return %c0_i32, %c0_i32_0 : i32, i32
  }
  func.func @transform_2(%arg0: i32) -> (i32, i32) {
    %c0_i32 = arith.constant 0 : i32
    %c0_i32_0 = arith.constant 0 : i32
    %c0_i32_1 = arith.constant 0 : i32
    return %c0_i32, %c0_i32_0 : i32, i32
  }
  func.func @transform_3(%arg0: i32) -> (i32, i32) {
    %c0_i32 = arith.constant 0 : i32
    %c0_i32_0 = arith.constant 0 : i32
    %c0_i32_1 = arith.constant 0 : i32
    return %c0_i32, %c0_i32_0 : i32, i32
  }
  func.func @transform_4(%arg0: i32) -> (i32, i32) {
    %c0_i32 = arith.constant 0 : i32
    %c0_i32_0 = arith.constant 0 : i32
    %c0_i32_1 = arith.constant 0 : i32
    return %c0_i32, %c0_i32_0 : i32, i32
  }
  func.func @transform_5(%arg0: i32) -> (i32, i32) {
    %c0_i32 = arith.constant 0 : i32
    %c0_i32_0 = arith.constant 0 : i32
    %c0_i32_1 = arith.constant 0 : i32
    return %c0_i32, %c0_i32_0 : i32, i32
  }
  func.func @transform_6(%arg0: i32) -> (i32, i32) {
    %c0_i32 = arith.constant 0 : i32
    %c0_i32_0 = arith.constant 0 : i32
    %c0_i32_1 = arith.constant 0 : i32
    return %c0_i32, %c0_i32_0 : i32, i32
  }
  func.func @transform_7(%arg0: i32) -> (i32, i32) {
    %c0_i32 = arith.constant 0 : i32
    %c0_i32_0 = arith.constant 0 : i32
    %c0_i32_1 = arith.constant 0 : i32
    return %c0_i32, %c0_i32_0 : i32, i32
  }
  func.func @transform_8(%arg0: i32) -> (i32, i32) {
    %c0_i32 = arith.constant 0 : i32
    %c0_i32_0 = arith.constant 0 : i32
    %c0_i32_1 = arith.constant 0 : i32
    return %c0_i32, %c0_i32_0 : i32, i32
  }
  func.func @transform_9(%arg0: i32) -> (i32, i32) {
    %c0_i32 = arith.constant 0 : i32
    %c0_i32_0 = arith.constant 0 : i32
    %c0_i32_1 = arith.constant 0 : i32
    return %c0_i32, %c0_i32_0 : i32, i32
  }
  func.func @transform_10(%arg0: i32) -> (i32, i32, i32) {
    %c0_i32 = arith.constant 0 : i32
    %c0_i32_0 = arith.constant 0 : i32
    %c0_i32_1 = arith.constant 0 : i32
    return %arg0, %c0_i32, %c0_i32_0 : i32, i32, i32
  }
}

</mosaic_0001>

<llo_original>
// kernel: basic_block_forward.1
$region0: #{basic_block_forward.1}
  #allocation0 [shape = 'u32[]', space=smem, size = 0x4, offset = 0x4, fixed_abs, tag = 'smem constant byte address 0x4 - core index']
  #allocation1 [shape = 'u32[144,128]{1,0:T(1,128)}', space=vmem, size = 0x12000, scoped, tag = 'internal scratch']
  #allocation2 [shape = 'f32[18,32,4]{2,1,0:T(8,128)}', space=vmem, size = 0x48000, scoped, tag = 'scratch operand']
  #allocation3 [shape = 'f32[18,32,8]{2,1,0:T(8,128)}', space=vmem, size = 0x48000, scoped, tag = 'scratch operand']
  %s0 = inlined_call_operand.vmem [shape: f32[2,16,16,4], index: 0, kind: input, shape index: {}]
  %s1 = inlined_call_operand.vmem [shape: bf16[36,8], index: 1, kind: input, shape index: {}]
  %s2 = inlined_call_operand.vmem [shape: f32[1,8], index: 2, kind: input, shape index: {}]
  %s3 = inlined_call_operand.vmem [shape: f32[1,8], index: 3, kind: input, shape index: {}]
  %s4 = inlined_call_operand.vmem [shape: bf16[4,8], index: 4, kind: input, shape index: {}]
  %s5 = inlined_call_operand.vmem [shape: f32[1,8], index: 5, kind: input, shape index: {}]
  %s6 = inlined_call_operand.vmem [shape: f32[1,8], index: 6, kind: input, shape index: {}]
  %s7 = inlined_call_operand.vmem [shape: bf16[72,8], index: 7, kind: input, shape index: {}]
  %s8 = inlined_call_operand.vmem [shape: f32[1,8], index: 8, kind: input, shape index: {}]
  %s9 = inlined_call_operand.vmem [shape: f32[1,8], index: 9, kind: input, shape index: {}]
  %s10 = inlined_call_operand.vmem [shape: f32[2,256,8], index: 10, kind: output, shape index: {}]
  %s11 = sld [smem:[#allocation0]]
  $region73: #{basic_block_forward.1} parent=0
    _
  %s13 = ssub.s32 1, %s11
  %s14 = scalar_select 0, %s13, %s11
  loop: start=0, step=1, limit=4
  $region2: #{basic_block_forward.1} parent=0 // loop_pre_header
    _
  $region3: #{basic_block_forward.1} parent=0 // loop_header
    %s16 = sphi 0, %s20
    %p17 = scmp.ge.s32.totalorder %s16, 4
    %s26 = sphi 0, %s28
    %s29 = sphi 0, %s26
    %s30 = sphi 0, %s29
    %s46 = sphi 0, %s30
    %s50 = sphi 0, %s50
    %s52 = sphi 0, %s50
    %s53 = sphi 0, %s52
    %s67 = sphi 0, %s53
    %s71 = sphi 0, %s71
    %s73 = sphi 0, %s71
    %s74 = sphi 0, %s73
    %s88 = sphi 0, %s74
    %s92 = sphi 0, %s92
    %s94 = sphi 0, %s92
    %s95 = sphi 0, %s94
    %s109 = sphi 0, %s95
    %s113 = sphi 0, %s113
    %s115 = sphi 0, %s113
    %s116 = sphi 0, %s115
    %s130 = sphi 0, %s116
    %s134 = sphi 0, %s134
    %s136 = sphi 0, %s134
    %s137 = sphi 0, %s136
    %s151 = sphi 0, %s137
    %s155 = sphi 0, %s155
    %s157 = sphi 0, %s155
    %s158 = sphi 0, %s157
    %s172 = sphi 0, %s158
    %s176 = sphi 0, %s176
    %s178 = sphi 0, %s176
    %s179 = sphi 0, %s178
    %s193 = sphi 0, %s179
    %s197 = sphi 0, %s197
    %s199 = sphi 0, %s197
    %s200 = sphi 0, %s199
    %s214 = sphi 0, %s200
    %s218 = sphi 0, %s218
    %s220 = sphi 0, %s218
    %s221 = sphi 0, %s220
    %s235 = sphi 0, %s221
    %s241 = sphi 0, %s243
    %s244 = sphi 0, %s241
    %s245 = sphi 0, %s244
    %s261 = sphi 0, %s245
  $region4: #{basic_block_forward.1} parent=0 // loop_header_branch
    %19 = sbr.rel (%p17) target = $region8
  $region5: #{basic_block_forward.1} parent=0 // loop_body
    %s21 = ssub.s32 %s16, 1
    %s22 = ssub.s32 %s16, 2
    %s23 = sadd.s32 %s16, 1
    %s24 = ssub.s32 %s16, %s23
    %p25 = scmp.eq.s32.totalorder %s24, 0
    %s27 = sadd.s32 %s26, 1
    %s28 = scalar_select %p25, %s26, %s27
    %p31 = pneg %p25
    %p32 = scmp.eq.s32.totalorder %s16, 1
    %p33 = por %p31, %p32
    %p34 = scmp.ne.s32.totalorder %s26, %s29
    %p35 = scmp.eq.s32.totalorder %s16, 0
    %p36 = por %p34, %p35
    %p37 = scmp.ne.s32.totalorder %s26, %s29
    %p38 = scmp.eq.s32.totalorder %s21, 1
    %p39 = por %p37, %p38
    %p40 = scmp.ne.s32.totalorder %s29, %s30
    %p41 = scmp.eq.s32.totalorder %s21, 0
    %p42 = por %p40, %p41
    %p43 = scmp.ne.s32.totalorder %s29, %s30
    %p44 = scmp.eq.s32.totalorder %s22, 1
    %p45 = por %p43, %p44
    %p47 = scmp.ne.s32.totalorder %s30, %s46
    %p48 = scmp.eq.s32.totalorder %s22, 0
    %p49 = por %p47, %p48
    %s51 = sadd.s32 %s50, 1
    %p54 = scmp.eq.s32.totalorder %s16, 1
    %p55 = scmp.ne.s32.totalorder %s50, %s52
    %p56 = scmp.eq.s32.totalorder %s16, 0
    %p57 = por %p55, %p56
    %p58 = scmp.ne.s32.totalorder %s50, %s52
    %p59 = scmp.eq.s32.totalorder %s21, 1
    %p60 = por %p58, %p59
    %p61 = scmp.ne.s32.totalorder %s52, %s53
    %p62 = scmp.eq.s32.totalorder %s21, 0
    %p63 = por %p61, %p62
    %p64 = scmp.ne.s32.totalorder %s52, %s53
    %p65 = scmp.eq.s32.totalorder %s22, 1
    %p66 = por %p64, %p65
    %p68 = scmp.ne.s32.totalorder %s53, %s67
    %p69 = scmp.eq.s32.totalorder %s22, 0
    %p70 = por %p68, %p69
    %s72 = sadd.s32 %s71, 1
    %p75 = scmp.eq.s32.totalorder %s16, 1
    %p76 = scmp.ne.s32.totalorder %s71, %s73
    %p77 = scmp.eq.s32.totalorder %s16, 0
    %p78 = por %p76, %p77
    %p79 = scmp.ne.s32.totalorder %s71, %s73
    %p80 = scmp.eq.s32.totalorder %s21, 1
    %p81 = por %p79, %p80
    %p82 = scmp.ne.s32.totalorder %s73, %s74
    %p83 = scmp.eq.s32.totalorder %s21, 0
    %p84 = por %p82, %p83
    %p85 = scmp.ne.s32.totalorder %s73, %s74
    %p86 = scmp.eq.s32.totalorder %s22, 1
    %p87 = por %p85, %p86
    %p89 = scmp.ne.s32.totalorder %s74, %s88
    %p90 = scmp.eq.s32.totalorder %s22, 0
    %p91 = por %p89, %p90
    %s93 = sadd.s32 %s92, 1
    %p96 = scmp.eq.s32.totalorder %s16, 1
    %p97 = scmp.ne.s32.totalorder %s92, %s94
    %p98 = scmp.eq.s32.totalorder %s16, 0
    %p99 = por %p97, %p98
    %p100 = scmp.ne.s32.totalorder %s92, %s94
    %p101 = scmp.eq.s32.totalorder %s21, 1
    %p102 = por %p100, %p101
    %p103 = scmp.ne.s32.totalorder %s94, %s95
    %p104 = scmp.eq.s32.totalorder %s21, 0
    %p105 = por %p103, %p104
    %p106 = scmp.ne.s32.totalorder %s94, %s95
    %p107 = scmp.eq.s32.totalorder %s22, 1
    %p108 = por %p106, %p107
    %p110 = scmp.ne.s32.totalorder %s95, %s109
    %p111 = scmp.eq.s32.totalorder %s22, 0
    %p112 = por %p110, %p111
    %s114 = sadd.s32 %s113, 1
    %p117 = scmp.eq.s32.totalorder %s16, 1
    %p118 = scmp.ne.s32.totalorder %s113, %s115
    %p119 = scmp.eq.s32.totalorder %s16, 0
    %p120 = por %p118, %p119
    %p121 = scmp.ne.s32.totalorder %s113, %s115
    %p122 = scmp.eq.s32.totalorder %s21, 1
    %p123 = por %p121, %p122
    %p124 = scmp.ne.s32.totalorder %s115, %s116
    %p125 = scmp.eq.s32.totalorder %s21, 0
    %p126 = por %p124, %p125
    %p127 = scmp.ne.s32.totalorder %s115, %s116
    %p128 = scmp.eq.s32.totalorder %s22, 1
    %p129 = por %p127, %p128
    %p131 = scmp.ne.s32.totalorder %s116, %s130
    %p132 = scmp.eq.s32.totalorder %s22, 0
    %p133 = por %p131, %p132
    %s135 = sadd.s32 %s134, 1
    %p138 = scmp.eq.s32.totalorder %s16, 1
    %p139 = scmp.ne.s32.totalorder %s134, %s136
    %p140 = scmp.eq.s32.totalorder %s16, 0
    %p141 = por %p139, %p140
    %p142 = scmp.ne.s32.totalorder %s134, %s136
    %p143 = scmp.eq.s32.totalorder %s21, 1
    %p144 = por %p142, %p143
    %p145 = scmp.ne.s32.totalorder %s136, %s137
    %p146 = scmp.eq.s32.totalorder %s21, 0
    %p147 = por %p145, %p146
    %p148 = scmp.ne.s32.totalorder %s136, %s137
    %p149 = scmp.eq.s32.totalorder %s22, 1
    %p150 = por %p148, %p149
    %p152 = scmp.ne.s32.totalorder %s137, %s151
    %p153 = scmp.eq.s32.totalorder %s22, 0
    %p154 = por %p152, %p153
    %s156 = sadd.s32 %s155, 1
    %p159 = scmp.eq.s32.totalorder %s16, 1
    %p160 = scmp.ne.s32.totalorder %s155, %s157
    %p161 = scmp.eq.s32.totalorder %s16, 0
    %p162 = por %p160, %p161
    %p163 = scmp.ne.s32.totalorder %s155, %s157
    %p164 = scmp.eq.s32.totalorder %s21, 1
    %p165 = por %p163, %p164
    %p166 = scmp.ne.s32.totalorder %s157, %s158
    %p167 = scmp.eq.s32.totalorder %s21, 0
    %p168 = por %p166, %p167
    %p169 = scmp.ne.s32.totalorder %s157, %s158
    %p170 = scmp.eq.s32.totalorder %s22, 1
    %p171 = por %p169, %p170
    %p173 = scmp.ne.s32.totalorder %s158, %s172
    %p174 = scmp.eq.s32.totalorder %s22, 0
    %p175 = por %p173, %p174
    %s177 = sadd.s32 %s176, 1
    %p180 = scmp.eq.s32.totalorder %s16, 1
    %p181 = scmp.ne.s32.totalorder %s176, %s178
    %p182 = scmp.eq.s32.totalorder %s16, 0
    %p183 = por %p181, %p182
    %p184 = scmp.ne.s32.totalorder %s176, %s178
    %p185 = scmp.eq.s32.totalorder %s21, 1
    %p186 = por %p184, %p185
    %p187 = scmp.ne.s32.totalorder %s178, %s179
    %p188 = scmp.eq.s32.totalorder %s21, 0
    %p189 = por %p187, %p188
    %p190 = scmp.ne.s32.totalorder %s178, %s179
    %p191 = scmp.eq.s32.totalorder %s22, 1
    %p192 = por %p190, %p191
    %p194 = scmp.ne.s32.totalorder %s179, %s193
    %p195 = scmp.eq.s32.totalorder %s22, 0
    %p196 = por %p194, %p195
    %s198 = sadd.s32 %s197, 1
    %p201 = scmp.eq.s32.totalorder %s16, 1
    %p202 = scmp.ne.s32.totalorder %s197, %s199
    %p203 = scmp.eq.s32.totalorder %s16, 0
    %p204 = por %p202, %p203
    %p205 = scmp.ne.s32.totalorder %s197, %s199
    %p206 = scmp.eq.s32.totalorder %s21, 1
    %p207 = por %p205, %p206
    %p208 = scmp.ne.s32.totalorder %s199, %s200
    %p209 = scmp.eq.s32.totalorder %s21, 0
    %p210 = por %p208, %p209
    %p211 = scmp.ne.s32.totalorder %s199, %s200
    %p212 = scmp.eq.s32.totalorder %s22, 1
    %p213 = por %p211, %p212
    %p215 = scmp.ne.s32.totalorder %s200, %s214
    %p216 = scmp.eq.s32.totalorder %s22, 0
    %p217 = por %p215, %p216
    %s219 = sadd.s32 %s218, 1
    %p222 = scmp.eq.s32.totalorder %s16, 1
    %p223 = scmp.ne.s32.totalorder %s218, %s220
    %p224 = scmp.eq.s32.totalorder %s16, 0
    %p225 = por %p223, %p224
    %p226 = scmp.ne.s32.totalorder %s218, %s220
    %p227 = scmp.eq.s32.totalorder %s21, 1
    %p228 = por %p226, %p227
    %p229 = scmp.ne.s32.totalorder %s220, %s221
    %p230 = scmp.eq.s32.totalorder %s21, 0
    %p231 = por %p229, %p230
    %p232 = scmp.ne.s32.totalorder %s220, %s221
    %p233 = scmp.eq.s32.totalorder %s22, 1
    %p234 = por %p232, %p233
    %p236 = scmp.ne.s32.totalorder %s221, %s235
    %p237 = scmp.eq.s32.totalorder %s22, 0
    %p238 = por %p236, %p237
    %s239 = ssub.s32 %s16, %s23
    %p240 = scmp.eq.s32.totalorder %s239, 0
    %s242 = sadd.s32 %s241, 1
    %s243 = scalar_select %p240, %s241, %s242
    %p246 = pneg %p240
    %p247 = scmp.eq.s32.totalorder %s16, 1
    %p248 = por %p246, %p247
    %p249 = scmp.ne.s32.totalorder %s241, %s244
    %p250 = scmp.eq.s32.totalorder %s16, 0
    %p251 = por %p249, %p250
    %p252 = scmp.ne.s32.totalorder %s241, %s244
    %p253 = scmp.eq.s32.totalorder %s21, 1
    %p254 = por %p252, %p253
    %p255 = scmp.ne.s32.totalorder %s244, %s245
    %p256 = scmp.eq.s32.totalorder %s21, 0
    %p257 = por %p255, %p256
    %p258 = scmp.ne.s32.totalorder %s244, %s245
    %p259 = scmp.eq.s32.totalorder %s22, 1
    %p260 = por %p258, %p259
    %p262 = scmp.ne.s32.totalorder %s245, %s261
    %p263 = scmp.eq.s32.totalorder %s22, 0
    %p264 = por %p262, %p263
    %p265 = scmp.le.s32.totalorder 1, %s16
    %p266 = scmp.lt.s32.totalorder %s16, 3
    %p267 = pnand %p265, %p266
    %p268 = pneg %p267
    // Predicated region
    $region9: #{basic_block_forward.1} parent=5 // pred_check
      _
    $region10: #{basic_block_forward.1} parent=5 // pred_check_branch
      %270 = sbr.rel (%p267) target = $region12
    $region11: #{basic_block_forward.1} parent=5 // pred_region
      %s271 = ssub.s32 %s16, 1
      // Predicated region
      $region13: #{basic_block_forward.1} parent=11 // pred_check
        %p272 = pneg %p63
      $region14: #{basic_block_forward.1} parent=11 // pred_check_branch
        %274 = sbr.rel (%p272) target = $region16
      $region15: #{basic_block_forward.1} parent=11 // pred_region
        _
      $region16: #{basic_block_forward.1} parent=11 // pred_fallthru
        _
      // Predicated region
      $region17: #{basic_block_forward.1} parent=11 // pred_check
        %p275 = pneg %p84
      $region18: #{basic_block_forward.1} parent=11 // pred_check_branch
        %277 = sbr.rel (%p275) target = $region20
      $region19: #{basic_block_forward.1} parent=11 // pred_region
        _
      $region20: #{basic_block_forward.1} parent=11 // pred_fallthru
        _
      // Predicated region
      $region21: #{basic_block_forward.1} parent=11 // pred_check
        %p278 = pneg %p105
      $region22: #{basic_block_forward.1} parent=11 // pred_check_branch
        %280 = sbr.rel (%p278) target = $region24
      $region23: #{basic_block_forward.1} parent=11 // pred_region
        _
      $region24: #{basic_block_forward.1} parent=11 // pred_fallthru
        _
      // Predicated region
      $region25: #{basic_block_forward.1} parent=11 // pred_check
        %p281 = pneg %p126
      $region26: #{basic_block_forward.1} parent=11 // pred_check_branch
        %283 = sbr.rel (%p281) target = $region28
      $region27: #{basic_block_forward.1} parent=11 // pred_region
        _
      $region28: #{basic_block_forward.1} parent=11 // pred_fallthru
        _
      // Predicated region
      $region29: #{basic_block_forward.1} parent=11 // pred_check
        %p284 = pneg %p147
      $region30: #{basic_block_forward.1} parent=11 // pred_check_branch
        %286 = sbr.rel (%p284) target = $region32
      $region31: #{basic_block_forward.1} parent=11 // pred_region
        _
      $region32: #{basic_block_forward.1} parent=11 // pred_fallthru
        _
      // Predicated region
      $region33: #{basic_block_forward.1} parent=11 // pred_check
        %p287 = pneg %p168
      $region34: #{basic_block_forward.1} parent=11 // pred_check_branch
        %289 = sbr.rel (%p287) target = $region36
      $region35: #{basic_block_forward.1} parent=11 // pred_region
        _
      $region36: #{basic_block_forward.1} parent=11 // pred_fallthru
        _
      // Predicated region
      $region37: #{basic_block_forward.1} parent=11 // pred_check
        %p290 = pneg %p189
      $region38: #{basic_block_forward.1} parent=11 // pred_check_branch
        %292 = sbr.rel (%p290) target = $region40
      $region39: #{basic_block_forward.1} parent=11 // pred_region
        _
      $region40: #{basic_block_forward.1} parent=11 // pred_fallthru
        _
      // Predicated region
      $region41: #{basic_block_forward.1} parent=11 // pred_check
        %p293 = pneg %p210
      $region42: #{basic_block_forward.1} parent=11 // pred_check_branch
        %295 = sbr.rel (%p293) target = $region44
      $region43: #{basic_block_forward.1} parent=11 // pred_region
        _
      $region44: #{basic_block_forward.1} parent=11 // pred_fallthru
        _
      // Predicated region
      $region45: #{basic_block_forward.1} parent=11 // pred_check
        %p296 = pneg %p231
      $region46: #{basic_block_forward.1} parent=11 // pred_check_branch
        %298 = sbr.rel (%p296) target = $region48
      $region47: #{basic_block_forward.1} parent=11 // pred_region
        _
      $region48: #{basic_block_forward.1} parent=11 // pred_fallthru
        _
    $region12: #{basic_block_forward.1} parent=5 // pred_fallthru
      _
    %p299 = scmp.lt.s32.totalorder %s16, 2
    // Predicated region
    $region49: #{basic_block_forward.1} parent=5 // pred_check
      %p300 = pneg %p299
    $region50: #{basic_block_forward.1} parent=5 // pred_check_branch
      %302 = sbr.rel (%p300) target = $region52
    $region51: #{basic_block_forward.1} parent=5 // pred_region
      // Predicated region
      $region53: #{basic_block_forward.1} parent=51 // pred_check
        %p303 = pneg %p36
      $region54: #{basic_block_forward.1} parent=51 // pred_check_branch
        %305 = sbr.rel (%p303) target = $region56
      $region55: #{basic_block_forward.1} parent=51 // pred_region
        %p306 = scmp.lt.s32.totalorder %s16, 1
        %s307 = scalar_select %p306, %s16, 1
        %s308 = smul.addr %s307, 32
        %s309 = smul.addr %s308, 8
        %s310 = scalar_lea.vmem %s0, %s309
      $region56: #{basic_block_forward.1} parent=51 // pred_fallthru
        _
    $region52: #{basic_block_forward.1} parent=5 // pred_fallthru
      _
    %p311 = scmp.le.s32.totalorder 1, %s16
    %p312 = scmp.lt.s32.totalorder %s16, 3
    %p313 = pnand %p311, %p312
    %p314 = pneg %p313
    // Predicated region
    $region57: #{basic_block_forward.1} parent=5 // pred_check
      _
    $region58: #{basic_block_forward.1} parent=5 // pred_check_branch
      %316 = sbr.rel (%p313) target = $region60
    $region59: #{basic_block_forward.1} parent=5 // pred_region
      %s317 = ssub.s32 %s16, 1
      %p318 = scmp.lt.s32.totalorder %s21, 1
      %s319 = scalar_select %p318, %s21, 1
      %s320 = smul.addr %s319, 32
      %s321 = smul.addr %s320, 8
      %s322 = scalar_lea.vmem %s0, %s321
      %p323 = pneg %p42
      %p324 = pneg %p39
      %p325 = pneg %p63
      %p326 = pneg %p60
      %p327 = pneg %p84
      %p328 = pneg %p81
      %p329 = pneg %p105
      %p330 = pneg %p102
      %p331 = pneg %p126
      %p332 = pneg %p123
      %p333 = pneg %p147
      %p334 = pneg %p144
      %p335 = pneg %p168
      %p336 = pneg %p165
      %p337 = pneg %p189
      %p338 = pneg %p186
      %p339 = pneg %p210
      %p340 = pneg %p207
      %p341 = pneg %p231
      %p342 = pneg %p228
      %p343 = pneg %p257
      %p344 = pneg %p254
      %p345 = scmp.lt.s32.totalorder %s21, 1
      %s346 = scalar_select %p345, %s21, 1
      %s347 = smul.addr %s346, 32
      %s348 = smul.addr %s347, 8
      %s349 = scalar_lea.vmem %s10, %s348
      %p350 = scmp.lt.s32.totalorder %s21, 1
      %s351 = scalar_select %p350, %s21, 1
      %s352 = smul.addr %s351, 32
      %s353 = smul.addr %s352, 8
      %s354 = scalar_lea.vmem %s0, %s353
      %p355 = scmp.lt.s32.totalorder %s21, 1
      %s356 = scalar_select %p355, %s21, 1
      %s357 = smul.addr %s356, 32
      %s358 = smul.addr %s357, 8
      %s359 = scalar_lea.vmem %s10, %s358
      %vm361 = vcmask 31744
      %362 = vst.msk [vmem:[#allocation2] sm:$0xff] %vm361, 0.0
      %363 = vst.msk [vmem:[#allocation2 + $0x8] sm:$0xff] %vm361, 0.0
      %364 = vst.msk [vmem:[#allocation2 + $0x10] sm:$0xff] %vm361, 0.0
      %365 = vst.msk [vmem:[#allocation2 + $0x18] sm:$0xff] %vm361, 0.0
      %366 = vst.msk [vmem:[#allocation2 + $0x20] sm:$0xff] %vm361, 0.0
      %367 = vst.msk [vmem:[#allocation2 + $0x28] sm:$0xff] %vm361, 0.0
      %368 = vst.msk [vmem:[#allocation2 + $0x30] sm:$0xff] %vm361, 0.0
      %369 = vst.msk [vmem:[#allocation2 + $0x38] sm:$0xff] %vm361, 0.0
      %370 = vst.msk [vmem:[#allocation2 + $0x40] sm:$0xff] %vm361, 0.0
      %371 = vst.msk [vmem:[#allocation2 + $0x48] sm:$0xff] %vm361, 0.0
      %372 = vst.msk [vmem:[#allocation2 + $0x50] sm:$0xff] %vm361, 0.0
      %373 = vst.msk [vmem:[#allocation2 + $0x58] sm:$0xff] %vm361, 0.0
      %374 = vst.msk [vmem:[#allocation2 + $0x60] sm:$0xff] %vm361, 0.0
      %375 = vst.msk [vmem:[#allocation2 + $0x68] sm:$0xff] %vm361, 0.0
      %376 = vst.msk [vmem:[#allocation2 + $0x70] sm:$0xff] %vm361, 0.0
      %377 = vst.msk [vmem:[#allocation2 + $0x78] sm:$0xff] %vm361, 0.0
      %378 = vst.msk [vmem:[#allocation2 + $0x80] sm:$0xff] %vm361, 0.0
      %379 = vst.msk [vmem:[#allocation2 + $0x88] sm:$0xff] %vm361, 0.0
      %380 = vst.msk [vmem:[#allocation2 + $0x90] sm:$0xff] %vm361, 0.0
      %381 = vst.msk [vmem:[#allocation2 + $0x98] sm:$0xff] %vm361, 0.0
      %382 = vst.msk [vmem:[#allocation2 + $0xa0] sm:$0xff] %vm361, 0.0
      %383 = vst.msk [vmem:[#allocation2 + $0xa8] sm:$0xff] %vm361, 0.0
      %384 = vst.msk [vmem:[#allocation2 + $0xb0] sm:$0xff] %vm361, 0.0
      %385 = vst.msk [vmem:[#allocation2 + $0xb8] sm:$0xff] %vm361, 0.0
      %386 = vst.msk [vmem:[#allocation2 + $0xc0] sm:$0xff] %vm361, 0.0
      %387 = vst.msk [vmem:[#allocation2 + $0xc8] sm:$0xff] %vm361, 0.0
      %388 = vst.msk [vmem:[#allocation2 + $0xd0] sm:$0xff] %vm361, 0.0
      %389 = vst.msk [vmem:[#allocation2 + $0xd8] sm:$0xff] %vm361, 0.0
      %390 = vst.msk [vmem:[#allocation2 + $0xe0] sm:$0xff] %vm361, 0.0
      %391 = vst.msk [vmem:[#allocation2 + $0xe8] sm:$0xff] %vm361, 0.0
      %392 = vst.msk [vmem:[#allocation2 + $0xf0] sm:$0xff] %vm361, 0.0
      %393 = vst.msk [vmem:[#allocation2 + $0xf8] sm:$0xff] %vm361, 0.0
      %394 = vst.msk [vmem:[#allocation2 + $0x100] sm:$0xff] %vm361, 0.0
      %395 = vst.msk [vmem:[#allocation2 + $0x108] sm:$0xff] %vm361, 0.0
      %396 = vst.msk [vmem:[#allocation2 + $0x110] sm:$0xff] %vm361, 0.0
      %397 = vst.msk [vmem:[#allocation2 + $0x118] sm:$0xff] %vm361, 0.0
      %398 = vst.msk [vmem:[#allocation2 + $0x120] sm:$0xff] %vm361, 0.0
      %399 = vst.msk [vmem:[#allocation2 + $0x128] sm:$0xff] %vm361, 0.0
      %400 = vst.msk [vmem:[#allocation2 + $0x130] sm:$0xff] %vm361, 0.0
      %401 = vst.msk [vmem:[#allocation2 + $0x138] sm:$0xff] %vm361, 0.0
      %402 = vst.msk [vmem:[#allocation2 + $0x140] sm:$0xff] %vm361, 0.0
      %403 = vst.msk [vmem:[#allocation2 + $0x148] sm:$0xff] %vm361, 0.0
      %404 = vst.msk [vmem:[#allocation2 + $0x150] sm:$0xff] %vm361, 0.0
      %405 = vst.msk [vmem:[#allocation2 + $0x158] sm:$0xff] %vm361, 0.0
      %406 = vst.msk [vmem:[#allocation2 + $0x160] sm:$0xff] %vm361, 0.0
      %407 = vst.msk [vmem:[#allocation2 + $0x168] sm:$0xff] %vm361, 0.0
      %408 = vst.msk [vmem:[#allocation2 + $0x170] sm:$0xff] %vm361, 0.0
      %409 = vst.msk [vmem:[#allocation2 + $0x178] sm:$0xff] %vm361, 0.0
      %410 = vst.msk [vmem:[#allocation2 + $0x180] sm:$0xff] %vm361, 0.0
      %411 = vst.msk [vmem:[#allocation2 + $0x188] sm:$0xff] %vm361, 0.0
      %412 = vst.msk [vmem:[#allocation2 + $0x190] sm:$0xff] %vm361, 0.0
      %413 = vst.msk [vmem:[#allocation2 + $0x198] sm:$0xff] %vm361, 0.0
      %414 = vst.msk [vmem:[#allocation2 + $0x1a0] sm:$0xff] %vm361, 0.0
      %415 = vst.msk [vmem:[#allocation2 + $0x1a8] sm:$0xff] %vm361, 0.0
      %416 = vst.msk [vmem:[#allocation2 + $0x1b0] sm:$0xff] %vm361, 0.0
      %417 = vst.msk [vmem:[#allocation2 + $0x1b8] sm:$0xff] %vm361, 0.0
      %418 = vst.msk [vmem:[#allocation2 + $0x1c0] sm:$0xff] %vm361, 0.0
      %419 = vst.msk [vmem:[#allocation2 + $0x1c8] sm:$0xff] %vm361, 0.0
      %420 = vst.msk [vmem:[#allocation2 + $0x1d0] sm:$0xff] %vm361, 0.0
      %421 = vst.msk [vmem:[#allocation2 + $0x1d8] sm:$0xff] %vm361, 0.0
      %422 = vst.msk [vmem:[#allocation2 + $0x1e0] sm:$0xff] %vm361, 0.0
      %423 = vst.msk [vmem:[#allocation2 + $0x1e8] sm:$0xff] %vm361, 0.0
      %424 = vst.msk [vmem:[#allocation2 + $0x1f0] sm:$0xff] %vm361, 0.0
      %425 = vst.msk [vmem:[#allocation2 + $0x1f8] sm:$0xff] %vm361, 0.0
      %426 = vst.msk [vmem:[#allocation2 + $0x200] sm:$0xff] %vm361, 0.0
      %427 = vst.msk [vmem:[#allocation2 + $0x208] sm:$0xff] %vm361, 0.0
      %428 = vst.msk [vmem:[#allocation2 + $0x210] sm:$0xff] %vm361, 0.0
      %429 = vst.msk [vmem:[#allocation2 + $0x218] sm:$0xff] %vm361, 0.0
      %430 = vst.msk [vmem:[#allocation2 + $0x220] sm:$0xff] %vm361, 0.0
      %431 = vst.msk [vmem:[#allocation2 + $0x228] sm:$0xff] %vm361, 0.0
      %432 = vst.msk [vmem:[#allocation2 + $0x230] sm:$0xff] %vm361, 0.0
      %433 = vst.msk [vmem:[#allocation2 + $0x238] sm:$0xff] %vm361, 0.0
      %v434 = vld [vmem:[%s354] sm:$0xff]
      %v435 = vld [vmem:[%s354 + $0x8] sm:$0xff]
      %v436 = vld [vmem:[%s354 + $0x10] sm:$0xff]
      %v437 = vld [vmem:[%s354 + $0x18] sm:$0xff]
      %v438 = vld [vmem:[%s354 + $0x20] sm:$0xff]
      %v439 = vld [vmem:[%s354 + $0x28] sm:$0xff]
      %v440 = vld [vmem:[%s354 + $0x30] sm:$0xff]
      %v441 = vld [vmem:[%s354 + $0x38] sm:$0xff]
      %v442 = vld [vmem:[%s354 + $0x40] sm:$0xff]
      %v443 = vld [vmem:[%s354 + $0x48] sm:$0xff]
      %v444 = vld [vmem:[%s354 + $0x50] sm:$0xff]
      %v445 = vld [vmem:[%s354 + $0x58] sm:$0xff]
      %v446 = vld [vmem:[%s354 + $0x60] sm:$0xff]
      %v447 = vld [vmem:[%s354 + $0x68] sm:$0xff]
      %v448 = vld [vmem:[%s354 + $0x70] sm:$0xff]
      %v449 = vld [vmem:[%s354 + $0x78] sm:$0xff]
      %v450 = vld [vmem:[%s354 + $0x80] sm:$0xff]
      %v451 = vld [vmem:[%s354 + $0x88] sm:$0xff]
      %v452 = vld [vmem:[%s354 + $0x90] sm:$0xff]
      %v453 = vld [vmem:[%s354 + $0x98] sm:$0xff]
      %v454 = vld [vmem:[%s354 + $0xa0] sm:$0xff]
      %v455 = vld [vmem:[%s354 + $0xa8] sm:$0xff]
      %v456 = vld [vmem:[%s354 + $0xb0] sm:$0xff]
      %v457 = vld [vmem:[%s354 + $0xb8] sm:$0xff]
      %v458 = vld [vmem:[%s354 + $0xc0] sm:$0xff]
      %v459 = vld [vmem:[%s354 + $0xc8] sm:$0xff]
      %v460 = vld [vmem:[%s354 + $0xd0] sm:$0xff]
      %v461 = vld [vmem:[%s354 + $0xd8] sm:$0xff]
      %v462 = vld [vmem:[%s354 + $0xe0] sm:$0xff]
      %v463 = vld [vmem:[%s354 + $0xe8] sm:$0xff]
      %v464 = vld [vmem:[%s354 + $0xf0] sm:$0xff]
      %v465 = vld [vmem:[%s354 + $0xf8] sm:$0xff]
      %s466 = scalar_lea.vmem [#allocation2], 32
      %467 = vst.msk [vmem:[%s466 + $0x8] sm:$0xff] %vm361, %v434
      %468 = vst.msk [vmem:[%s466 + $0x10] sm:$0xff] %vm361, %v435
      %469 = vst.msk [vmem:[%s466 + $0x28] sm:$0xff] %vm361, %v436
      %470 = vst.msk [vmem:[%s466 + $0x30] sm:$0xff] %vm361, %v437
      %471 = vst.msk [vmem:[%s466 + $0x48] sm:$0xff] %vm361, %v438
      %472 = vst.msk [vmem:[%s466 + $0x50] sm:$0xff] %vm361, %v439
      %473 = vst.msk [vmem:[%s466 + $0x68] sm:$0xff] %vm361, %v440
      %474 = vst.msk [vmem:[%s466 + $0x70] sm:$0xff] %vm361, %v441
      %475 = vst.msk [vmem:[%s466 + $0x88] sm:$0xff] %vm361, %v442
      %476 = vst.msk [vmem:[%s466 + $0x90] sm:$0xff] %vm361, %v443
      %477 = vst.msk [vmem:[%s466 + $0xa8] sm:$0xff] %vm361, %v444
      %478 = vst.msk [vmem:[%s466 + $0xb0] sm:$0xff] %vm361, %v445
      %479 = vst.msk [vmem:[%s466 + $0xc8] sm:$0xff] %vm361, %v446
      %480 = vst.msk [vmem:[%s466 + $0xd0] sm:$0xff] %vm361, %v447
      %481 = vst.msk [vmem:[%s466 + $0xe8] sm:$0xff] %vm361, %v448
      %482 = vst.msk [vmem:[%s466 + $0xf0] sm:$0xff] %vm361, %v449
      %483 = vst.msk [vmem:[%s466 + $0x108] sm:$0xff] %vm361, %v450
      %484 = vst.msk [vmem:[%s466 + $0x110] sm:$0xff] %vm361, %v451
      %485 = vst.msk [vmem:[%s466 + $0x128] sm:$0xff] %vm361, %v452
      %486 = vst.msk [vmem:[%s466 + $0x130] sm:$0xff] %vm361, %v453
      %487 = vst.msk [vmem:[%s466 + $0x148] sm:$0xff] %vm361, %v454
      %488 = vst.msk [vmem:[%s466 + $0x150] sm:$0xff] %vm361, %v455
      %489 = vst.msk [vmem:[%s466 + $0x168] sm:$0xff] %vm361, %v456
      %490 = vst.msk [vmem:[%s466 + $0x170] sm:$0xff] %vm361, %v457
      %491 = vst.msk [vmem:[%s466 + $0x188] sm:$0xff] %vm361, %v458
      %492 = vst.msk [vmem:[%s466 + $0x190] sm:$0xff] %vm361, %v459
      %493 = vst.msk [vmem:[%s466 + $0x1a8] sm:$0xff] %vm361, %v460
      %494 = vst.msk [vmem:[%s466 + $0x1b0] sm:$0xff] %vm361, %v461
      %495 = vst.msk [vmem:[%s466 + $0x1c8] sm:$0xff] %vm361, %v462
      %496 = vst.msk [vmem:[%s466 + $0x1d0] sm:$0xff] %vm361, %v463
      %497 = vst.msk [vmem:[%s466 + $0x1e8] sm:$0xff] %vm361, %v464
      %498 = vst.msk [vmem:[%s466 + $0x1f0] sm:$0xff] %vm361, %v465
      %v499 = vld [vmem:[#allocation2 + $0x7] sm:$0xff]
      %v500 = vld [vmem:[#allocation2 + $0xf] sm:$0xff]
      %v501 = vld [vmem:[#allocation2 + $0x27] sm:$0xff]
      %v502 = vld [vmem:[#allocation2 + $0x2f] sm:$0xff]
      %v503 = vld [vmem:[#allocation2 + $0x47] sm:$0xff]
      %v504 = vld [vmem:[#allocation2 + $0x4f] sm:$0xff]
      %v505 = vld [vmem:[#allocation2 + $0x67] sm:$0xff]
      %v506 = vld [vmem:[#allocation2 + $0x6f] sm:$0xff]
      %v507 = vld [vmem:[#allocation2 + $0x87] sm:$0xff]
      %v508 = vld [vmem:[#allocation2 + $0x8f] sm:$0xff]
      %v509 = vld [vmem:[#allocation2 + $0xa7] sm:$0xff]
      %v510 = vld [vmem:[#allocation2 + $0xaf] sm:$0xff]
      %v511 = vld [vmem:[#allocation2 + $0xc7] sm:$0xff]
      %v512 = vld [vmem:[#allocation2 + $0xcf] sm:$0xff]
      %v513 = vld [vmem:[#allocation2 + $0xe7] sm:$0xff]
      %v514 = vld [vmem:[#allocation2 + $0xef] sm:$0xff]
      %v515 = vld [vmem:[#allocation2 + $0x107] sm:$0xff]
      %v516 = vld [vmem:[#allocation2 + $0x10f] sm:$0xff]
      %v517 = vld [vmem:[#allocation2 + $0x127] sm:$0xff]
      %v518 = vld [vmem:[#allocation2 + $0x12f] sm:$0xff]
      %v519 = vld [vmem:[#allocation2 + $0x147] sm:$0xff]
      %v520 = vld [vmem:[#allocation2 + $0x14f] sm:$0xff]
      %v521 = vld [vmem:[#allocation2 + $0x167] sm:$0xff]
      %v522 = vld [vmem:[#allocation2 + $0x16f] sm:$0xff]
      %v523 = vld [vmem:[#allocation2 + $0x187] sm:$0xff]
      %v524 = vld [vmem:[#allocation2 + $0x18f] sm:$0xff]
      %v525 = vld [vmem:[#allocation2 + $0x1a7] sm:$0xff]
      %v526 = vld [vmem:[#allocation2 + $0x1af] sm:$0xff]
      %v527 = vld [vmem:[#allocation2 + $0x1c7] sm:$0xff]
      %v528 = vld [vmem:[#allocation2 + $0x1cf] sm:$0xff]
      %v529 = vld [vmem:[#allocation2 + $0x1e7] sm:$0xff]
      %v530 = vld [vmem:[#allocation2 + $0x1ef] sm:$0xff]
      %v531 = vld [vmem:[#allocation2 + $0x8] sm:$0xff]
      %v532 = vld [vmem:[#allocation2 + $0x10] sm:$0xff]
      %v533 = vld [vmem:[#allocation2 + $0x28] sm:$0xff]
      %v534 = vld [vmem:[#allocation2 + $0x30] sm:$0xff]
      %v535 = vld [vmem:[#allocation2 + $0x48] sm:$0xff]
      %v536 = vld [vmem:[#allocation2 + $0x50] sm:$0xff]
      %v537 = vld [vmem:[#allocation2 + $0x68] sm:$0xff]
      %v538 = vld [vmem:[#allocation2 + $0x70] sm:$0xff]
      %v539 = vld [vmem:[#allocation2 + $0x88] sm:$0xff]
      %v540 = vld [vmem:[#allocation2 + $0x90] sm:$0xff]
      %v541 = vld [vmem:[#allocation2 + $0xa8] sm:$0xff]
      %v542 = vld [vmem:[#allocation2 + $0xb0] sm:$0xff]
      %v543 = vld [vmem:[#allocation2 + $0xc8] sm:$0xff]
      %v544 = vld [vmem:[#allocation2 + $0xd0] sm:$0xff]
      %v545 = vld [vmem:[#allocation2 + $0xe8] sm:$0xff]
      %v546 = vld [vmem:[#allocation2 + $0xf0] sm:$0xff]
      %v547 = vld [vmem:[#allocation2 + $0x108] sm:$0xff]
      %v548 = vld [vmem:[#allocation2 + $0x110] sm:$0xff]
      %v549 = vld [vmem:[#allocation2 + $0x128] sm:$0xff]
      %v550 = vld [vmem:[#allocation2 + $0x130] sm:$0xff]
      %v551 = vld [vmem:[#allocation2 + $0x148] sm:$0xff]
      %v552 = vld [vmem:[#allocation2 + $0x150] sm:$0xff]
      %v553 = vld [vmem:[#allocation2 + $0x168] sm:$0xff]
      %v554 = vld [vmem:[#allocation2 + $0x170] sm:$0xff]
      %v555 = vld [vmem:[#allocation2 + $0x188] sm:$0xff]
      %v556 = vld [vmem:[#allocation2 + $0x190] sm:$0xff]
      %v557 = vld [vmem:[#allocation2 + $0x1a8] sm:$0xff]
      %v558 = vld [vmem:[#allocation2 + $0x1b0] sm:$0xff]
      %v559 = vld [vmem:[#allocation2 + $0x1c8] sm:$0xff]
      %v560 = vld [vmem:[#allocation2 + $0x1d0] sm:$0xff]
      %v561 = vld [vmem:[#allocation2 + $0x1e8] sm:$0xff]
      %v562 = vld [vmem:[#allocation2 + $0x1f0] sm:$0xff]
      %v563 = vld [vmem:[#allocation2 + $0x9] sm:$0xff]
      %v564 = vld [vmem:[#allocation2 + $0x11] sm:$0xff]
      %v565 = vld [vmem:[#allocation2 + $0x29] sm:$0xff]
      %v566 = vld [vmem:[#allocation2 + $0x31] sm:$0xff]
      %v567 = vld [vmem:[#allocation2 + $0x49] sm:$0xff]
      %v568 = vld [vmem:[#allocation2 + $0x51] sm:$0xff]
      %v569 = vld [vmem:[#allocation2 + $0x69] sm:$0xff]
      %v570 = vld [vmem:[#allocation2 + $0x71] sm:$0xff]
      %v571 = vld [vmem:[#allocation2 + $0x89] sm:$0xff]
      %v572 = vld [vmem:[#allocation2 + $0x91] sm:$0xff]
      %v573 = vld [vmem:[#allocation2 + $0xa9] sm:$0xff]
      %v574 = vld [vmem:[#allocation2 + $0xb1] sm:$0xff]
      %v575 = vld [vmem:[#allocation2 + $0xc9] sm:$0xff]
      %v576 = vld [vmem:[#allocation2 + $0xd1] sm:$0xff]
      %v577 = vld [vmem:[#allocation2 + $0xe9] sm:$0xff]
      %v578 = vld [vmem:[#allocation2 + $0xf1] sm:$0xff]
      %v579 = vld [vmem:[#allocation2 + $0x109] sm:$0xff]
      %v580 = vld [vmem:[#allocation2 + $0x111] sm:$0xff]
      %v581 = vld [vmem:[#allocation2 + $0x129] sm:$0xff]
      %v582 = vld [vmem:[#allocation2 + $0x131] sm:$0xff]
      %v583 = vld [vmem:[#allocation2 + $0x149] sm:$0xff]
      %v584 = vld [vmem:[#allocation2 + $0x151] sm:$0xff]
      %v585 = vld [vmem:[#allocation2 + $0x169] sm:$0xff]
      %v586 = vld [vmem:[#allocation2 + $0x171] sm:$0xff]
      %v587 = vld [vmem:[#allocation2 + $0x189] sm:$0xff]
      %v588 = vld [vmem:[#allocation2 + $0x191] sm:$0xff]
      %v589 = vld [vmem:[#allocation2 + $0x1a9] sm:$0xff]
      %v590 = vld [vmem:[#allocation2 + $0x1b1] sm:$0xff]
      %v591 = vld [vmem:[#allocation2 + $0x1c9] sm:$0xff]
      %v592 = vld [vmem:[#allocation2 + $0x1d1] sm:$0xff]
      %v593 = vld [vmem:[#allocation2 + $0x1e9] sm:$0xff]
      %v594 = vld [vmem:[#allocation2 + $0x1f1] sm:$0xff]
      %v595 = vld [vmem:[%s466 + $0x7] sm:$0xff]
      %v596 = vld [vmem:[%s466 + $0xf] sm:$0xff]
      %v597 = vld [vmem:[%s466 + $0x27] sm:$0xff]
      %v598 = vld [vmem:[%s466 + $0x2f] sm:$0xff]
      %v599 = vld [vmem:[%s466 + $0x47] sm:$0xff]
      %v600 = vld [vmem:[%s466 + $0x4f] sm:$0xff]
      %v601 = vld [vmem:[%s466 + $0x67] sm:$0xff]
      %v602 = vld [vmem:[%s466 + $0x6f] sm:$0xff]
      %v603 = vld [vmem:[%s466 + $0x87] sm:$0xff]
      %v604 = vld [vmem:[%s466 + $0x8f] sm:$0xff]
      %v605 = vld [vmem:[%s466 + $0xa7] sm:$0xff]
      %v606 = vld [vmem:[%s466 + $0xaf] sm:$0xff]
      %v607 = vld [vmem:[%s466 + $0xc7] sm:$0xff]
      %v608 = vld [vmem:[%s466 + $0xcf] sm:$0xff]
      %v609 = vld [vmem:[%s466 + $0xe7] sm:$0xff]
      %v610 = vld [vmem:[%s466 + $0xef] sm:$0xff]
      %v611 = vld [vmem:[%s466 + $0x107] sm:$0xff]
      %v612 = vld [vmem:[%s466 + $0x10f] sm:$0xff]
      %v613 = vld [vmem:[%s466 + $0x127] sm:$0xff]
      %v614 = vld [vmem:[%s466 + $0x12f] sm:$0xff]
      %v615 = vld [vmem:[%s466 + $0x147] sm:$0xff]
      %v616 = vld [vmem:[%s466 + $0x14f] sm:$0xff]
      %v617 = vld [vmem:[%s466 + $0x167] sm:$0xff]
      %v618 = vld [vmem:[%s466 + $0x16f] sm:$0xff]
      %v619 = vld [vmem:[%s466 + $0x187] sm:$0xff]
      %v620 = vld [vmem:[%s466 + $0x18f] sm:$0xff]
      %v621 = vld [vmem:[%s466 + $0x1a7] sm:$0xff]
      %v622 = vld [vmem:[%s466 + $0x1af] sm:$0xff]
      %v623 = vld [vmem:[%s466 + $0x1c7] sm:$0xff]
      %v624 = vld [vmem:[%s466 + $0x1cf] sm:$0xff]
      %v625 = vld [vmem:[%s466 + $0x1e7] sm:$0xff]
      %v626 = vld [vmem:[%s466 + $0x1ef] sm:$0xff]
      %v627 = vld [vmem:[%s466 + $0x8] sm:$0xff]
      %v628 = vld [vmem:[%s466 + $0x10] sm:$0xff]
      %v629 = vld [vmem:[%s466 + $0x28] sm:$0xff]
      %v630 = vld [vmem:[%s466 + $0x30] sm:$0xff]
      %v631 = vld [vmem:[%s466 + $0x48] sm:$0xff]
      %v632 = vld [vmem:[%s466 + $0x50] sm:$0xff]
      %v633 = vld [vmem:[%s466 + $0x68] sm:$0xff]
      %v634 = vld [vmem:[%s466 + $0x70] sm:$0xff]
      %v635 = vld [vmem:[%s466 + $0x88] sm:$0xff]
      %v636 = vld [vmem:[%s466 + $0x90] sm:$0xff]
      %v637 = vld [vmem:[%s466 + $0xa8] sm:$0xff]
      %v638 = vld [vmem:[%s466 + $0xb0] sm:$0xff]
      %v639 = vld [vmem:[%s466 + $0xc8] sm:$0xff]
      %v640 = vld [vmem:[%s466 + $0xd0] sm:$0xff]
      %v641 = vld [vmem:[%s466 + $0xe8] sm:$0xff]
      %v642 = vld [vmem:[%s466 + $0xf0] sm:$0xff]
      %v643 = vld [vmem:[%s466 + $0x108] sm:$0xff]
      %v644 = vld [vmem:[%s466 + $0x110] sm:$0xff]
      %v645 = vld [vmem:[%s466 + $0x128] sm:$0xff]
      %v646 = vld [vmem:[%s466 + $0x130] sm:$0xff]
      %v647 = vld [vmem:[%s466 + $0x148] sm:$0xff]
      %v648 = vld [vmem:[%s466 + $0x150] sm:$0xff]
      %v649 = vld [vmem:[%s466 + $0x168] sm:$0xff]
      %v650 = vld [vmem:[%s466 + $0x170] sm:$0xff]
      %v651 = vld [vmem:[%s466 + $0x188] sm:$0xff]
      %v652 = vld [vmem:[%s466 + $0x190] sm:$0xff]
      %v653 = vld [vmem:[%s466 + $0x1a8] sm:$0xff]
      %v654 = vld [vmem:[%s466 + $0x1b0] sm:$0xff]
      %v655 = vld [vmem:[%s466 + $0x1c8] sm:$0xff]
      %v656 = vld [vmem:[%s466 + $0x1d0] sm:$0xff]
      %v657 = vld [vmem:[%s466 + $0x1e8] sm:$0xff]
      %v658 = vld [vmem:[%s466 + $0x1f0] sm:$0xff]
      %v659 = vld [vmem:[%s466 + $0x9] sm:$0xff]
      %v660 = vld [vmem:[%s466 + $0x11] sm:$0xff]
      %v661 = vld [vmem:[%s466 + $0x29] sm:$0xff]
      %v662 = vld [vmem:[%s466 + $0x31] sm:$0xff]
      %v663 = vld [vmem:[%s466 + $0x49] sm:$0xff]
      %v664 = vld [vmem:[%s466 + $0x51] sm:$0xff]
      %v665 = vld [vmem:[%s466 + $0x69] sm:$0xff]
      %v666 = vld [vmem:[%s466 + $0x71] sm:$0xff]
      %v667 = vld [vmem:[%s466 + $0x89] sm:$0xff]
      %v668 = vld [vmem:[%s466 + $0x91] sm:$0xff]
      %v669 = vld [vmem:[%s466 + $0xa9] sm:$0xff]
      %v670 = vld [vmem:[%s466 + $0xb1] sm:$0xff]
      %v671 = vld [vmem:[%s466 + $0xc9] sm:$0xff]
      %v672 = vld [vmem:[%s466 + $0xd1] sm:$0xff]
      %v673 = vld [vmem:[%s466 + $0xe9] sm:$0xff]
      %v674 = vld [vmem:[%s466 + $0xf1] sm:$0xff]
      %v675 = vld [vmem:[%s466 + $0x109] sm:$0xff]
      %v676 = vld [vmem:[%s466 + $0x111] sm:$0xff]
      %v677 = vld [vmem:[%s466 + $0x129] sm:$0xff]
      %v678 = vld [vmem:[%s466 + $0x131] sm:$0xff]
      %v679 = vld [vmem:[%s466 + $0x149] sm:$0xff]
      %v680 = vld [vmem:[%s466 + $0x151] sm:$0xff]
      %v681 = vld [vmem:[%s466 + $0x169] sm:$0xff]
      %v682 = vld [vmem:[%s466 + $0x171] sm:$0xff]
      %v683 = vld [vmem:[%s466 + $0x189] sm:$0xff]
      %v684 = vld [vmem:[%s466 + $0x191] sm:$0xff]
      %v685 = vld [vmem:[%s466 + $0x1a9] sm:$0xff]
      %v686 = vld [vmem:[%s466 + $0x1b1] sm:$0xff]
      %v687 = vld [vmem:[%s466 + $0x1c9] sm:$0xff]
      %v688 = vld [vmem:[%s466 + $0x1d1] sm:$0xff]
      %v689 = vld [vmem:[%s466 + $0x1e9] sm:$0xff]
      %v690 = vld [vmem:[%s466 + $0x1f1] sm:$0xff]
      %s691 = scalar_lea.vmem [#allocation2], 64
      %v692 = vld [vmem:[%s691 + $0x7] sm:$0xff]
      %v693 = vld [vmem:[%s691 + $0xf] sm:$0xff]
      %v694 = vld [vmem:[%s691 + $0x27] sm:$0xff]
      %v695 = vld [vmem:[%s691 + $0x2f] sm:$0xff]
      %v696 = vld [vmem:[%s691 + $0x47] sm:$0xff]
      %v697 = vld [vmem:[%s691 + $0x4f] sm:$0xff]
      %v698 = vld [vmem:[%s691 + $0x67] sm:$0xff]
      %v699 = vld [vmem:[%s691 + $0x6f] sm:$0xff]
      %v700 = vld [vmem:[%s691 + $0x87] sm:$0xff]
      %v701 = vld [vmem:[%s691 + $0x8f] sm:$0xff]
      %v702 = vld [vmem:[%s691 + $0xa7] sm:$0xff]
      %v703 = vld [vmem:[%s691 + $0xaf] sm:$0xff]
      %v704 = vld [vmem:[%s691 + $0xc7] sm:$0xff]
      %v705 = vld [vmem:[%s691 + $0xcf] sm:$0xff]
      %v706 = vld [vmem:[%s691 + $0xe7] sm:$0xff]
      %v707 = vld [vmem:[%s691 + $0xef] sm:$0xff]
      %v708 = vld [vmem:[%s691 + $0x107] sm:$0xff]
      %v709 = vld [vmem:[%s691 + $0x10f] sm:$0xff]
      %v710 = vld [vmem:[%s691 + $0x127] sm:$0xff]
      %v711 = vld [vmem:[%s691 + $0x12f] sm:$0xff]
      %v712 = vld [vmem:[%s691 + $0x147] sm:$0xff]
      %v713 = vld [vmem:[%s691 + $0x14f] sm:$0xff]
      %v714 = vld [vmem:[%s691 + $0x167] sm:$0xff]
      %v715 = vld [vmem:[%s691 + $0x16f] sm:$0xff]
      %v716 = vld [vmem:[%s691 + $0x187] sm:$0xff]
      %v717 = vld [vmem:[%s691 + $0x18f] sm:$0xff]
      %v718 = vld [vmem:[%s691 + $0x1a7] sm:$0xff]
      %v719 = vld [vmem:[%s691 + $0x1af] sm:$0xff]
      %v720 = vld [vmem:[%s691 + $0x1c7] sm:$0xff]
      %v721 = vld [vmem:[%s691 + $0x1cf] sm:$0xff]
      %v722 = vld [vmem:[%s691 + $0x1e7] sm:$0xff]
      %v723 = vld [vmem:[%s691 + $0x1ef] sm:$0xff]
      %v724 = vld [vmem:[%s691 + $0x8] sm:$0xff]
      %v725 = vld [vmem:[%s691 + $0x10] sm:$0xff]
      %v726 = vld [vmem:[%s691 + $0x28] sm:$0xff]
      %v727 = vld [vmem:[%s691 + $0x30] sm:$0xff]
      %v728 = vld [vmem:[%s691 + $0x48] sm:$0xff]
      %v729 = vld [vmem:[%s691 + $0x50] sm:$0xff]
      %v730 = vld [vmem:[%s691 + $0x68] sm:$0xff]
      %v731 = vld [vmem:[%s691 + $0x70] sm:$0xff]
      %v732 = vld [vmem:[%s691 + $0x88] sm:$0xff]
      %v733 = vld [vmem:[%s691 + $0x90] sm:$0xff]
      %v734 = vld [vmem:[%s691 + $0xa8] sm:$0xff]
      %v735 = vld [vmem:[%s691 + $0xb0] sm:$0xff]
      %v736 = vld [vmem:[%s691 + $0xc8] sm:$0xff]
      %v737 = vld [vmem:[%s691 + $0xd0] sm:$0xff]
      %v738 = vld [vmem:[%s691 + $0xe8] sm:$0xff]
      %v739 = vld [vmem:[%s691 + $0xf0] sm:$0xff]
      %v740 = vld [vmem:[%s691 + $0x108] sm:$0xff]
      %v741 = vld [vmem:[%s691 + $0x110] sm:$0xff]
      %v742 = vld [vmem:[%s691 + $0x128] sm:$0xff]
      %v743 = vld [vmem:[%s691 + $0x130] sm:$0xff]
      %v744 = vld [vmem:[%s691 + $0x148] sm:$0xff]
      %v745 = vld [vmem:[%s691 + $0x150] sm:$0xff]
      %v746 = vld [vmem:[%s691 + $0x168] sm:$0xff]
      %v747 = vld [vmem:[%s691 + $0x170] sm:$0xff]
      %v748 = vld [vmem:[%s691 + $0x188] sm:$0xff]
      %v749 = vld [vmem:[%s691 + $0x190] sm:$0xff]
      %v750 = vld [vmem:[%s691 + $0x1a8] sm:$0xff]
      %v751 = vld [vmem:[%s691 + $0x1b0] sm:$0xff]
      %v752 = vld [vmem:[%s691 + $0x1c8] sm:$0xff]
      %v753 = vld [vmem:[%s691 + $0x1d0] sm:$0xff]
      %v754 = vld [vmem:[%s691 + $0x1e8] sm:$0xff]
      %v755 = vld [vmem:[%s691 + $0x1f0] sm:$0xff]
      %v756 = vld [vmem:[%s691 + $0x9] sm:$0xff]
      %v757 = vld [vmem:[%s691 + $0x11] sm:$0xff]
      %v758 = vld [vmem:[%s691 + $0x29] sm:$0xff]
      %v759 = vld [vmem:[%s691 + $0x31] sm:$0xff]
      %v760 = vld [vmem:[%s691 + $0x49] sm:$0xff]
      %v761 = vld [vmem:[%s691 + $0x51] sm:$0xff]
      %v762 = vld [vmem:[%s691 + $0x69] sm:$0xff]
      %v763 = vld [vmem:[%s691 + $0x71] sm:$0xff]
      %v764 = vld [vmem:[%s691 + $0x89] sm:$0xff]
      %v765 = vld [vmem:[%s691 + $0x91] sm:$0xff]
      %v766 = vld [vmem:[%s691 + $0xa9] sm:$0xff]
      %v767 = vld [vmem:[%s691 + $0xb1] sm:$0xff]
      %v768 = vld [vmem:[%s691 + $0xc9] sm:$0xff]
      %v769 = vld [vmem:[%s691 + $0xd1] sm:$0xff]
      %v770 = vld [vmem:[%s691 + $0xe9] sm:$0xff]
      %v771 = vld [vmem:[%s691 + $0xf1] sm:$0xff]
      %v772 = vld [vmem:[%s691 + $0x109] sm:$0xff]
      %v773 = vld [vmem:[%s691 + $0x111] sm:$0xff]
      %v774 = vld [vmem:[%s691 + $0x129] sm:$0xff]
      %v775 = vld [vmem:[%s691 + $0x131] sm:$0xff]
      %v776 = vld [vmem:[%s691 + $0x149] sm:$0xff]
      %v777 = vld [vmem:[%s691 + $0x151] sm:$0xff]
      %v778 = vld [vmem:[%s691 + $0x169] sm:$0xff]
      %v779 = vld [vmem:[%s691 + $0x171] sm:$0xff]
      %v780 = vld [vmem:[%s691 + $0x189] sm:$0xff]
      %v781 = vld [vmem:[%s691 + $0x191] sm:$0xff]
      %v782 = vld [vmem:[%s691 + $0x1a9] sm:$0xff]
      %v783 = vld [vmem:[%s691 + $0x1b1] sm:$0xff]
      %v784 = vld [vmem:[%s691 + $0x1c9] sm:$0xff]
      %v785 = vld [vmem:[%s691 + $0x1d1] sm:$0xff]
      %v786 = vld [vmem:[%s691 + $0x1e9] sm:$0xff]
      %v787 = vld [vmem:[%s691 + $0x1f1] sm:$0xff]
      %820 = vrot.lane.b32.xlu0 %v531, 4
      %v821 = vpop.permute.xlu0 %820
      %822 = vrot.lane.b32.xlu0 %v532, 4
      %v823 = vpop.permute.xlu0 %822
      %824 = vrot.lane.b32.xlu0 %v533, 4
      %v825 = vpop.permute.xlu0 %824
      %826 = vrot.lane.b32.xlu0 %v534, 4
      %v827 = vpop.permute.xlu0 %826
      %828 = vrot.lane.b32.xlu0 %v535, 4
      %v829 = vpop.permute.xlu0 %828
      %830 = vrot.lane.b32.xlu0 %v536, 4
      %v831 = vpop.permute.xlu0 %830
      %832 = vrot.lane.b32.xlu0 %v537, 4
      %v833 = vpop.permute.xlu0 %832
      %834 = vrot.lane.b32.xlu0 %v538, 4
      %v835 = vpop.permute.xlu0 %834
      %836 = vrot.lane.b32.xlu0 %v539, 4
      %v837 = vpop.permute.xlu0 %836
      %838 = vrot.lane.b32.xlu0 %v540, 4
      %v839 = vpop.permute.xlu0 %838
      %840 = vrot.lane.b32.xlu0 %v541, 4
      %v841 = vpop.permute.xlu0 %840
      %842 = vrot.lane.b32.xlu0 %v542, 4
      %v843 = vpop.permute.xlu0 %842
      %844 = vrot.lane.b32.xlu0 %v543, 4
      %v845 = vpop.permute.xlu0 %844
      %846 = vrot.lane.b32.xlu0 %v544, 4
      %v847 = vpop.permute.xlu0 %846
      %848 = vrot.lane.b32.xlu0 %v545, 4
      %v849 = vpop.permute.xlu0 %848
      %850 = vrot.lane.b32.xlu0 %v546, 4
      %v851 = vpop.permute.xlu0 %850
      %852 = vrot.lane.b32.xlu0 %v547, 4
      %v853 = vpop.permute.xlu0 %852
      %854 = vrot.lane.b32.xlu0 %v548, 4
      %v855 = vpop.permute.xlu0 %854
      %856 = vrot.lane.b32.xlu0 %v549, 4
      %v857 = vpop.permute.xlu0 %856
      %858 = vrot.lane.b32.xlu0 %v550, 4
      %v859 = vpop.permute.xlu0 %858
      %860 = vrot.lane.b32.xlu0 %v551, 4
      %v861 = vpop.permute.xlu0 %860
      %862 = vrot.lane.b32.xlu0 %v552, 4
      %v863 = vpop.permute.xlu0 %862
      %864 = vrot.lane.b32.xlu0 %v553, 4
      %v865 = vpop.permute.xlu0 %864
      %866 = vrot.lane.b32.xlu0 %v554, 4
      %v867 = vpop.permute.xlu0 %866
      %868 = vrot.lane.b32.xlu0 %v555, 4
      %v869 = vpop.permute.xlu0 %868
      %870 = vrot.lane.b32.xlu0 %v556, 4
      %v871 = vpop.permute.xlu0 %870
      %872 = vrot.lane.b32.xlu0 %v557, 4
      %v873 = vpop.permute.xlu0 %872
      %874 = vrot.lane.b32.xlu0 %v558, 4
      %v875 = vpop.permute.xlu0 %874
      %876 = vrot.lane.b32.xlu0 %v559, 4
      %v877 = vpop.permute.xlu0 %876
      %878 = vrot.lane.b32.xlu0 %v560, 4
      %v879 = vpop.permute.xlu0 %878
      %880 = vrot.lane.b32.xlu0 %v561, 4
      %v881 = vpop.permute.xlu0 %880
      %882 = vrot.lane.b32.xlu0 %v562, 4
      %v883 = vpop.permute.xlu0 %882
      %948 = vrot.lane.b32.xlu0 %v563, 8
      %v949 = vpop.permute.xlu0 %948
      %950 = vrot.lane.b32.xlu0 %v564, 8
      %v951 = vpop.permute.xlu0 %950
      %952 = vrot.lane.b32.xlu0 %v565, 8
      %v953 = vpop.permute.xlu0 %952
      %954 = vrot.lane.b32.xlu0 %v566, 8
      %v955 = vpop.permute.xlu0 %954
      %956 = vrot.lane.b32.xlu0 %v567, 8
      %v957 = vpop.permute.xlu0 %956
      %958 = vrot.lane.b32.xlu0 %v568, 8
      %v959 = vpop.permute.xlu0 %958
      %960 = vrot.lane.b32.xlu0 %v569, 8
      %v961 = vpop.permute.xlu0 %960
      %962 = vrot.lane.b32.xlu0 %v570, 8
      %v963 = vpop.permute.xlu0 %962
      %964 = vrot.lane.b32.xlu0 %v571, 8
      %v965 = vpop.permute.xlu0 %964
      %966 = vrot.lane.b32.xlu0 %v572, 8
      %v967 = vpop.permute.xlu0 %966
      %968 = vrot.lane.b32.xlu0 %v573, 8
      %v969 = vpop.permute.xlu0 %968
      %970 = vrot.lane.b32.xlu0 %v574, 8
      %v971 = vpop.permute.xlu0 %970
      %972 = vrot.lane.b32.xlu0 %v575, 8
      %v973 = vpop.permute.xlu0 %972
      %974 = vrot.lane.b32.xlu0 %v576, 8
      %v975 = vpop.permute.xlu0 %974
      %976 = vrot.lane.b32.xlu0 %v577, 8
      %v977 = vpop.permute.xlu0 %976
      %978 = vrot.lane.b32.xlu0 %v578, 8
      %v979 = vpop.permute.xlu0 %978
      %980 = vrot.lane.b32.xlu0 %v579, 8
      %v981 = vpop.permute.xlu0 %980
      %982 = vrot.lane.b32.xlu0 %v580, 8
      %v983 = vpop.permute.xlu0 %982
      %984 = vrot.lane.b32.xlu0 %v581, 8
      %v985 = vpop.permute.xlu0 %984
      %986 = vrot.lane.b32.xlu0 %v582, 8
      %v987 = vpop.permute.xlu0 %986
      %988 = vrot.lane.b32.xlu0 %v583, 8
      %v989 = vpop.permute.xlu0 %988
      %990 = vrot.lane.b32.xlu0 %v584, 8
      %v991 = vpop.permute.xlu0 %990
      %992 = vrot.lane.b32.xlu0 %v585, 8
      %v993 = vpop.permute.xlu0 %992
      %994 = vrot.lane.b32.xlu0 %v586, 8
      %v995 = vpop.permute.xlu0 %994
      %996 = vrot.lane.b32.xlu0 %v587, 8
      %v997 = vpop.permute.xlu0 %996
      %998 = vrot.lane.b32.xlu0 %v588, 8
      %v999 = vpop.permute.xlu0 %998
      %1000 = vrot.lane.b32.xlu0 %v589, 8
      %v1001 = vpop.permute.xlu0 %1000
      %1002 = vrot.lane.b32.xlu0 %v590, 8
      %v1003 = vpop.permute.xlu0 %1002
      %1004 = vrot.lane.b32.xlu0 %v591, 8
      %v1005 = vpop.permute.xlu0 %1004
      %1006 = vrot.lane.b32.xlu0 %v592, 8
      %v1007 = vpop.permute.xlu0 %1006
      %1008 = vrot.lane.b32.xlu0 %v593, 8
      %v1009 = vpop.permute.xlu0 %1008
      %1010 = vrot.lane.b32.xlu0 %v594, 8
      %v1011 = vpop.permute.xlu0 %1010
      %1076 = vrot.lane.b32.xlu0 %v595, 12
      %v1077 = vpop.permute.xlu0 %1076
      %1078 = vrot.lane.b32.xlu0 %v596, 12
      %v1079 = vpop.permute.xlu0 %1078
      %1080 = vrot.lane.b32.xlu0 %v597, 12
      %v1081 = vpop.permute.xlu0 %1080
      %1082 = vrot.lane.b32.xlu0 %v598, 12
      %v1083 = vpop.permute.xlu0 %1082
      %1084 = vrot.lane.b32.xlu0 %v599, 12
      %v1085 = vpop.permute.xlu0 %1084
      %1086 = vrot.lane.b32.xlu0 %v600, 12
      %v1087 = vpop.permute.xlu0 %1086
      %1088 = vrot.lane.b32.xlu0 %v601, 12
      %v1089 = vpop.permute.xlu0 %1088
      %1090 = vrot.lane.b32.xlu0 %v602, 12
      %v1091 = vpop.permute.xlu0 %1090
      %1092 = vrot.lane.b32.xlu0 %v603, 12
      %v1093 = vpop.permute.xlu0 %1092
      %1094 = vrot.lane.b32.xlu0 %v604, 12
      %v1095 = vpop.permute.xlu0 %1094
      %1096 = vrot.lane.b32.xlu0 %v605, 12
      %v1097 = vpop.permute.xlu0 %1096
      %1098 = vrot.lane.b32.xlu0 %v606, 12
      %v1099 = vpop.permute.xlu0 %1098
      %1100 = vrot.lane.b32.xlu0 %v607, 12
      %v1101 = vpop.permute.xlu0 %1100
      %1102 = vrot.lane.b32.xlu0 %v608, 12
      %v1103 = vpop.permute.xlu0 %1102
      %1104 = vrot.lane.b32.xlu0 %v609, 12
      %v1105 = vpop.permute.xlu0 %1104
      %1106 = vrot.lane.b32.xlu0 %v610, 12
      %v1107 = vpop.permute.xlu0 %1106
      %1108 = vrot.lane.b32.xlu0 %v611, 12
      %v1109 = vpop.permute.xlu0 %1108
      %1110 = vrot.lane.b32.xlu0 %v612, 12
      %v1111 = vpop.permute.xlu0 %1110
      %1112 = vrot.lane.b32.xlu0 %v613, 12
      %v1113 = vpop.permute.xlu0 %1112
      %1114 = vrot.lane.b32.xlu0 %v614, 12
      %v1115 = vpop.permute.xlu0 %1114
      %1116 = vrot.lane.b32.xlu0 %v615, 12
      %v1117 = vpop.permute.xlu0 %1116
      %1118 = vrot.lane.b32.xlu0 %v616, 12
      %v1119 = vpop.permute.xlu0 %1118
      %1120 = vrot.lane.b32.xlu0 %v617, 12
      %v1121 = vpop.permute.xlu0 %1120
      %1122 = vrot.lane.b32.xlu0 %v618, 12
      %v1123 = vpop.permute.xlu0 %1122
      %1124 = vrot.lane.b32.xlu0 %v619, 12
      %v1125 = vpop.permute.xlu0 %1124
      %1126 = vrot.lane.b32.xlu0 %v620, 12
      %v1127 = vpop.permute.xlu0 %1126
      %1128 = vrot.lane.b32.xlu0 %v621, 12
      %v1129 = vpop.permute.xlu0 %1128
      %1130 = vrot.lane.b32.xlu0 %v622, 12
      %v1131 = vpop.permute.xlu0 %1130
      %1132 = vrot.lane.b32.xlu0 %v623, 12
      %v1133 = vpop.permute.xlu0 %1132
      %1134 = vrot.lane.b32.xlu0 %v624, 12
      %v1135 = vpop.permute.xlu0 %1134
      %1136 = vrot.lane.b32.xlu0 %v625, 12
      %v1137 = vpop.permute.xlu0 %1136
      %1138 = vrot.lane.b32.xlu0 %v626, 12
      %v1139 = vpop.permute.xlu0 %1138
      %1204 = vrot.lane.b32.xlu0 %v627, 16
      %v1205 = vpop.permute.xlu0 %1204
      %1206 = vrot.lane.b32.xlu0 %v628, 16
      %v1207 = vpop.permute.xlu0 %1206
      %1208 = vrot.lane.b32.xlu0 %v629, 16
      %v1209 = vpop.permute.xlu0 %1208
      %1210 = vrot.lane.b32.xlu0 %v630, 16
      %v1211 = vpop.permute.xlu0 %1210
      %1212 = vrot.lane.b32.xlu0 %v631, 16
      %v1213 = vpop.permute.xlu0 %1212
      %1214 = vrot.lane.b32.xlu0 %v632, 16
      %v1215 = vpop.permute.xlu0 %1214
      %1216 = vrot.lane.b32.xlu0 %v633, 16
      %v1217 = vpop.permute.xlu0 %1216
      %1218 = vrot.lane.b32.xlu0 %v634, 16
      %v1219 = vpop.permute.xlu0 %1218
      %1220 = vrot.lane.b32.xlu0 %v635, 16
      %v1221 = vpop.permute.xlu0 %1220
      %1222 = vrot.lane.b32.xlu0 %v636, 16
      %v1223 = vpop.permute.xlu0 %1222
      %1224 = vrot.lane.b32.xlu0 %v637, 16
      %v1225 = vpop.permute.xlu0 %1224
      %1226 = vrot.lane.b32.xlu0 %v638, 16
      %v1227 = vpop.permute.xlu0 %1226
      %1228 = vrot.lane.b32.xlu0 %v639, 16
      %v1229 = vpop.permute.xlu0 %1228
      %1230 = vrot.lane.b32.xlu0 %v640, 16
      %v1231 = vpop.permute.xlu0 %1230
      %1232 = vrot.lane.b32.xlu0 %v641, 16
      %v1233 = vpop.permute.xlu0 %1232
      %1234 = vrot.lane.b32.xlu0 %v642, 16
      %v1235 = vpop.permute.xlu0 %1234
      %1236 = vrot.lane.b32.xlu0 %v643, 16
      %v1237 = vpop.permute.xlu0 %1236
      %1238 = vrot.lane.b32.xlu0 %v644, 16
      %v1239 = vpop.permute.xlu0 %1238
      %1240 = vrot.lane.b32.xlu0 %v645, 16
      %v1241 = vpop.permute.xlu0 %1240
      %1242 = vrot.lane.b32.xlu0 %v646, 16
      %v1243 = vpop.permute.xlu0 %1242
      %1244 = vrot.lane.b32.xlu0 %v647, 16
      %v1245 = vpop.permute.xlu0 %1244
      %1246 = vrot.lane.b32.xlu0 %v648, 16
      %v1247 = vpop.permute.xlu0 %1246
      %1248 = vrot.lane.b32.xlu0 %v649, 16
      %v1249 = vpop.permute.xlu0 %1248
      %1250 = vrot.lane.b32.xlu0 %v650, 16
      %v1251 = vpop.permute.xlu0 %1250
      %1252 = vrot.lane.b32.xlu0 %v651, 16
      %v1253 = vpop.permute.xlu0 %1252
      %1254 = vrot.lane.b32.xlu0 %v652, 16
      %v1255 = vpop.permute.xlu0 %1254
      %1256 = vrot.lane.b32.xlu0 %v653, 16
      %v1257 = vpop.permute.xlu0 %1256
      %1258 = vrot.lane.b32.xlu0 %v654, 16
      %v1259 = vpop.permute.xlu0 %1258
      %1260 = vrot.lane.b32.xlu0 %v655, 16
      %v1261 = vpop.permute.xlu0 %1260
      %1262 = vrot.lane.b32.xlu0 %v656, 16
      %v1263 = vpop.permute.xlu0 %1262
      %1264 = vrot.lane.b32.xlu0 %v657, 16
      %v1265 = vpop.permute.xlu0 %1264
      %1266 = vrot.lane.b32.xlu0 %v658, 16
      %v1267 = vpop.permute.xlu0 %1266
      %1332 = vrot.lane.b32.xlu0 %v659, 20
      %v1333 = vpop.permute.xlu0 %1332
      %1334 = vrot.lane.b32.xlu0 %v660, 20
      %v1335 = vpop.permute.xlu0 %1334
      %1336 = vrot.lane.b32.xlu0 %v661, 20
      %v1337 = vpop.permute.xlu0 %1336
      %1338 = vrot.lane.b32.xlu0 %v662, 20
      %v1339 = vpop.permute.xlu0 %1338
      %1340 = vrot.lane.b32.xlu0 %v663, 20
      %v1341 = vpop.permute.xlu0 %1340
      %1342 = vrot.lane.b32.xlu0 %v664, 20
      %v1343 = vpop.permute.xlu0 %1342
      %1344 = vrot.lane.b32.xlu0 %v665, 20
      %v1345 = vpop.permute.xlu0 %1344
      %1346 = vrot.lane.b32.xlu0 %v666, 20
      %v1347 = vpop.permute.xlu0 %1346
      %1348 = vrot.lane.b32.xlu0 %v667, 20
      %v1349 = vpop.permute.xlu0 %1348
      %1350 = vrot.lane.b32.xlu0 %v668, 20
      %v1351 = vpop.permute.xlu0 %1350
      %1352 = vrot.lane.b32.xlu0 %v669, 20
      %v1353 = vpop.permute.xlu0 %1352
      %1354 = vrot.lane.b32.xlu0 %v670, 20
      %v1355 = vpop.permute.xlu0 %1354
      %1356 = vrot.lane.b32.xlu0 %v671, 20
      %v1357 = vpop.permute.xlu0 %1356
      %1358 = vrot.lane.b32.xlu0 %v672, 20
      %v1359 = vpop.permute.xlu0 %1358
      %1360 = vrot.lane.b32.xlu0 %v673, 20
      %v1361 = vpop.permute.xlu0 %1360
      %1362 = vrot.lane.b32.xlu0 %v674, 20
      %v1363 = vpop.permute.xlu0 %1362
      %1364 = vrot.lane.b32.xlu0 %v675, 20
      %v1365 = vpop.permute.xlu0 %1364
      %1366 = vrot.lane.b32.xlu0 %v676, 20
      %v1367 = vpop.permute.xlu0 %1366
      %1368 = vrot.lane.b32.xlu0 %v677, 20
      %v1369 = vpop.permute.xlu0 %1368
      %1370 = vrot.lane.b32.xlu0 %v678, 20
      %v1371 = vpop.permute.xlu0 %1370
      %1372 = vrot.lane.b32.xlu0 %v679, 20
      %v1373 = vpop.permute.xlu0 %1372
      %1374 = vrot.lane.b32.xlu0 %v680, 20
      %v1375 = vpop.permute.xlu0 %1374
      %1376 = vrot.lane.b32.xlu0 %v681, 20
      %v1377 = vpop.permute.xlu0 %1376
      %1378 = vrot.lane.b32.xlu0 %v682, 20
      %v1379 = vpop.permute.xlu0 %1378
      %1380 = vrot.lane.b32.xlu0 %v683, 20
      %v1381 = vpop.permute.xlu0 %1380
      %1382 = vrot.lane.b32.xlu0 %v684, 20
      %v1383 = vpop.permute.xlu0 %1382
      %1384 = vrot.lane.b32.xlu0 %v685, 20
      %v1385 = vpop.permute.xlu0 %1384
      %1386 = vrot.lane.b32.xlu0 %v686, 20
      %v1387 = vpop.permute.xlu0 %1386
      %1388 = vrot.lane.b32.xlu0 %v687, 20
      %v1389 = vpop.permute.xlu0 %1388
      %1390 = vrot.lane.b32.xlu0 %v688, 20
      %v1391 = vpop.permute.xlu0 %1390
      %1392 = vrot.lane.b32.xlu0 %v689, 20
      %v1393 = vpop.permute.xlu0 %1392
      %1394 = vrot.lane.b32.xlu0 %v690, 20
      %v1395 = vpop.permute.xlu0 %1394
      %1460 = vrot.lane.b32.xlu0 %v692, 24
      %v1461 = vpop.permute.xlu0 %1460
      %1462 = vrot.lane.b32.xlu0 %v693, 24
      %v1463 = vpop.permute.xlu0 %1462
      %1464 = vrot.lane.b32.xlu0 %v694, 24
      %v1465 = vpop.permute.xlu0 %1464
      %1466 = vrot.lane.b32.xlu0 %v695, 24
      %v1467 = vpop.permute.xlu0 %1466
      %1468 = vrot.lane.b32.xlu0 %v696, 24
      %v1469 = vpop.permute.xlu0 %1468
      %1470 = vrot.lane.b32.xlu0 %v697, 24
      %v1471 = vpop.permute.xlu0 %1470
      %1472 = vrot.lane.b32.xlu0 %v698, 24
      %v1473 = vpop.permute.xlu0 %1472
      %1474 = vrot.lane.b32.xlu0 %v699, 24
      %v1475 = vpop.permute.xlu0 %1474
      %1476 = vrot.lane.b32.xlu0 %v700, 24
      %v1477 = vpop.permute.xlu0 %1476
      %1478 = vrot.lane.b32.xlu0 %v701, 24
      %v1479 = vpop.permute.xlu0 %1478
      %1480 = vrot.lane.b32.xlu0 %v702, 24
      %v1481 = vpop.permute.xlu0 %1480
      %1482 = vrot.lane.b32.xlu0 %v703, 24
      %v1483 = vpop.permute.xlu0 %1482
      %1484 = vrot.lane.b32.xlu0 %v704, 24
      %v1485 = vpop.permute.xlu0 %1484
      %1486 = vrot.lane.b32.xlu0 %v705, 24
      %v1487 = vpop.permute.xlu0 %1486
      %1488 = vrot.lane.b32.xlu0 %v706, 24
      %v1489 = vpop.permute.xlu0 %1488
      %1490 = vrot.lane.b32.xlu0 %v707, 24
      %v1491 = vpop.permute.xlu0 %1490
      %1492 = vrot.lane.b32.xlu0 %v708, 24
      %v1493 = vpop.permute.xlu0 %1492
      %1494 = vrot.lane.b32.xlu0 %v709, 24
      %v1495 = vpop.permute.xlu0 %1494
      %1496 = vrot.lane.b32.xlu0 %v710, 24
      %v1497 = vpop.permute.xlu0 %1496
      %1498 = vrot.lane.b32.xlu0 %v711, 24
      %v1499 = vpop.permute.xlu0 %1498
      %1500 = vrot.lane.b32.xlu0 %v712, 24
      %v1501 = vpop.permute.xlu0 %1500
      %1502 = vrot.lane.b32.xlu0 %v713, 24
      %v1503 = vpop.permute.xlu0 %1502
      %1504 = vrot.lane.b32.xlu0 %v714, 24
      %v1505 = vpop.permute.xlu0 %1504
      %1506 = vrot.lane.b32.xlu0 %v715, 24
      %v1507 = vpop.permute.xlu0 %1506
      %1508 = vrot.lane.b32.xlu0 %v716, 24
      %v1509 = vpop.permute.xlu0 %1508
      %1510 = vrot.lane.b32.xlu0 %v717, 24
      %v1511 = vpop.permute.xlu0 %1510
      %1512 = vrot.lane.b32.xlu0 %v718, 24
      %v1513 = vpop.permute.xlu0 %1512
      %1514 = vrot.lane.b32.xlu0 %v719, 24
      %v1515 = vpop.permute.xlu0 %1514
      %1516 = vrot.lane.b32.xlu0 %v720, 24
      %v1517 = vpop.permute.xlu0 %1516
      %1518 = vrot.lane.b32.xlu0 %v721, 24
      %v1519 = vpop.permute.xlu0 %1518
      %1520 = vrot.lane.b32.xlu0 %v722, 24
      %v1521 = vpop.permute.xlu0 %1520
      %1522 = vrot.lane.b32.xlu0 %v723, 24
      %v1523 = vpop.permute.xlu0 %1522
      %1588 = vrot.lane.b32.xlu0 %v724, 28
      %v1589 = vpop.permute.xlu0 %1588
      %1590 = vrot.lane.b32.xlu0 %v725, 28
      %v1591 = vpop.permute.xlu0 %1590
      %1592 = vrot.lane.b32.xlu0 %v726, 28
      %v1593 = vpop.permute.xlu0 %1592
      %1594 = vrot.lane.b32.xlu0 %v727, 28
      %v1595 = vpop.permute.xlu0 %1594
      %1596 = vrot.lane.b32.xlu0 %v728, 28
      %v1597 = vpop.permute.xlu0 %1596
      %1598 = vrot.lane.b32.xlu0 %v729, 28
      %v1599 = vpop.permute.xlu0 %1598
      %1600 = vrot.lane.b32.xlu0 %v730, 28
      %v1601 = vpop.permute.xlu0 %1600
      %1602 = vrot.lane.b32.xlu0 %v731, 28
      %v1603 = vpop.permute.xlu0 %1602
      %1604 = vrot.lane.b32.xlu0 %v732, 28
      %v1605 = vpop.permute.xlu0 %1604
      %1606 = vrot.lane.b32.xlu0 %v733, 28
      %v1607 = vpop.permute.xlu0 %1606
      %1608 = vrot.lane.b32.xlu0 %v734, 28
      %v1609 = vpop.permute.xlu0 %1608
      %1610 = vrot.lane.b32.xlu0 %v735, 28
      %v1611 = vpop.permute.xlu0 %1610
      %1612 = vrot.lane.b32.xlu0 %v736, 28
      %v1613 = vpop.permute.xlu0 %1612
      %1614 = vrot.lane.b32.xlu0 %v737, 28
      %v1615 = vpop.permute.xlu0 %1614
      %1616 = vrot.lane.b32.xlu0 %v738, 28
      %v1617 = vpop.permute.xlu0 %1616
      %1618 = vrot.lane.b32.xlu0 %v739, 28
      %v1619 = vpop.permute.xlu0 %1618
      %1620 = vrot.lane.b32.xlu0 %v740, 28
      %v1621 = vpop.permute.xlu0 %1620
      %1622 = vrot.lane.b32.xlu0 %v741, 28
      %v1623 = vpop.permute.xlu0 %1622
      %1624 = vrot.lane.b32.xlu0 %v742, 28
      %v1625 = vpop.permute.xlu0 %1624
      %1626 = vrot.lane.b32.xlu0 %v743, 28
      %v1627 = vpop.permute.xlu0 %1626
      %1628 = vrot.lane.b32.xlu0 %v744, 28
      %v1629 = vpop.permute.xlu0 %1628
      %1630 = vrot.lane.b32.xlu0 %v745, 28
      %v1631 = vpop.permute.xlu0 %1630
      %1632 = vrot.lane.b32.xlu0 %v746, 28
      %v1633 = vpop.permute.xlu0 %1632
      %1634 = vrot.lane.b32.xlu0 %v747, 28
      %v1635 = vpop.permute.xlu0 %1634
      %1636 = vrot.lane.b32.xlu0 %v748, 28
      %v1637 = vpop.permute.xlu0 %1636
      %1638 = vrot.lane.b32.xlu0 %v749, 28
      %v1639 = vpop.permute.xlu0 %1638
      %1640 = vrot.lane.b32.xlu0 %v750, 28
      %v1641 = vpop.permute.xlu0 %1640
      %1642 = vrot.lane.b32.xlu0 %v751, 28
      %v1643 = vpop.permute.xlu0 %1642
      %1644 = vrot.lane.b32.xlu0 %v752, 28
      %v1645 = vpop.permute.xlu0 %1644
      %1646 = vrot.lane.b32.xlu0 %v753, 28
      %v1647 = vpop.permute.xlu0 %1646
      %1648 = vrot.lane.b32.xlu0 %v754, 28
      %v1649 = vpop.permute.xlu0 %1648
      %1650 = vrot.lane.b32.xlu0 %v755, 28
      %v1651 = vpop.permute.xlu0 %1650
      %1716 = vrot.lane.b32.xlu0 %v756, 32
      %v1717 = vpop.permute.xlu0 %1716
      %1718 = vrot.lane.b32.xlu0 %v757, 32
      %v1719 = vpop.permute.xlu0 %1718
      %1720 = vrot.lane.b32.xlu0 %v758, 32
      %v1721 = vpop.permute.xlu0 %1720
      %1722 = vrot.lane.b32.xlu0 %v759, 32
      %v1723 = vpop.permute.xlu0 %1722
      %1724 = vrot.lane.b32.xlu0 %v760, 32
      %v1725 = vpop.permute.xlu0 %1724
      %1726 = vrot.lane.b32.xlu0 %v761, 32
      %v1727 = vpop.permute.xlu0 %1726
      %1728 = vrot.lane.b32.xlu0 %v762, 32
      %v1729 = vpop.permute.xlu0 %1728
      %1730 = vrot.lane.b32.xlu0 %v763, 32
      %v1731 = vpop.permute.xlu0 %1730
      %1732 = vrot.lane.b32.xlu0 %v764, 32
      %v1733 = vpop.permute.xlu0 %1732
      %1734 = vrot.lane.b32.xlu0 %v765, 32
      %v1735 = vpop.permute.xlu0 %1734
      %1736 = vrot.lane.b32.xlu0 %v766, 32
      %v1737 = vpop.permute.xlu0 %1736
      %1738 = vrot.lane.b32.xlu0 %v767, 32
      %v1739 = vpop.permute.xlu0 %1738
      %1740 = vrot.lane.b32.xlu0 %v768, 32
      %v1741 = vpop.permute.xlu0 %1740
      %1742 = vrot.lane.b32.xlu0 %v769, 32
      %v1743 = vpop.permute.xlu0 %1742
      %1744 = vrot.lane.b32.xlu0 %v770, 32
      %v1745 = vpop.permute.xlu0 %1744
      %1746 = vrot.lane.b32.xlu0 %v771, 32
      %v1747 = vpop.permute.xlu0 %1746
      %1748 = vrot.lane.b32.xlu0 %v772, 32
      %v1749 = vpop.permute.xlu0 %1748
      %1750 = vrot.lane.b32.xlu0 %v773, 32
      %v1751 = vpop.permute.xlu0 %1750
      %1752 = vrot.lane.b32.xlu0 %v774, 32
      %v1753 = vpop.permute.xlu0 %1752
      %1754 = vrot.lane.b32.xlu0 %v775, 32
      %v1755 = vpop.permute.xlu0 %1754
      %1756 = vrot.lane.b32.xlu0 %v776, 32
      %v1757 = vpop.permute.xlu0 %1756
      %1758 = vrot.lane.b32.xlu0 %v777, 32
      %v1759 = vpop.permute.xlu0 %1758
      %1760 = vrot.lane.b32.xlu0 %v778, 32
      %v1761 = vpop.permute.xlu0 %1760
      %1762 = vrot.lane.b32.xlu0 %v779, 32
      %v1763 = vpop.permute.xlu0 %1762
      %1764 = vrot.lane.b32.xlu0 %v780, 32
      %v1765 = vpop.permute.xlu0 %1764
      %1766 = vrot.lane.b32.xlu0 %v781, 32
      %v1767 = vpop.permute.xlu0 %1766
      %1768 = vrot.lane.b32.xlu0 %v782, 32
      %v1769 = vpop.permute.xlu0 %1768
      %1770 = vrot.lane.b32.xlu0 %v783, 32
      %v1771 = vpop.permute.xlu0 %1770
      %1772 = vrot.lane.b32.xlu0 %v784, 32
      %v1773 = vpop.permute.xlu0 %1772
      %1774 = vrot.lane.b32.xlu0 %v785, 32
      %v1775 = vpop.permute.xlu0 %1774
      %1776 = vrot.lane.b32.xlu0 %v786, 32
      %v1777 = vpop.permute.xlu0 %1776
      %1778 = vrot.lane.b32.xlu0 %v787, 32
      %v1779 = vpop.permute.xlu0 %1778
      %v1812 = vsel %vm361, %v499, %v821
      %v1813 = vsel %vm361, %v500, %v823
      %v1814 = vsel %vm361, %v501, %v825
      %v1815 = vsel %vm361, %v502, %v827
      %v1816 = vsel %vm361, %v503, %v829
      %v1817 = vsel %vm361, %v504, %v831
      %v1818 = vsel %vm361, %v505, %v833
      %v1819 = vsel %vm361, %v506, %v835
      %v1820 = vsel %vm361, %v507, %v837
      %v1821 = vsel %vm361, %v508, %v839
      %v1822 = vsel %vm361, %v509, %v841
      %v1823 = vsel %vm361, %v510, %v843
      %v1824 = vsel %vm361, %v511, %v845
      %v1825 = vsel %vm361, %v512, %v847
      %v1826 = vsel %vm361, %v513, %v849
      %v1827 = vsel %vm361, %v514, %v851
      %v1828 = vsel %vm361, %v515, %v853
      %v1829 = vsel %vm361, %v516, %v855
      %v1830 = vsel %vm361, %v517, %v857
      %v1831 = vsel %vm361, %v518, %v859
      %v1832 = vsel %vm361, %v519, %v861
      %v1833 = vsel %vm361, %v520, %v863
      %v1834 = vsel %vm361, %v521, %v865
      %v1835 = vsel %vm361, %v522, %v867
      %v1836 = vsel %vm361, %v523, %v869
      %v1837 = vsel %vm361, %v524, %v871
      %v1838 = vsel %vm361, %v525, %v873
      %v1839 = vsel %vm361, %v526, %v875
      %v1840 = vsel %vm361, %v527, %v877
      %v1841 = vsel %vm361, %v528, %v879
      %v1842 = vsel %vm361, %v529, %v881
      %v1843 = vsel %vm361, %v530, %v883
      %vm1844 = vcmask 64512
      %v1845 = vsel %vm1844, %v1812, %v949
      %v1846 = vsel %vm1844, %v1813, %v951
      %v1847 = vsel %vm1844, %v1814, %v953
      %v1848 = vsel %vm1844, %v1815, %v955
      %v1849 = vsel %vm1844, %v1816, %v957
      %v1850 = vsel %vm1844, %v1817, %v959
      %v1851 = vsel %vm1844, %v1818, %v961
      %v1852 = vsel %vm1844, %v1819, %v963
      %v1853 = vsel %vm1844, %v1820, %v965
      %v1854 = vsel %vm1844, %v1821, %v967
      %v1855 = vsel %vm1844, %v1822, %v969
      %v1856 = vsel %vm1844, %v1823, %v971
      %v1857 = vsel %vm1844, %v1824, %v973
      %v1858 = vsel %vm1844, %v1825, %v975
      %v1859 = vsel %vm1844, %v1826, %v977
      %v1860 = vsel %vm1844, %v1827, %v979
      %v1861 = vsel %vm1844, %v1828, %v981
      %v1862 = vsel %vm1844, %v1829, %v983
      %v1863 = vsel %vm1844, %v1830, %v985
      %v1864 = vsel %vm1844, %v1831, %v987
      %v1865 = vsel %vm1844, %v1832, %v989
      %v1866 = vsel %vm1844, %v1833, %v991
      %v1867 = vsel %vm1844, %v1834, %v993
      %v1868 = vsel %vm1844, %v1835, %v995
      %v1869 = vsel %vm1844, %v1836, %v997
      %v1870 = vsel %vm1844, %v1837, %v999
      %v1871 = vsel %vm1844, %v1838, %v1001
      %v1872 = vsel %vm1844, %v1839, %v1003
      %v1873 = vsel %vm1844, %v1840, %v1005
      %v1874 = vsel %vm1844, %v1841, %v1007
      %v1875 = vsel %vm1844, %v1842, %v1009
      %v1876 = vsel %vm1844, %v1843, %v1011
      %vm1877 = vcmask 97280
      %v1878 = vsel %vm1877, %v1845, %v1077
      %v1879 = vsel %vm1877, %v1846, %v1079
      %v1880 = vsel %vm1877, %v1847, %v1081
      %v1881 = vsel %vm1877, %v1848, %v1083
      %v1882 = vsel %vm1877, %v1849, %v1085
      %v1883 = vsel %vm1877, %v1850, %v1087
      %v1884 = vsel %vm1877, %v1851, %v1089
      %v1885 = vsel %vm1877, %v1852, %v1091
      %v1886 = vsel %vm1877, %v1853, %v1093
      %v1887 = vsel %vm1877, %v1854, %v1095
      %v1888 = vsel %vm1877, %v1855, %v1097
      %v1889 = vsel %vm1877, %v1856, %v1099
      %v1890 = vsel %vm1877, %v1857, %v1101
      %v1891 = vsel %vm1877, %v1858, %v1103
      %v1892 = vsel %vm1877, %v1859, %v1105
      %v1893 = vsel %vm1877, %v1860, %v1107
      %v1894 = vsel %vm1877, %v1861, %v1109
      %v1895 = vsel %vm1877, %v1862, %v1111
      %v1896 = vsel %vm1877, %v1863, %v1113
      %v1897 = vsel %vm1877, %v1864, %v1115
      %v1898 = vsel %vm1877, %v1865, %v1117
      %v1899 = vsel %vm1877, %v1866, %v1119
      %v1900 = vsel %vm1877, %v1867, %v1121
      %v1901 = vsel %vm1877, %v1868, %v1123
      %v1902 = vsel %vm1877, %v1869, %v1125
      %v1903 = vsel %vm1877, %v1870, %v1127
      %v1904 = vsel %vm1877, %v1871, %v1129
      %v1905 = vsel %vm1877, %v1872, %v1131
      %v1906 = vsel %vm1877, %v1873, %v1133
      %v1907 = vsel %vm1877, %v1874, %v1135
      %v1908 = vsel %vm1877, %v1875, %v1137
      %v1909 = vsel %vm1877, %v1876, %v1139
      %vm1910 = vcmask 130048
      %v1911 = vsel %vm1910, %v1878, %v1205
      %v1912 = vsel %vm1910, %v1879, %v1207
      %v1913 = vsel %vm1910, %v1880, %v1209
      %v1914 = vsel %vm1910, %v1881, %v1211
      %v1915 = vsel %vm1910, %v1882, %v1213
      %v1916 = vsel %vm1910, %v1883, %v1215
      %v1917 = vsel %vm1910, %v1884, %v1217
      %v1918 = vsel %vm1910, %v1885, %v1219
      %v1919 = vsel %vm1910, %v1886, %v1221
      %v1920 = vsel %vm1910, %v1887, %v1223
      %v1921 = vsel %vm1910, %v1888, %v1225
      %v1922 = vsel %vm1910, %v1889, %v1227
      %v1923 = vsel %vm1910, %v1890, %v1229
      %v1924 = vsel %vm1910, %v1891, %v1231
      %v1925 = vsel %vm1910, %v1892, %v1233
      %v1926 = vsel %vm1910, %v1893, %v1235
      %v1927 = vsel %vm1910, %v1894, %v1237
      %v1928 = vsel %vm1910, %v1895, %v1239
      %v1929 = vsel %vm1910, %v1896, %v1241
      %v1930 = vsel %vm1910, %v1897, %v1243
      %v1931 = vsel %vm1910, %v1898, %v1245
      %v1932 = vsel %vm1910, %v1899, %v1247
      %v1933 = vsel %vm1910, %v1900, %v1249
      %v1934 = vsel %vm1910, %v1901, %v1251
      %v1935 = vsel %vm1910, %v1902, %v1253
      %v1936 = vsel %vm1910, %v1903, %v1255
      %v1937 = vsel %vm1910, %v1904, %v1257
      %v1938 = vsel %vm1910, %v1905, %v1259
      %v1939 = vsel %vm1910, %v1906, %v1261
      %v1940 = vsel %vm1910, %v1907, %v1263
      %v1941 = vsel %vm1910, %v1908, %v1265
      %v1942 = vsel %vm1910, %v1909, %v1267
      %vm1943 = vcmask 162816
      %v1944 = vsel %vm1943, %v1911, %v1333
      %v1945 = vsel %vm1943, %v1912, %v1335
      %v1946 = vsel %vm1943, %v1913, %v1337
      %v1947 = vsel %vm1943, %v1914, %v1339
      %v1948 = vsel %vm1943, %v1915, %v1341
      %v1949 = vsel %vm1943, %v1916, %v1343
      %v1950 = vsel %vm1943, %v1917, %v1345
      %v1951 = vsel %vm1943, %v1918, %v1347
      %v1952 = vsel %vm1943, %v1919, %v1349
      %v1953 = vsel %vm1943, %v1920, %v1351
      %v1954 = vsel %vm1943, %v1921, %v1353
      %v1955 = vsel %vm1943, %v1922, %v1355
      %v1956 = vsel %vm1943, %v1923, %v1357
      %v1957 = vsel %vm1943, %v1924, %v1359
      %v1958 = vsel %vm1943, %v1925, %v1361
      %v1959 = vsel %vm1943, %v1926, %v1363
      %v1960 = vsel %vm1943, %v1927, %v1365
      %v1961 = vsel %vm1943, %v1928, %v1367
      %v1962 = vsel %vm1943, %v1929, %v1369
      %v1963 = vsel %vm1943, %v1930, %v1371
      %v1964 = vsel %vm1943, %v1931, %v1373
      %v1965 = vsel %vm1943, %v1932, %v1375
      %v1966 = vsel %vm1943, %v1933, %v1377
      %v1967 = vsel %vm1943, %v1934, %v1379
      %v1968 = vsel %vm1943, %v1935, %v1381
      %v1969 = vsel %vm1943, %v1936, %v1383
      %v1970 = vsel %vm1943, %v1937, %v1385
      %v1971 = vsel %vm1943, %v1938, %v1387
      %v1972 = vsel %vm1943, %v1939, %v1389
      %v1973 = vsel %vm1943, %v1940, %v1391
      %v1974 = vsel %vm1943, %v1941, %v1393
      %v1975 = vsel %vm1943, %v1942, %v1395
      %vm1976 = vcmask 195584
      %v1977 = vsel %vm1976, %v1944, %v1461
      %v1978 = vsel %vm1976, %v1945, %v1463
      %v1979 = vsel %vm1976, %v1946, %v1465
      %v1980 = vsel %vm1976, %v1947, %v1467
      %v1981 = vsel %vm1976, %v1948, %v1469
      %v1982 = vsel %vm1976, %v1949, %v1471
      %v1983 = vsel %vm1976, %v1950, %v1473
      %v1984 = vsel %vm1976, %v1951, %v1475
      %v1985 = vsel %vm1976, %v1952, %v1477
      %v1986 = vsel %vm1976, %v1953, %v1479
      %v1987 = vsel %vm1976, %v1954, %v1481
      %v1988 = vsel %vm1976, %v1955, %v1483
      %v1989 = vsel %vm1976, %v1956, %v1485
      %v1990 = vsel %vm1976, %v1957, %v1487
      %v1991 = vsel %vm1976, %v1958, %v1489
      %v1992 = vsel %vm1976, %v1959, %v1491
      %v1993 = vsel %vm1976, %v1960, %v1493
      %v1994 = vsel %vm1976, %v1961, %v1495
      %v1995 = vsel %vm1976, %v1962, %v1497
      %v1996 = vsel %vm1976, %v1963, %v1499
      %v1997 = vsel %vm1976, %v1964, %v1501
      %v1998 = vsel %vm1976, %v1965, %v1503
      %v1999 = vsel %vm1976, %v1966, %v1505
      %v2000 = vsel %vm1976, %v1967, %v1507
      %v2001 = vsel %vm1976, %v1968, %v1509
      %v2002 = vsel %vm1976, %v1969, %v1511
      %v2003 = vsel %vm1976, %v1970, %v1513
      %v2004 = vsel %vm1976, %v1971, %v1515
      %v2005 = vsel %vm1976, %v1972, %v1517
      %v2006 = vsel %vm1976, %v1973, %v1519
      %v2007 = vsel %vm1976, %v1974, %v1521
      %v2008 = vsel %vm1976, %v1975, %v1523
      %vm2009 = vcmask 228352
      %v2010 = vsel %vm2009, %v1977, %v1589
      %v2011 = vsel %vm2009, %v1978, %v1591
      %v2012 = vsel %vm2009, %v1979, %v1593
      %v2013 = vsel %vm2009, %v1980, %v1595
      %v2014 = vsel %vm2009, %v1981, %v1597
      %v2015 = vsel %vm2009, %v1982, %v1599
      %v2016 = vsel %vm2009, %v1983, %v1601
      %v2017 = vsel %vm2009, %v1984, %v1603
      %v2018 = vsel %vm2009, %v1985, %v1605
      %v2019 = vsel %vm2009, %v1986, %v1607
      %v2020 = vsel %vm2009, %v1987, %v1609
      %v2021 = vsel %vm2009, %v1988, %v1611
      %v2022 = vsel %vm2009, %v1989, %v1613
      %v2023 = vsel %vm2009, %v1990, %v1615
      %v2024 = vsel %vm2009, %v1991, %v1617
      %v2025 = vsel %vm2009, %v1992, %v1619
      %v2026 = vsel %vm2009, %v1993, %v1621
      %v2027 = vsel %vm2009, %v1994, %v1623
      %v2028 = vsel %vm2009, %v1995, %v1625
      %v2029 = vsel %vm2009, %v1996, %v1627
      %v2030 = vsel %vm2009, %v1997, %v1629
      %v2031 = vsel %vm2009, %v1998, %v1631
      %v2032 = vsel %vm2009, %v1999, %v1633
      %v2033 = vsel %vm2009, %v2000, %v1635
      %v2034 = vsel %vm2009, %v2001, %v1637
      %v2035 = vsel %vm2009, %v2002, %v1639
      %v2036 = vsel %vm2009, %v2003, %v1641
      %v2037 = vsel %vm2009, %v2004, %v1643
      %v2038 = vsel %vm2009, %v2005, %v1645
      %v2039 = vsel %vm2009, %v2006, %v1647
      %v2040 = vsel %vm2009, %v2007, %v1649
      %v2041 = vsel %vm2009, %v2008, %v1651
      %vm2042 = vcmask 261120
      %v2043 = vsel %vm2042, %v2010, %v1717
      %v2044 = vsel %vm2042, %v2011, %v1719
      %v2045 = vsel %vm2042, %v2012, %v1721
      %v2046 = vsel %vm2042, %v2013, %v1723
      %v2047 = vsel %vm2042, %v2014, %v1725
      %v2048 = vsel %vm2042, %v2015, %v1727
      %v2049 = vsel %vm2042, %v2016, %v1729
      %v2050 = vsel %vm2042, %v2017, %v1731
      %v2051 = vsel %vm2042, %v2018, %v1733
      %v2052 = vsel %vm2042, %v2019, %v1735
      %v2053 = vsel %vm2042, %v2020, %v1737
      %v2054 = vsel %vm2042, %v2021, %v1739
      %v2055 = vsel %vm2042, %v2022, %v1741
      %v2056 = vsel %vm2042, %v2023, %v1743
      %v2057 = vsel %vm2042, %v2024, %v1745
      %v2058 = vsel %vm2042, %v2025, %v1747
      %v2059 = vsel %vm2042, %v2026, %v1749
      %v2060 = vsel %vm2042, %v2027, %v1751
      %v2061 = vsel %vm2042, %v2028, %v1753
      %v2062 = vsel %vm2042, %v2029, %v1755
      %v2063 = vsel %vm2042, %v2030, %v1757
      %v2064 = vsel %vm2042, %v2031, %v1759
      %v2065 = vsel %vm2042, %v2032, %v1761
      %v2066 = vsel %vm2042, %v2033, %v1763
      %v2067 = vsel %vm2042, %v2034, %v1765
      %v2068 = vsel %vm2042, %v2035, %v1767
      %v2069 = vsel %vm2042, %v2036, %v1769
      %v2070 = vsel %vm2042, %v2037, %v1771
      %v2071 = vsel %vm2042, %v2038, %v1773
      %v2072 = vsel %vm2042, %v2039, %v1775
      %v2073 = vsel %vm2042, %v2040, %v1777
      %v2074 = vsel %vm2042, %v2041, %v1779
      %v2075 = vpack.c.bf16 %v2044, %v2043
      %v2076 = vpack.c.bf16 %v2046, %v2045
      %v2077 = vpack.c.bf16 %v2048, %v2047
      %v2078 = vpack.c.bf16 %v2050, %v2049
      %v2079 = vpack.c.bf16 %v2052, %v2051
      %v2080 = vpack.c.bf16 %v2054, %v2053
      %v2081 = vpack.c.bf16 %v2056, %v2055
      %v2082 = vpack.c.bf16 %v2058, %v2057
      %v2083 = vpack.c.bf16 %v2060, %v2059
      %v2084 = vpack.c.bf16 %v2062, %v2061
      %v2085 = vpack.c.bf16 %v2064, %v2063
      %v2086 = vpack.c.bf16 %v2066, %v2065
      %v2087 = vpack.c.bf16 %v2068, %v2067
      %v2088 = vpack.c.bf16 %v2070, %v2069
      %v2089 = vpack.c.bf16 %v2072, %v2071
      %v2090 = vpack.c.bf16 %v2074, %v2073
      %v2091 = vld [vmem:[%s1] sm:$0xf]
      %v2092 = vld [vmem:[%s1 + $0x4] sm:$0xf]
      %v2093 = vld [vmem:[%s1 + $0x8] sm:$0xf]
      %v2094 = vld [vmem:[%s1 + $0xc] sm:$0xf]
      %v2095 = vld [vmem:[%s1 + $0x10] sm:$0x3]
      %v2101 = vunpack.c.l.b16 %v2091
      %v2102 = vunpack.c.l.b16 %v2092
      %v2103 = vunpack.c.l.b16 %v2093
      %v2104 = vunpack.c.l.b16 %v2094
      %v2105 = vunpack.c.l.b16 %v2095
      %v2106 = vpack.c.b16 %v2102, %v2101
      %v2107 = vpack.c.b16 %v2104, %v2103
      %v2108 = vpack.c.b16 %v2105, %v2105
      %vm2111 = vcmask 293888
      %v2113 = vsel %vm2111, %v2075, 0
      %v2116 = vsel %vm2111, %v2076, 0
      %v2119 = vsel %vm2111, %v2077, 0
      %v2122 = vsel %vm2111, %v2078, 0
      %v2125 = vsel %vm2111, %v2079, 0
      %v2128 = vsel %vm2111, %v2080, 0
      %v2131 = vsel %vm2111, %v2081, 0
      %v2134 = vsel %vm2111, %v2082, 0
      %v2137 = vsel %vm2111, %v2083, 0
      %v2140 = vsel %vm2111, %v2084, 0
      %v2143 = vsel %vm2111, %v2085, 0
      %v2146 = vsel %vm2111, %v2086, 0
      %v2149 = vsel %vm2111, %v2087, 0
      %v2152 = vsel %vm2111, %v2088, 0
      %v2155 = vsel %vm2111, %v2089, 0
      %v2158 = vsel %vm2111, %v2090, 0
      %vm2160 = vcmask 1041408
      %v2162 = vsel %vm2160, %v2108, 0
      %2164 = vmatprep.subr.bf16.mxu0 0
      %2165 = vmatpush1.bf16.msra.mxu0 %v2106
      %2166 = vmatprep.subr.bf16.mxu0 0
      %2167 = vmatpush1.bf16.msra.mxu0 %v2107
      %2168 = vmatprep.subr.bf16.mxu0 0
      %2169 = vmatpush1.bf16.msra.mxu0 %v2162
      %2170 = vmatprep.subr.bf16.mxu0 0
      %2171 = vmatpush1.bf16.msra.mxu0 0
      %2172 = vmatprep.subr.bf16.mxu0 0
      %2173 = vmatpush1.bf16.msra.mxu0 0
      %2174 = vmatprep.subr.bf16.mxu0 0
      %2175 = vmatpush1.bf16.msra.mxu0 0
      %2176 = vmatprep.subr.bf16.mxu0 0
      %2177 = vmatpush1.bf16.msra.mxu0 0
      %2178 = vmatprep.subr.bf16.mxu0 0
      %2179 = vmatpush1.bf16.msra.mxu0 0
      %2180 = vmatprep.subr.bf16.mxu0 0
      %2181 = vmatpush1.bf16.msra.mxu0 0
      %2182 = vmatprep.subr.bf16.mxu0 0
      %2183 = vmatpush1.bf16.msra.mxu0 0
      %2184 = vmatprep.subr.bf16.mxu0 0
      %2185 = vmatpush1.bf16.msra.mxu0 0
      %2186 = vmatprep.subr.bf16.mxu0 0
      %2187 = vmatpush1.bf16.msra.mxu0 0
      %2188 = vmatprep.subr.bf16.mxu0 0
      %2189 = vmatpush1.bf16.msra.mxu0 0
      %2190 = vmatprep.subr.bf16.mxu0 0
      %2191 = vmatpush1.bf16.msra.mxu0 0
      %2192 = vmatprep.subr.bf16.mxu0 0
      %2193 = vmatpush1.bf16.msra.mxu0 0
      %2194 = vmatprep.subr.bf16.mxu0 0
      %2195 = vmatpush1.bf16.msra.mxu0 0
      %2196 = vmatprep.mubr.bf16.mxu0 0
      %2197 = vmatmul.mubr.bf16.gmra.mrb[0].mxu0 %v2113
      %v2198 = vpop.f32.mrb[0].mxu0
      %v2199 = vadd.f32 0.0, %v2198
      %v2200 = vpop.f32.mrb[0].mxu0
      %v2201 = vpop.f32.mrb[0].mxu0
      %v2202 = vadd.f32 0.0, %v2201
      %v2203 = vpop.f32.mrb[0].mxu0
      %2204 = vmatprep.mubr.bf16.mxu0 0
      %2205 = vmatmul.mubr.bf16.gmra.mrb[0].mxu0 %v2116
      %v2206 = vpop.f32.mrb[0].mxu0
      %v2207 = vadd.f32 0.0, %v2206
      %v2208 = vpop.f32.mrb[0].mxu0
      %v2209 = vpop.f32.mrb[0].mxu0
      %v2210 = vadd.f32 0.0, %v2209
      %v2211 = vpop.f32.mrb[0].mxu0
      %2212 = vmatprep.mubr.bf16.mxu0 0
      %2213 = vmatmul.mubr.bf16.gmra.mrb[0].mxu0 %v2119
      %v2214 = vpop.f32.mrb[0].mxu0
      %v2215 = vadd.f32 0.0, %v2214
      %v2216 = vpop.f32.mrb[0].mxu0
      %v2217 = vpop.f32.mrb[0].mxu0
      %v2218 = vadd.f32 0.0, %v2217
      %v2219 = vpop.f32.mrb[0].mxu0
      %2220 = vmatprep.mubr.bf16.mxu0 0
      %2221 = vmatmul.mubr.bf16.gmra.mrb[0].mxu0 %v2122
      %v2222 = vpop.f32.mrb[0].mxu0
      %v2223 = vadd.f32 0.0, %v2222
      %v2224 = vpop.f32.mrb[0].mxu0
      %v2225 = vpop.f32.mrb[0].mxu0
      %v2226 = vadd.f32 0.0, %v2225
      %v2227 = vpop.f32.mrb[0].mxu0
      %2228 = vmatprep.mubr.bf16.mxu0 0
      %2229 = vmatmul.mubr.bf16.gmra.mrb[0].mxu0 %v2125
      %v2230 = vpop.f32.mrb[0].mxu0
      %v2231 = vadd.f32 0.0, %v2230
      %v2232 = vpop.f32.mrb[0].mxu0
      %v2233 = vpop.f32.mrb[0].mxu0
      %v2234 = vadd.f32 0.0, %v2233
      %v2235 = vpop.f32.mrb[0].mxu0
      %2236 = vmatprep.mubr.bf16.mxu0 0
      %2237 = vmatmul.mubr.bf16.gmra.mrb[0].mxu0 %v2128
      %v2238 = vpop.f32.mrb[0].mxu0
      %v2239 = vadd.f32 0.0, %v2238
      %v2240 = vpop.f32.mrb[0].mxu0
      %v2241 = vpop.f32.mrb[0].mxu0
      %v2242 = vadd.f32 0.0, %v2241
      %v2243 = vpop.f32.mrb[0].mxu0
      %2244 = vmatprep.mubr.bf16.mxu0 0
      %2245 = vmatmul.mubr.bf16.gmra.mrb[0].mxu0 %v2131
      %v2246 = vpop.f32.mrb[0].mxu0
      %v2247 = vadd.f32 0.0, %v2246
      %v2248 = vpop.f32.mrb[0].mxu0
      %v2249 = vpop.f32.mrb[0].mxu0
      %v2250 = vadd.f32 0.0, %v2249
      %v2251 = vpop.f32.mrb[0].mxu0
      %2252 = vmatprep.mubr.bf16.mxu0 0
      %2253 = vmatmul.mubr.bf16.gmra.mrb[0].mxu0 %v2134
      %v2254 = vpop.f32.mrb[0].mxu0
      %v2255 = vadd.f32 0.0, %v2254
      %v2256 = vpop.f32.mrb[0].mxu0
      %v2257 = vpop.f32.mrb[0].mxu0
      %v2258 = vadd.f32 0.0, %v2257
      %v2259 = vpop.f32.mrb[0].mxu0
      %2260 = vmatprep.mubr.bf16.mxu0 0
      %2261 = vmatmul.mubr.bf16.gmra.mrb[0].mxu0 %v2137
      %v2262 = vpop.f32.mrb[0].mxu0
      %v2263 = vadd.f32 0.0, %v2262
      %v2264 = vpop.f32.mrb[0].mxu0
      %v2265 = vpop.f32.mrb[0].mxu0
      %v2266 = vadd.f32 0.0, %v2265
      %v2267 = vpop.f32.mrb[0].mxu0
      %2268 = vmatprep.mubr.bf16.mxu0 0
      %2269 = vmatmul.mubr.bf16.gmra.mrb[0].mxu0 %v2140
      %v2270 = vpop.f32.mrb[0].mxu0
      %v2271 = vadd.f32 0.0, %v2270
      %v2272 = vpop.f32.mrb[0].mxu0
      %v2273 = vpop.f32.mrb[0].mxu0
      %v2274 = vadd.f32 0.0, %v2273
      %v2275 = vpop.f32.mrb[0].mxu0
      %2276 = vmatprep.mubr.bf16.mxu0 0
      %2277 = vmatmul.mubr.bf16.gmra.mrb[0].mxu0 %v2143
      %v2278 = vpop.f32.mrb[0].mxu0
      %v2279 = vadd.f32 0.0, %v2278
      %v2280 = vpop.f32.mrb[0].mxu0
      %v2281 = vpop.f32.mrb[0].mxu0
      %v2282 = vadd.f32 0.0, %v2281
      %v2283 = vpop.f32.mrb[0].mxu0
      %2284 = vmatprep.mubr.bf16.mxu0 0
      %2285 = vmatmul.mubr.bf16.gmra.mrb[0].mxu0 %v2146
      %v2286 = vpop.f32.mrb[0].mxu0
      %v2287 = vadd.f32 0.0, %v2286
      %v2288 = vpop.f32.mrb[0].mxu0
      %v2289 = vpop.f32.mrb[0].mxu0
      %v2290 = vadd.f32 0.0, %v2289
      %v2291 = vpop.f32.mrb[0].mxu0
      %2292 = vmatprep.mubr.bf16.mxu0 0
      %2293 = vmatmul.mubr.bf16.gmra.mrb[0].mxu0 %v2149
      %v2294 = vpop.f32.mrb[0].mxu0
      %v2295 = vadd.f32 0.0, %v2294
      %v2296 = vpop.f32.mrb[0].mxu0
      %v2297 = vpop.f32.mrb[0].mxu0
      %v2298 = vadd.f32 0.0, %v2297
      %v2299 = vpop.f32.mrb[0].mxu0
      %2300 = vmatprep.mubr.bf16.mxu0 0
      %2301 = vmatmul.mubr.bf16.gmra.mrb[0].mxu0 %v2152
      %v2302 = vpop.f32.mrb[0].mxu0
      %v2303 = vadd.f32 0.0, %v2302
      %v2304 = vpop.f32.mrb[0].mxu0
      %v2305 = vpop.f32.mrb[0].mxu0
      %v2306 = vadd.f32 0.0, %v2305
      %v2307 = vpop.f32.mrb[0].mxu0
      %2308 = vmatprep.mubr.bf16.mxu0 0
      %2309 = vmatmul.mubr.bf16.gmra.mrb[0].mxu0 %v2155
      %v2310 = vpop.f32.mrb[0].mxu0
      %v2311 = vadd.f32 0.0, %v2310
      %v2312 = vpop.f32.mrb[0].mxu0
      %v2313 = vpop.f32.mrb[0].mxu0
      %v2314 = vadd.f32 0.0, %v2313
      %v2315 = vpop.f32.mrb[0].mxu0
      %2316 = vmatprep.mubr.bf16.mxu0 0
      %2317 = vmatmul.mubr.bf16.gmra.mrb[0].mxu0 %v2158
      %v2318 = vpop.f32.mrb[0].mxu0
      %v2319 = vadd.f32 0.0, %v2318
      %v2320 = vpop.f32.mrb[0].mxu0
      %v2321 = vpop.f32.mrb[0].mxu0
      %v2322 = vadd.f32 0.0, %v2321
      %v2323 = vpop.f32.mrb[0].mxu0
      %2324 = vdwg.mxu0
      %v2325 = vld [vmem:[%s2] sm:$0x1]
      %v2327 = vlaneseq
      %v2328 = vshrl.u32 %v2327, 7
      %v2329 = vsub.s32 0, %v2328
      %v2330 = vrot.slane %v2325, %v2329
      %v2332 = vmul.f32 %v2199, %v2330
      %v2333 = vmul.f32 %v2202, %v2330
      %v2334 = vmul.f32 %v2207, %v2330
      %v2335 = vmul.f32 %v2210, %v2330
      %v2336 = vmul.f32 %v2215, %v2330
      %v2337 = vmul.f32 %v2218, %v2330
      %v2338 = vmul.f32 %v2223, %v2330
      %v2339 = vmul.f32 %v2226, %v2330
      %v2340 = vmul.f32 %v2231, %v2330
      %v2341 = vmul.f32 %v2234, %v2330
      %v2342 = vmul.f32 %v2239, %v2330
      %v2343 = vmul.f32 %v2242, %v2330
      %v2344 = vmul.f32 %v2247, %v2330
      %v2345 = vmul.f32 %v2250, %v2330
      %v2346 = vmul.f32 %v2255, %v2330
      %v2347 = vmul.f32 %v2258, %v2330
      %v2348 = vmul.f32 %v2263, %v2330
      %v2349 = vmul.f32 %v2266, %v2330
      %v2350 = vmul.f32 %v2271, %v2330
      %v2351 = vmul.f32 %v2274, %v2330
      %v2352 = vmul.f32 %v2279, %v2330
      %v2353 = vmul.f32 %v2282, %v2330
      %v2354 = vmul.f32 %v2287, %v2330
      %v2355 = vmul.f32 %v2290, %v2330
      %v2356 = vmul.f32 %v2295, %v2330
      %v2357 = vmul.f32 %v2298, %v2330
      %v2358 = vmul.f32 %v2303, %v2330
      %v2359 = vmul.f32 %v2306, %v2330
      %v2360 = vmul.f32 %v2311, %v2330
      %v2361 = vmul.f32 %v2314, %v2330
      %v2362 = vmul.f32 %v2319, %v2330
      %v2363 = vmul.f32 %v2322, %v2330
      %v2364 = vld [vmem:[%s3] sm:$0x1]
      %v2366 = vlaneseq
      %v2367 = vshrl.u32 %v2366, 7
      %v2368 = vsub.s32 0, %v2367
      %v2369 = vrot.slane %v2364, %v2368
      %v2371 = vadd.f32 %v2332, %v2369
      %v2372 = vadd.f32 %v2333, %v2369
      %v2373 = vadd.f32 %v2334, %v2369
      %v2374 = vadd.f32 %v2335, %v2369
      %v2375 = vadd.f32 %v2336, %v2369
      %v2376 = vadd.f32 %v2337, %v2369
      %v2377 = vadd.f32 %v2338, %v2369
      %v2378 = vadd.f32 %v2339, %v2369
      %v2379 = vadd.f32 %v2340, %v2369
      %v2380 = vadd.f32 %v2341, %v2369
      %v2381 = vadd.f32 %v2342, %v2369
      %v2382 = vadd.f32 %v2343, %v2369
      %v2383 = vadd.f32 %v2344, %v2369
      %v2384 = vadd.f32 %v2345, %v2369
      %v2385 = vadd.f32 %v2346, %v2369
      %v2386 = vadd.f32 %v2347, %v2369
      %v2387 = vadd.f32 %v2348, %v2369
      %v2388 = vadd.f32 %v2349, %v2369
      %v2389 = vadd.f32 %v2350, %v2369
      %v2390 = vadd.f32 %v2351, %v2369
      %v2391 = vadd.f32 %v2352, %v2369
      %v2392 = vadd.f32 %v2353, %v2369
      %v2393 = vadd.f32 %v2354, %v2369
      %v2394 = vadd.f32 %v2355, %v2369
      %v2395 = vadd.f32 %v2356, %v2369
      %v2396 = vadd.f32 %v2357, %v2369
      %v2397 = vadd.f32 %v2358, %v2369
      %v2398 = vadd.f32 %v2359, %v2369
      %v2399 = vadd.f32 %v2360, %v2369
      %v2400 = vadd.f32 %v2361, %v2369
      %v2401 = vadd.f32 %v2362, %v2369
      %v2402 = vadd.f32 %v2363, %v2369
      %v2403 = vmax.f32 %v2371, 0.0
      %v2404 = vmax.f32 %v2372, 0.0
      %v2405 = vmax.f32 %v2373, 0.0
      %v2406 = vmax.f32 %v2374, 0.0
      %v2407 = vmax.f32 %v2375, 0.0
      %v2408 = vmax.f32 %v2376, 0.0
      %v2409 = vmax.f32 %v2377, 0.0
      %v2410 = vmax.f32 %v2378, 0.0
      %v2411 = vmax.f32 %v2379, 0.0
      %v2412 = vmax.f32 %v2380, 0.0
      %v2413 = vmax.f32 %v2381, 0.0
      %v2414 = vmax.f32 %v2382, 0.0
      %v2415 = vmax.f32 %v2383, 0.0
      %v2416 = vmax.f32 %v2384, 0.0
      %v2417 = vmax.f32 %v2385, 0.0
      %v2418 = vmax.f32 %v2386, 0.0
      %v2419 = vmax.f32 %v2387, 0.0
      %v2420 = vmax.f32 %v2388, 0.0
      %v2421 = vmax.f32 %v2389, 0.0
      %v2422 = vmax.f32 %v2390, 0.0
      %v2423 = vmax.f32 %v2391, 0.0
      %v2424 = vmax.f32 %v2392, 0.0
      %v2425 = vmax.f32 %v2393, 0.0
      %v2426 = vmax.f32 %v2394, 0.0
      %v2427 = vmax.f32 %v2395, 0.0
      %v2428 = vmax.f32 %v2396, 0.0
      %v2429 = vmax.f32 %v2397, 0.0
      %v2430 = vmax.f32 %v2398, 0.0
      %v2431 = vmax.f32 %v2399, 0.0
      %v2432 = vmax.f32 %v2400, 0.0
      %v2433 = vmax.f32 %v2401, 0.0
      %v2434 = vmax.f32 %v2402, 0.0
      %2435 = vst.msk [vmem:[#allocation3] sm:$0xff] %vm1844, 0.0
      %2436 = vst.msk [vmem:[#allocation3 + $0x8] sm:$0xff] %vm1844, 0.0
      %2437 = vst.msk [vmem:[#allocation3 + $0x10] sm:$0xff] %vm1844, 0.0
      %2438 = vst.msk [vmem:[#allocation3 + $0x18] sm:$0xff] %vm1844, 0.0
      %2439 = vst.msk [vmem:[#allocation3 + $0x20] sm:$0xff] %vm1844, 0.0
      %2440 = vst.msk [vmem:[#allocation3 + $0x28] sm:$0xff] %vm1844, 0.0
      %2441 = vst.msk [vmem:[#allocation3 + $0x30] sm:$0xff] %vm1844, 0.0
      %2442 = vst.msk [vmem:[#allocation3 + $0x38] sm:$0xff] %vm1844, 0.0
      %2443 = vst.msk [vmem:[#allocation3 + $0x40] sm:$0xff] %vm1844, 0.0
      %2444 = vst.msk [vmem:[#allocation3 + $0x48] sm:$0xff] %vm1844, 0.0
      %2445 = vst.msk [vmem:[#allocation3 + $0x50] sm:$0xff] %vm1844, 0.0
      %2446 = vst.msk [vmem:[#allocation3 + $0x58] sm:$0xff] %vm1844, 0.0
      %2447 = vst.msk [vmem:[#allocation3 + $0x60] sm:$0xff] %vm1844, 0.0
      %2448 = vst.msk [vmem:[#allocation3 + $0x68] sm:$0xff] %vm1844, 0.0
      %2449 = vst.msk [vmem:[#allocation3 + $0x70] sm:$0xff] %vm1844, 0.0
      %2450 = vst.msk [vmem:[#allocation3 + $0x78] sm:$0xff] %vm1844, 0.0
      %2451 = vst.msk [vmem:[#allocation3 + $0x80] sm:$0xff] %vm1844, 0.0
      %2452 = vst.msk [vmem:[#allocation3 + $0x88] sm:$0xff] %vm1844, 0.0
      %2453 = vst.msk [vmem:[#allocation3 + $0x90] sm:$0xff] %vm1844, 0.0
      %2454 = vst.msk [vmem:[#allocation3 + $0x98] sm:$0xff] %vm1844, 0.0
      %2455 = vst.msk [vmem:[#allocation3 + $0xa0] sm:$0xff] %vm1844, 0.0
      %2456 = vst.msk [vmem:[#allocation3 + $0xa8] sm:$0xff] %vm1844, 0.0
      %2457 = vst.msk [vmem:[#allocation3 + $0xb0] sm:$0xff] %vm1844, 0.0
      %2458 = vst.msk [vmem:[#allocation3 + $0xb8] sm:$0xff] %vm1844, 0.0
      %2459 = vst.msk [vmem:[#allocation3 + $0xc0] sm:$0xff] %vm1844, 0.0
      %2460 = vst.msk [vmem:[#allocation3 + $0xc8] sm:$0xff] %vm1844, 0.0
      %2461 = vst.msk [vmem:[#allocation3 + $0xd0] sm:$0xff] %vm1844, 0.0
      %2462 = vst.msk [vmem:[#allocation3 + $0xd8] sm:$0xff] %vm1844, 0.0
      %2463 = vst.msk [vmem:[#allocation3 + $0xe0] sm:$0xff] %vm1844, 0.0
      %2464 = vst.msk [vmem:[#allocation3 + $0xe8] sm:$0xff] %vm1844, 0.0
      %2465 = vst.msk [vmem:[#allocation3 + $0xf0] sm:$0xff] %vm1844, 0.0
      %2466 = vst.msk [vmem:[#allocation3 + $0xf8] sm:$0xff] %vm1844, 0.0
      %2467 = vst.msk [vmem:[#allocation3 + $0x100] sm:$0xff] %vm1844, 0.0
      %2468 = vst.msk [vmem:[#allocation3 + $0x108] sm:$0xff] %vm1844, 0.0
      %2469 = vst.msk [vmem:[#allocation3 + $0x110] sm:$0xff] %vm1844, 0.0
      %2470 = vst.msk [vmem:[#allocation3 + $0x118] sm:$0xff] %vm1844, 0.0
      %2471 = vst.msk [vmem:[#allocation3 + $0x120] sm:$0xff] %vm1844, 0.0
      %2472 = vst.msk [vmem:[#allocation3 + $0x128] sm:$0xff] %vm1844, 0.0
      %2473 = vst.msk [vmem:[#allocation3 + $0x130] sm:$0xff] %vm1844, 0.0
      %2474 = vst.msk [vmem:[#allocation3 + $0x138] sm:$0xff] %vm1844, 0.0
      %2475 = vst.msk [vmem:[#allocation3 + $0x140] sm:$0xff] %vm1844, 0.0
      %2476 = vst.msk [vmem:[#allocation3 + $0x148] sm:$0xff] %vm1844, 0.0
      %2477 = vst.msk [vmem:[#allocation3 + $0x150] sm:$0xff] %vm1844, 0.0
      %2478 = vst.msk [vmem:[#allocation3 + $0x158] sm:$0xff] %vm1844, 0.0
      %2479 = vst.msk [vmem:[#allocation3 + $0x160] sm:$0xff] %vm1844, 0.0
      %2480 = vst.msk [vmem:[#allocation3 + $0x168] sm:$0xff] %vm1844, 0.0
      %2481 = vst.msk [vmem:[#allocation3 + $0x170] sm:$0xff] %vm1844, 0.0
      %2482 = vst.msk [vmem:[#allocation3 + $0x178] sm:$0xff] %vm1844, 0.0
      %2483 = vst.msk [vmem:[#allocation3 + $0x180] sm:$0xff] %vm1844, 0.0
      %2484 = vst.msk [vmem:[#allocation3 + $0x188] sm:$0xff] %vm1844, 0.0
      %2485 = vst.msk [vmem:[#allocation3 + $0x190] sm:$0xff] %vm1844, 0.0
      %2486 = vst.msk [vmem:[#allocation3 + $0x198] sm:$0xff] %vm1844, 0.0
      %2487 = vst.msk [vmem:[#allocation3 + $0x1a0] sm:$0xff] %vm1844, 0.0
      %2488 = vst.msk [vmem:[#allocation3 + $0x1a8] sm:$0xff] %vm1844, 0.0
      %2489 = vst.msk [vmem:[#allocation3 + $0x1b0] sm:$0xff] %vm1844, 0.0
      %2490 = vst.msk [vmem:[#allocation3 + $0x1b8] sm:$0xff] %vm1844, 0.0
      %2491 = vst.msk [vmem:[#allocation3 + $0x1c0] sm:$0xff] %vm1844, 0.0
      %2492 = vst.msk [vmem:[#allocation3 + $0x1c8] sm:$0xff] %vm1844, 0.0
      %2493 = vst.msk [vmem:[#allocation3 + $0x1d0] sm:$0xff] %vm1844, 0.0
      %2494 = vst.msk [vmem:[#allocation3 + $0x1d8] sm:$0xff] %vm1844, 0.0
      %2495 = vst.msk [vmem:[#allocation3 + $0x1e0] sm:$0xff] %vm1844, 0.0
      %2496 = vst.msk [vmem:[#allocation3 + $0x1e8] sm:$0xff] %vm1844, 0.0
      %2497 = vst.msk [vmem:[#allocation3 + $0x1f0] sm:$0xff] %vm1844, 0.0
      %2498 = vst.msk [vmem:[#allocation3 + $0x1f8] sm:$0xff] %vm1844, 0.0
      %2499 = vst.msk [vmem:[#allocation3 + $0x200] sm:$0xff] %vm1844, 0.0
      %2500 = vst.msk [vmem:[#allocation3 + $0x208] sm:$0xff] %vm1844, 0.0
      %2501 = vst.msk [vmem:[#allocation3 + $0x210] sm:$0xff] %vm1844, 0.0
      %2502 = vst.msk [vmem:[#allocation3 + $0x218] sm:$0xff] %vm1844, 0.0
      %2503 = vst.msk [vmem:[#allocation3 + $0x220] sm:$0xff] %vm1844, 0.0
      %2504 = vst.msk [vmem:[#allocation3 + $0x228] sm:$0xff] %vm1844, 0.0
      %2505 = vst.msk [vmem:[#allocation3 + $0x230] sm:$0xff] %vm1844, 0.0
      %2506 = vst.msk [vmem:[#allocation3 + $0x238] sm:$0xff] %vm1844, 0.0
      %s2507 = scalar_lea.vmem [#allocation3], 32
      %2508 = vst.msk [vmem:[%s2507 + $0x8] sm:$0xff] %vm1844, %v2403
      %2509 = vst.msk [vmem:[%s2507 + $0x10] sm:$0xff] %vm1844, %v2404
      %2510 = vst.msk [vmem:[%s2507 + $0x28] sm:$0xff] %vm1844, %v2405
      %2511 = vst.msk [vmem:[%s2507 + $0x30] sm:$0xff] %vm1844, %v2406
      %2512 = vst.msk [vmem:[%s2507 + $0x48] sm:$0xff] %vm1844, %v2407
      %2513 = vst.msk [vmem:[%s2507 + $0x50] sm:$0xff] %vm1844, %v2408
      %2514 = vst.msk [vmem:[%s2507 + $0x68] sm:$0xff] %vm1844, %v2409
      %2515 = vst.msk [vmem:[%s2507 + $0x70] sm:$0xff] %vm1844, %v2410
      %2516 = vst.msk [vmem:[%s2507 + $0x88] sm:$0xff] %vm1844, %v2411
      %2517 = vst.msk [vmem:[%s2507 + $0x90] sm:$0xff] %vm1844, %v2412
      %2518 = vst.msk [vmem:[%s2507 + $0xa8] sm:$0xff] %vm1844, %v2413
      %2519 = vst.msk [vmem:[%s2507 + $0xb0] sm:$0xff] %vm1844, %v2414
      %2520 = vst.msk [vmem:[%s2507 + $0xc8] sm:$0xff] %vm1844, %v2415
      %2521 = vst.msk [vmem:[%s2507 + $0xd0] sm:$0xff] %vm1844, %v2416
      %2522 = vst.msk [vmem:[%s2507 + $0xe8] sm:$0xff] %vm1844, %v2417
      %2523 = vst.msk [vmem:[%s2507 + $0xf0] sm:$0xff] %vm1844, %v2418
      %2524 = vst.msk [vmem:[%s2507 + $0x108] sm:$0xff] %vm1844, %v2419
      %2525 = vst.msk [vmem:[%s2507 + $0x110] sm:$0xff] %vm1844, %v2420
      %2526 = vst.msk [vmem:[%s2507 + $0x128] sm:$0xff] %vm1844, %v2421
      %2527 = vst.msk [vmem:[%s2507 + $0x130] sm:$0xff] %vm1844, %v2422
      %2528 = vst.msk [vmem:[%s2507 + $0x148] sm:$0xff] %vm1844, %v2423
      %2529 = vst.msk [vmem:[%s2507 + $0x150] sm:$0xff] %vm1844, %v2424
      %2530 = vst.msk [vmem:[%s2507 + $0x168] sm:$0xff] %vm1844, %v2425
      %2531 = vst.msk [vmem:[%s2507 + $0x170] sm:$0xff] %vm1844, %v2426
      %2532 = vst.msk [vmem:[%s2507 + $0x188] sm:$0xff] %vm1844, %v2427
      %2533 = vst.msk [vmem:[%s2507 + $0x190] sm:$0xff] %vm1844, %v2428
      %2534 = vst.msk [vmem:[%s2507 + $0x1a8] sm:$0xff] %vm1844, %v2429
      %2535 = vst.msk [vmem:[%s2507 + $0x1b0] sm:$0xff] %vm1844, %v2430
      %2536 = vst.msk [vmem:[%s2507 + $0x1c8] sm:$0xff] %vm1844, %v2431
      %2537 = vst.msk [vmem:[%s2507 + $0x1d0] sm:$0xff] %vm1844, %v2432
      %2538 = vst.msk [vmem:[%s2507 + $0x1e8] sm:$0xff] %vm1844, %v2433
      %2539 = vst.msk [vmem:[%s2507 + $0x1f0] sm:$0xff] %vm1844, %v2434
      %v2540 = vld [vmem:[%s354] sm:$0xff]
      %v2541 = vld [vmem:[%s354 + $0x8] sm:$0xff]
      %v2542 = vld [vmem:[%s354 + $0x10] sm:$0xff]
      %v2543 = vld [vmem:[%s354 + $0x18] sm:$0xff]
      %v2544 = vld [vmem:[%s354 + $0x20] sm:$0xff]
      %v2545 = vld [vmem:[%s354 + $0x28] sm:$0xff]
      %v2546 = vld [vmem:[%s354 + $0x30] sm:$0xff]
      %v2547 = vld [vmem:[%s354 + $0x38] sm:$0xff]
      %v2548 = vld [vmem:[%s354 + $0x40] sm:$0xff]
      %v2549 = vld [vmem:[%s354 + $0x48] sm:$0xff]
      %v2550 = vld [vmem:[%s354 + $0x50] sm:$0xff]
      %v2551 = vld [vmem:[%s354 + $0x58] sm:$0xff]
      %v2552 = vld [vmem:[%s354 + $0x60] sm:$0xff]
      %v2553 = vld [vmem:[%s354 + $0x68] sm:$0xff]
      %v2554 = vld [vmem:[%s354 + $0x70] sm:$0xff]
      %v2555 = vld [vmem:[%s354 + $0x78] sm:$0xff]
      %v2556 = vld [vmem:[%s354 + $0x80] sm:$0xff]
      %v2557 = vld [vmem:[%s354 + $0x88] sm:$0xff]
      %v2558 = vld [vmem:[%s354 + $0x90] sm:$0xff]
      %v2559 = vld [vmem:[%s354 + $0x98] sm:$0xff]
      %v2560 = vld [vmem:[%s354 + $0xa0] sm:$0xff]
      %v2561 = vld [vmem:[%s354 + $0xa8] sm:$0xff]
      %v2562 = vld [vmem:[%s354 + $0xb0] sm:$0xff]
      %v2563 = vld [vmem:[%s354 + $0xb8] sm:$0xff]
      %v2564 = vld [vmem:[%s354 + $0xc0] sm:$0xff]
      %v2565 = vld [vmem:[%s354 + $0xc8] sm:$0xff]
      %v2566 = vld [vmem:[%s354 + $0xd0] sm:$0xff]
      %v2567 = vld [vmem:[%s354 + $0xd8] sm:$0xff]
      %v2568 = vld [vmem:[%s354 + $0xe0] sm:$0xff]
      %v2569 = vld [vmem:[%s354 + $0xe8] sm:$0xff]
      %v2570 = vld [vmem:[%s354 + $0xf0] sm:$0xff]
      %v2571 = vld [vmem:[%s354 + $0xf8] sm:$0xff]
      %v2572 = vpack.c.bf16 %v2541, %v2540
      %v2573 = vpack.c.bf16 %v2543, %v2542
      %v2574 = vpack.c.bf16 %v2545, %v2544
      %v2575 = vpack.c.bf16 %v2547, %v2546
      %v2576 = vpack.c.bf16 %v2549, %v2548
      %v2577 = vpack.c.bf16 %v2551, %v2550
      %v2578 = vpack.c.bf16 %v2553, %v2552
      %v2579 = vpack.c.bf16 %v2555, %v2554
      %v2580 = vpack.c.bf16 %v2557, %v2556
      %v2581 = vpack.c.bf16 %v2559, %v2558
      %v2582 = vpack.c.bf16 %v2561, %v2560
      %v2583 = vpack.c.bf16 %v2563, %v2562
      %v2584 = vpack.c.bf16 %v2565, %v2564
      %v2585 = vpack.c.bf16 %v2567, %v2566
      %v2586 = vpack.c.bf16 %v2569, %v2568
      %v2587 = vpack.c.bf16 %v2571, %v2570
      %v2588 = vld [vmem:[%s4] sm:$0x3]
      %v2590 = vsel %vm361, %v2572, 0
      %v2593 = vsel %vm361, %v2573, 0
      %v2596 = vsel %vm361, %v2574, 0
      %v2599 = vsel %vm361, %v2575, 0
      %v2602 = vsel %vm361, %v2576, 0
      %v2605 = vsel %vm361, %v2577, 0
      %v2608 = vsel %vm361, %v2578, 0
      %v2611 = vsel %vm361, %v2579, 0
      %v2614 = vsel %vm361, %v2580, 0
      %v2617 = vsel %vm361, %v2581, 0
      %v2620 = vsel %vm361, %v2582, 0
      %v2623 = vsel %vm361, %v2583, 0
      %v2626 = vsel %vm361, %v2584, 0
      %v2629 = vsel %vm361, %v2585, 0
      %v2632 = vsel %vm361, %v2586, 0
      %v2635 = vsel %vm361, %v2587, 0
      %v2638 = vsel %vm2160, %v2588, 0
      %2640 = vmatprep.subr.bf16.mxu0 0
      %2641 = vmatpush1.bf16.msra.mxu0 %v2638
      %2642 = vmatprep.subr.bf16.mxu0 0
      %2643 = vmatpush1.bf16.msra.mxu0 0
      %2644 = vmatprep.subr.bf16.mxu0 0
      %2645 = vmatpush1.bf16.msra.mxu0 0
      %2646 = vmatprep.subr.bf16.mxu0 0
      %2647 = vmatpush1.bf16.msra.mxu0 0
      %2648 = vmatprep.subr.bf16.mxu0 0
      %2649 = vmatpush1.bf16.msra.mxu0 0
      %2650 = vmatprep.subr.bf16.mxu0 0
      %2651 = vmatpush1.bf16.msra.mxu0 0
      %2652 = vmatprep.subr.bf16.mxu0 0
      %2653 = vmatpush1.bf16.msra.mxu0 0
      %2654 = vmatprep.subr.bf16.mxu0 0
      %2655 = vmatpush1.bf16.msra.mxu0 0
      %2656 = vmatprep.subr.bf16.mxu0 0
      %2657 = vmatpush1.bf16.msra.mxu0 0
      %2658 = vmatprep.subr.bf16.mxu0 0
      %2659 = vmatpush1.bf16.msra.mxu0 0
      %2660 = vmatprep.subr.bf16.mxu0 0
      %2661 = vmatpush1.bf16.msra.mxu0 0
      %2662 = vmatprep.subr.bf16.mxu0 0
      %2663 = vmatpush1.bf16.msra.mxu0 0
      %2664 = vmatprep.subr.bf16.mxu0 0
      %2665 = vmatpush1.bf16.msra.mxu0 0
      %2666 = vmatprep.subr.bf16.mxu0 0
      %2667 = vmatpush1.bf16.msra.mxu0 0
      %2668 = vmatprep.subr.bf16.mxu0 0
      %2669 = vmatpush1.bf16.msra.mxu0 0
      %2670 = vmatprep.subr.bf16.mxu0 0
      %2671 = vmatpush1.bf16.msra.mxu0 0
      %2672 = vmatprep.mubr.bf16.mxu0 0
      %2673 = vmatmul.mubr.bf16.gmra.mrb[0].mxu0 %v2590
      %v2674 = vpop.f32.mrb[0].mxu0
      %v2675 = vadd.f32 0.0, %v2674
      %v2676 = vpop.f32.mrb[0].mxu0
      %v2677 = vpop.f32.mrb[0].mxu0
      %v2678 = vadd.f32 0.0, %v2677
      %v2679 = vpop.f32.mrb[0].mxu0
      %2680 = vmatprep.mubr.bf16.mxu0 0
      %2681 = vmatmul.mubr.bf16.gmra.mrb[0].mxu0 %v2593
      %v2682 = vpop.f32.mrb[0].mxu0
      %v2683 = vadd.f32 0.0, %v2682
      %v2684 = vpop.f32.mrb[0].mxu0
      %v2685 = vpop.f32.mrb[0].mxu0
      %v2686 = vadd.f32 0.0, %v2685
      %v2687 = vpop.f32.mrb[0].mxu0
      %2688 = vmatprep.mubr.bf16.mxu0 0
      %2689 = vmatmul.mubr.bf16.gmra.mrb[0].mxu0 %v2596
      %v2690 = vpop.f32.mrb[0].mxu0
      %v2691 = vadd.f32 0.0, %v2690
      %v2692 = vpop.f32.mrb[0].mxu0
      %v2693 = vpop.f32.mrb[0].mxu0
      %v2694 = vadd.f32 0.0, %v2693
      %v2695 = vpop.f32.mrb[0].mxu0
      %2696 = vmatprep.mubr.bf16.mxu0 0
      %2697 = vmatmul.mubr.bf16.gmra.mrb[0].mxu0 %v2599
      %v2698 = vpop.f32.mrb[0].mxu0
      %v2699 = vadd.f32 0.0, %v2698
      %v2700 = vpop.f32.mrb[0].mxu0
      %v2701 = vpop.f32.mrb[0].mxu0
      %v2702 = vadd.f32 0.0, %v2701
      %v2703 = vpop.f32.mrb[0].mxu0
      %2704 = vmatprep.mubr.bf16.mxu0 0
      %2705 = vmatmul.mubr.bf16.gmra.mrb[0].mxu0 %v2602
      %v2706 = vpop.f32.mrb[0].mxu0
      %v2707 = vadd.f32 0.0, %v2706
      %v2708 = vpop.f32.mrb[0].mxu0
      %v2709 = vpop.f32.mrb[0].mxu0
      %v2710 = vadd.f32 0.0, %v2709
      %v2711 = vpop.f32.mrb[0].mxu0
      %2712 = vmatprep.mubr.bf16.mxu0 0
      %2713 = vmatmul.mubr.bf16.gmra.mrb[0].mxu0 %v2605
      %v2714 = vpop.f32.mrb[0].mxu0
      %v2715 = vadd.f32 0.0, %v2714
      %v2716 = vpop.f32.mrb[0].mxu0
      %v2717 = vpop.f32.mrb[0].mxu0
      %v2718 = vadd.f32 0.0, %v2717
      %v2719 = vpop.f32.mrb[0].mxu0
      %2720 = vmatprep.mubr.bf16.mxu0 0
      %2721 = vmatmul.mubr.bf16.gmra.mrb[0].mxu0 %v2608
      %v2722 = vpop.f32.mrb[0].mxu0
      %v2723 = vadd.f32 0.0, %v2722
      %v2724 = vpop.f32.mrb[0].mxu0
      %v2725 = vpop.f32.mrb[0].mxu0
      %v2726 = vadd.f32 0.0, %v2725
      %v2727 = vpop.f32.mrb[0].mxu0
      %2728 = vmatprep.mubr.bf16.mxu0 0
      %2729 = vmatmul.mubr.bf16.gmra.mrb[0].mxu0 %v2611
      %v2730 = vpop.f32.mrb[0].mxu0
      %v2731 = vadd.f32 0.0, %v2730
      %v2732 = vpop.f32.mrb[0].mxu0
      %v2733 = vpop.f32.mrb[0].mxu0
      %v2734 = vadd.f32 0.0, %v2733
      %v2735 = vpop.f32.mrb[0].mxu0
      %2736 = vmatprep.mubr.bf16.mxu0 0
      %2737 = vmatmul.mubr.bf16.gmra.mrb[0].mxu0 %v2614
      %v2738 = vpop.f32.mrb[0].mxu0
      %v2739 = vadd.f32 0.0, %v2738
      %v2740 = vpop.f32.mrb[0].mxu0
      %v2741 = vpop.f32.mrb[0].mxu0
      %v2742 = vadd.f32 0.0, %v2741
      %v2743 = vpop.f32.mrb[0].mxu0
      %2744 = vmatprep.mubr.bf16.mxu0 0
      %2745 = vmatmul.mubr.bf16.gmra.mrb[0].mxu0 %v2617
      %v2746 = vpop.f32.mrb[0].mxu0
      %v2747 = vadd.f32 0.0, %v2746
      %v2748 = vpop.f32.mrb[0].mxu0
      %v2749 = vpop.f32.mrb[0].mxu0
      %v2750 = vadd.f32 0.0, %v2749
      %v2751 = vpop.f32.mrb[0].mxu0
      %2752 = vmatprep.mubr.bf16.mxu0 0
      %2753 = vmatmul.mubr.bf16.gmra.mrb[0].mxu0 %v2620
      %v2754 = vpop.f32.mrb[0].mxu0
      %v2755 = vadd.f32 0.0, %v2754
      %v2756 = vpop.f32.mrb[0].mxu0
      %v2757 = vpop.f32.mrb[0].mxu0
      %v2758 = vadd.f32 0.0, %v2757
      %v2759 = vpop.f32.mrb[0].mxu0
      %2760 = vmatprep.mubr.bf16.mxu0 0
      %2761 = vmatmul.mubr.bf16.gmra.mrb[0].mxu0 %v2623
      %v2762 = vpop.f32.mrb[0].mxu0
      %v2763 = vadd.f32 0.0, %v2762
      %v2764 = vpop.f32.mrb[0].mxu0
      %v2765 = vpop.f32.mrb[0].mxu0
      %v2766 = vadd.f32 0.0, %v2765
      %v2767 = vpop.f32.mrb[0].mxu0
      %2768 = vmatprep.mubr.bf16.mxu0 0
      %2769 = vmatmul.mubr.bf16.gmra.mrb[0].mxu0 %v2626
      %v2770 = vpop.f32.mrb[0].mxu0
      %v2771 = vadd.f32 0.0, %v2770
      %v2772 = vpop.f32.mrb[0].mxu0
      %v2773 = vpop.f32.mrb[0].mxu0
      %v2774 = vadd.f32 0.0, %v2773
      %v2775 = vpop.f32.mrb[0].mxu0
      %2776 = vmatprep.mubr.bf16.mxu0 0
      %2777 = vmatmul.mubr.bf16.gmra.mrb[0].mxu0 %v2629
      %v2778 = vpop.f32.mrb[0].mxu0
      %v2779 = vadd.f32 0.0, %v2778
      %v2780 = vpop.f32.mrb[0].mxu0
      %v2781 = vpop.f32.mrb[0].mxu0
      %v2782 = vadd.f32 0.0, %v2781
      %v2783 = vpop.f32.mrb[0].mxu0
      %2784 = vmatprep.mubr.bf16.mxu0 0
      %2785 = vmatmul.mubr.bf16.gmra.mrb[0].mxu0 %v2632
      %v2786 = vpop.f32.mrb[0].mxu0
      %v2787 = vadd.f32 0.0, %v2786
      %v2788 = vpop.f32.mrb[0].mxu0
      %v2789 = vpop.f32.mrb[0].mxu0
      %v2790 = vadd.f32 0.0, %v2789
      %v2791 = vpop.f32.mrb[0].mxu0
      %2792 = vmatprep.mubr.bf16.mxu0 0
      %2793 = vmatmul.mubr.bf16.gmra.mrb[0].mxu0 %v2635
      %v2794 = vpop.f32.mrb[0].mxu0
      %v2795 = vadd.f32 0.0, %v2794
      %v2796 = vpop.f32.mrb[0].mxu0
      %v2797 = vpop.f32.mrb[0].mxu0
      %v2798 = vadd.f32 0.0, %v2797
      %v2799 = vpop.f32.mrb[0].mxu0
      %2800 = vdwg.mxu0
      %v2801 = vld [vmem:[%s5] sm:$0x1]
      %v2803 = vlaneseq
      %v2804 = vshrl.u32 %v2803, 7
      %v2805 = vsub.s32 0, %v2804
      %v2806 = vrot.slane %v2801, %v2805
      %v2808 = vmul.f32 %v2675, %v2806
      %v2809 = vmul.f32 %v2678, %v2806
      %v2810 = vmul.f32 %v2683, %v2806
      %v2811 = vmul.f32 %v2686, %v2806
      %v2812 = vmul.f32 %v2691, %v2806
      %v2813 = vmul.f32 %v2694, %v2806
      %v2814 = vmul.f32 %v2699, %v2806
      %v2815 = vmul.f32 %v2702, %v2806
      %v2816 = vmul.f32 %v2707, %v2806
      %v2817 = vmul.f32 %v2710, %v2806
      %v2818 = vmul.f32 %v2715, %v2806
      %v2819 = vmul.f32 %v2718, %v2806
      %v2820 = vmul.f32 %v2723, %v2806
      %v2821 = vmul.f32 %v2726, %v2806
      %v2822 = vmul.f32 %v2731, %v2806
      %v2823 = vmul.f32 %v2734, %v2806
      %v2824 = vmul.f32 %v2739, %v2806
      %v2825 = vmul.f32 %v2742, %v2806
      %v2826 = vmul.f32 %v2747, %v2806
      %v2827 = vmul.f32 %v2750, %v2806
      %v2828 = vmul.f32 %v2755, %v2806
      %v2829 = vmul.f32 %v2758, %v2806
      %v2830 = vmul.f32 %v2763, %v2806
      %v2831 = vmul.f32 %v2766, %v2806
      %v2832 = vmul.f32 %v2771, %v2806
      %v2833 = vmul.f32 %v2774, %v2806
      %v2834 = vmul.f32 %v2779, %v2806
      %v2835 = vmul.f32 %v2782, %v2806
      %v2836 = vmul.f32 %v2787, %v2806
      %v2837 = vmul.f32 %v2790, %v2806
      %v2838 = vmul.f32 %v2795, %v2806
      %v2839 = vmul.f32 %v2798, %v2806
      %v2840 = vld [vmem:[%s6] sm:$0x1]
      %v2842 = vlaneseq
      %v2843 = vshrl.u32 %v2842, 7
      %v2844 = vsub.s32 0, %v2843
      %v2845 = vrot.slane %v2840, %v2844
      %v2847 = vadd.f32 %v2808, %v2845
      %v2848 = vadd.f32 %v2809, %v2845
      %v2849 = vadd.f32 %v2810, %v2845
      %v2850 = vadd.f32 %v2811, %v2845
      %v2851 = vadd.f32 %v2812, %v2845
      %v2852 = vadd.f32 %v2813, %v2845
      %v2853 = vadd.f32 %v2814, %v2845
      %v2854 = vadd.f32 %v2815, %v2845
      %v2855 = vadd.f32 %v2816, %v2845
      %v2856 = vadd.f32 %v2817, %v2845
      %v2857 = vadd.f32 %v2818, %v2845
      %v2858 = vadd.f32 %v2819, %v2845
      %v2859 = vadd.f32 %v2820, %v2845
      %v2860 = vadd.f32 %v2821, %v2845
      %v2861 = vadd.f32 %v2822, %v2845
      %v2862 = vadd.f32 %v2823, %v2845
      %v2863 = vadd.f32 %v2824, %v2845
      %v2864 = vadd.f32 %v2825, %v2845
      %v2865 = vadd.f32 %v2826, %v2845
      %v2866 = vadd.f32 %v2827, %v2845
      %v2867 = vadd.f32 %v2828, %v2845
      %v2868 = vadd.f32 %v2829, %v2845
      %v2869 = vadd.f32 %v2830, %v2845
      %v2870 = vadd.f32 %v2831, %v2845
      %v2871 = vadd.f32 %v2832, %v2845
      %v2872 = vadd.f32 %v2833, %v2845
      %v2873 = vadd.f32 %v2834, %v2845
      %v2874 = vadd.f32 %v2835, %v2845
      %v2875 = vadd.f32 %v2836, %v2845
      %v2876 = vadd.f32 %v2837, %v2845
      %v2877 = vadd.f32 %v2838, %v2845
      %v2878 = vadd.f32 %v2839, %v2845
      %v2879 = vld [vmem:[#allocation3 + $0x7] sm:$0xff]
      %v2880 = vld [vmem:[#allocation3 + $0xf] sm:$0xff]
      %v2881 = vld [vmem:[#allocation3 + $0x27] sm:$0xff]
      %v2882 = vld [vmem:[#allocation3 + $0x2f] sm:$0xff]
      %v2883 = vld [vmem:[#allocation3 + $0x47] sm:$0xff]
      %v2884 = vld [vmem:[#allocation3 + $0x4f] sm:$0xff]
      %v2885 = vld [vmem:[#allocation3 + $0x67] sm:$0xff]
      %v2886 = vld [vmem:[#allocation3 + $0x6f] sm:$0xff]
      %v2887 = vld [vmem:[#allocation3 + $0x87] sm:$0xff]
      %v2888 = vld [vmem:[#allocation3 + $0x8f] sm:$0xff]
      %v2889 = vld [vmem:[#allocation3 + $0xa7] sm:$0xff]
      %v2890 = vld [vmem:[#allocation3 + $0xaf] sm:$0xff]
      %v2891 = vld [vmem:[#allocation3 + $0xc7] sm:$0xff]
      %v2892 = vld [vmem:[#allocation3 + $0xcf] sm:$0xff]
      %v2893 = vld [vmem:[#allocation3 + $0xe7] sm:$0xff]
      %v2894 = vld [vmem:[#allocation3 + $0xef] sm:$0xff]
      %v2895 = vld [vmem:[#allocation3 + $0x107] sm:$0xff]
      %v2896 = vld [vmem:[#allocation3 + $0x10f] sm:$0xff]
      %v2897 = vld [vmem:[#allocation3 + $0x127] sm:$0xff]
      %v2898 = vld [vmem:[#allocation3 + $0x12f] sm:$0xff]
      %v2899 = vld [vmem:[#allocation3 + $0x147] sm:$0xff]
      %v2900 = vld [vmem:[#allocation3 + $0x14f] sm:$0xff]
      %v2901 = vld [vmem:[#allocation3 + $0x167] sm:$0xff]
      %v2902 = vld [vmem:[#allocation3 + $0x16f] sm:$0xff]
      %v2903 = vld [vmem:[#allocation3 + $0x187] sm:$0xff]
      %v2904 = vld [vmem:[#allocation3 + $0x18f] sm:$0xff]
      %v2905 = vld [vmem:[#allocation3 + $0x1a7] sm:$0xff]
      %v2906 = vld [vmem:[#allocation3 + $0x1af] sm:$0xff]
      %v2907 = vld [vmem:[#allocation3 + $0x1c7] sm:$0xff]
      %v2908 = vld [vmem:[#allocation3 + $0x1cf] sm:$0xff]
      %v2909 = vld [vmem:[#allocation3 + $0x1e7] sm:$0xff]
      %v2910 = vld [vmem:[#allocation3 + $0x1ef] sm:$0xff]
      %v2911 = vld [vmem:[#allocation3 + $0x8] sm:$0xff]
      %v2912 = vld [vmem:[#allocation3 + $0x10] sm:$0xff]
      %v2913 = vld [vmem:[#allocation3 + $0x28] sm:$0xff]
      %v2914 = vld [vmem:[#allocation3 + $0x30] sm:$0xff]
      %v2915 = vld [vmem:[#allocation3 + $0x48] sm:$0xff]
      %v2916 = vld [vmem:[#allocation3 + $0x50] sm:$0xff]
      %v2917 = vld [vmem:[#allocation3 + $0x68] sm:$0xff]
      %v2918 = vld [vmem:[#allocation3 + $0x70] sm:$0xff]
      %v2919 = vld [vmem:[#allocation3 + $0x88] sm:$0xff]
      %v2920 = vld [vmem:[#allocation3 + $0x90] sm:$0xff]
      %v2921 = vld [vmem:[#allocation3 + $0xa8] sm:$0xff]
      %v2922 = vld [vmem:[#allocation3 + $0xb0] sm:$0xff]
      %v2923 = vld [vmem:[#allocation3 + $0xc8] sm:$0xff]
      %v2924 = vld [vmem:[#allocation3 + $0xd0] sm:$0xff]
      %v2925 = vld [vmem:[#allocation3 + $0xe8] sm:$0xff]
      %v2926 = vld [vmem:[#allocation3 + $0xf0] sm:$0xff]
      %v2927 = vld [vmem:[#allocation3 + $0x108] sm:$0xff]
      %v2928 = vld [vmem:[#allocation3 + $0x110] sm:$0xff]
      %v2929 = vld [vmem:[#allocation3 + $0x128] sm:$0xff]
      %v2930 = vld [vmem:[#allocation3 + $0x130] sm:$0xff]
      %v2931 = vld [vmem:[#allocation3 + $0x148] sm:$0xff]
      %v2932 = vld [vmem:[#allocation3 + $0x150] sm:$0xff]
      %v2933 = vld [vmem:[#allocation3 + $0x168] sm:$0xff]
      %v2934 = vld [vmem:[#allocation3 + $0x170] sm:$0xff]
      %v2935 = vld [vmem:[#allocation3 + $0x188] sm:$0xff]
      %v2936 = vld [vmem:[#allocation3 + $0x190] sm:$0xff]
      %v2937 = vld [vmem:[#allocation3 + $0x1a8] sm:$0xff]
      %v2938 = vld [vmem:[#allocation3 + $0x1b0] sm:$0xff]
      %v2939 = vld [vmem:[#allocation3 + $0x1c8] sm:$0xff]
      %v2940 = vld [vmem:[#allocation3 + $0x1d0] sm:$0xff]
      %v2941 = vld [vmem:[#allocation3 + $0x1e8] sm:$0xff]
      %v2942 = vld [vmem:[#allocation3 + $0x1f0] sm:$0xff]
      %v2943 = vld [vmem:[#allocation3 + $0x9] sm:$0xff]
      %v2944 = vld [vmem:[#allocation3 + $0x11] sm:$0xff]
      %v2945 = vld [vmem:[#allocation3 + $0x29] sm:$0xff]
      %v2946 = vld [vmem:[#allocation3 + $0x31] sm:$0xff]
      %v2947 = vld [vmem:[#allocation3 + $0x49] sm:$0xff]
      %v2948 = vld [vmem:[#allocation3 + $0x51] sm:$0xff]
      %v2949 = vld [vmem:[#allocation3 + $0x69] sm:$0xff]
      %v2950 = vld [vmem:[#allocation3 + $0x71] sm:$0xff]
      %v2951 = vld [vmem:[#allocation3 + $0x89] sm:$0xff]
      %v2952 = vld [vmem:[#allocation3 + $0x91] sm:$0xff]
      %v2953 = vld [vmem:[#allocation3 + $0xa9] sm:$0xff]
      %v2954 = vld [vmem:[#allocation3 + $0xb1] sm:$0xff]
      %v2955 = vld [vmem:[#allocation3 + $0xc9] sm:$0xff]
      %v2956 = vld [vmem:[#allocation3 + $0xd1] sm:$0xff]
      %v2957 = vld [vmem:[#allocation3 + $0xe9] sm:$0xff]
      %v2958 = vld [vmem:[#allocation3 + $0xf1] sm:$0xff]
      %v2959 = vld [vmem:[#allocation3 + $0x109] sm:$0xff]
      %v2960 = vld [vmem:[#allocation3 + $0x111] sm:$0xff]
      %v2961 = vld [vmem:[#allocation3 + $0x129] sm:$0xff]
      %v2962 = vld [vmem:[#allocation3 + $0x131] sm:$0xff]
      %v2963 = vld [vmem:[#allocation3 + $0x149] sm:$0xff]
      %v2964 = vld [vmem:[#allocation3 + $0x151] sm:$0xff]
      %v2965 = vld [vmem:[#allocation3 + $0x169] sm:$0xff]
      %v2966 = vld [vmem:[#allocation3 + $0x171] sm:$0xff]
      %v2967 = vld [vmem:[#allocation3 + $0x189] sm:$0xff]
      %v2968 = vld [vmem:[#allocation3 + $0x191] sm:$0xff]
      %v2969 = vld [vmem:[#allocation3 + $0x1a9] sm:$0xff]
      %v2970 = vld [vmem:[#allocation3 + $0x1b1] sm:$0xff]
      %v2971 = vld [vmem:[#allocation3 + $0x1c9] sm:$0xff]
      %v2972 = vld [vmem:[#allocation3 + $0x1d1] sm:$0xff]
      %v2973 = vld [vmem:[#allocation3 + $0x1e9] sm:$0xff]
      %v2974 = vld [vmem:[#allocation3 + $0x1f1] sm:$0xff]
      %v2975 = vld [vmem:[%s2507 + $0x7] sm:$0xff]
      %v2976 = vld [vmem:[%s2507 + $0xf] sm:$0xff]
      %v2977 = vld [vmem:[%s2507 + $0x27] sm:$0xff]
      %v2978 = vld [vmem:[%s2507 + $0x2f] sm:$0xff]
      %v2979 = vld [vmem:[%s2507 + $0x47] sm:$0xff]
      %v2980 = vld [vmem:[%s2507 + $0x4f] sm:$0xff]
      %v2981 = vld [vmem:[%s2507 + $0x67] sm:$0xff]
      %v2982 = vld [vmem:[%s2507 + $0x6f] sm:$0xff]
      %v2983 = vld [vmem:[%s2507 + $0x87] sm:$0xff]
      %v2984 = vld [vmem:[%s2507 + $0x8f] sm:$0xff]
      %v2985 = vld [vmem:[%s2507 + $0xa7] sm:$0xff]
      %v2986 = vld [vmem:[%s2507 + $0xaf] sm:$0xff]
      %v2987 = vld [vmem:[%s2507 + $0xc7] sm:$0xff]
      %v2988 = vld [vmem:[%s2507 + $0xcf] sm:$0xff]
      %v2989 = vld [vmem:[%s2507 + $0xe7] sm:$0xff]
      %v2990 = vld [vmem:[%s2507 + $0xef] sm:$0xff]
      %v2991 = vld [vmem:[%s2507 + $0x107] sm:$0xff]
      %v2992 = vld [vmem:[%s2507 + $0x10f] sm:$0xff]
      %v2993 = vld [vmem:[%s2507 + $0x127] sm:$0xff]
      %v2994 = vld [vmem:[%s2507 + $0x12f] sm:$0xff]
      %v2995 = vld [vmem:[%s2507 + $0x147] sm:$0xff]
      %v2996 = vld [vmem:[%s2507 + $0x14f] sm:$0xff]
      %v2997 = vld [vmem:[%s2507 + $0x167] sm:$0xff]
      %v2998 = vld [vmem:[%s2507 + $0x16f] sm:$0xff]
      %v2999 = vld [vmem:[%s2507 + $0x187] sm:$0xff]
      %v3000 = vld [vmem:[%s2507 + $0x18f] sm:$0xff]
      %v3001 = vld [vmem:[%s2507 + $0x1a7] sm:$0xff]
      %v3002 = vld [vmem:[%s2507 + $0x1af] sm:$0xff]
      %v3003 = vld [vmem:[%s2507 + $0x1c7] sm:$0xff]
      %v3004 = vld [vmem:[%s2507 + $0x1cf] sm:$0xff]
      %v3005 = vld [vmem:[%s2507 + $0x1e7] sm:$0xff]
      %v3006 = vld [vmem:[%s2507 + $0x1ef] sm:$0xff]
      %v3007 = vld [vmem:[%s2507 + $0x8] sm:$0xff]
      %v3008 = vld [vmem:[%s2507 + $0x10] sm:$0xff]
      %v3009 = vld [vmem:[%s2507 + $0x28] sm:$0xff]
      %v3010 = vld [vmem:[%s2507 + $0x30] sm:$0xff]
      %v3011 = vld [vmem:[%s2507 + $0x48] sm:$0xff]
      %v3012 = vld [vmem:[%s2507 + $0x50] sm:$0xff]
      %v3013 = vld [vmem:[%s2507 + $0x68] sm:$0xff]
      %v3014 = vld [vmem:[%s2507 + $0x70] sm:$0xff]
      %v3015 = vld [vmem:[%s2507 + $0x88] sm:$0xff]
      %v3016 = vld [vmem:[%s2507 + $0x90] sm:$0xff]
      %v3017 = vld [vmem:[%s2507 + $0xa8] sm:$0xff]
      %v3018 = vld [vmem:[%s2507 + $0xb0] sm:$0xff]
      %v3019 = vld [vmem:[%s2507 + $0xc8] sm:$0xff]
      %v3020 = vld [vmem:[%s2507 + $0xd0] sm:$0xff]
      %v3021 = vld [vmem:[%s2507 + $0xe8] sm:$0xff]
      %v3022 = vld [vmem:[%s2507 + $0xf0] sm:$0xff]
      %v3023 = vld [vmem:[%s2507 + $0x108] sm:$0xff]
      %v3024 = vld [vmem:[%s2507 + $0x110] sm:$0xff]
      %v3025 = vld [vmem:[%s2507 + $0x128] sm:$0xff]
      %v3026 = vld [vmem:[%s2507 + $0x130] sm:$0xff]
      %v3027 = vld [vmem:[%s2507 + $0x148] sm:$0xff]
      %v3028 = vld [vmem:[%s2507 + $0x150] sm:$0xff]
      %v3029 = vld [vmem:[%s2507 + $0x168] sm:$0xff]
      %v3030 = vld [vmem:[%s2507 + $0x170] sm:$0xff]
      %v3031 = vld [vmem:[%s2507 + $0x188] sm:$0xff]
      %v3032 = vld [vmem:[%s2507 + $0x190] sm:$0xff]
      %v3033 = vld [vmem:[%s2507 + $0x1a8] sm:$0xff]
      %v3034 = vld [vmem:[%s2507 + $0x1b0] sm:$0xff]
      %v3035 = vld [vmem:[%s2507 + $0x1c8] sm:$0xff]
      %v3036 = vld [vmem:[%s2507 + $0x1d0] sm:$0xff]
      %v3037 = vld [vmem:[%s2507 + $0x1e8] sm:$0xff]
      %v3038 = vld [vmem:[%s2507 + $0x1f0] sm:$0xff]
      %v3039 = vld [vmem:[%s2507 + $0x9] sm:$0xff]
      %v3040 = vld [vmem:[%s2507 + $0x11] sm:$0xff]
      %v3041 = vld [vmem:[%s2507 + $0x29] sm:$0xff]
      %v3042 = vld [vmem:[%s2507 + $0x31] sm:$0xff]
      %v3043 = vld [vmem:[%s2507 + $0x49] sm:$0xff]
      %v3044 = vld [vmem:[%s2507 + $0x51] sm:$0xff]
      %v3045 = vld [vmem:[%s2507 + $0x69] sm:$0xff]
      %v3046 = vld [vmem:[%s2507 + $0x71] sm:$0xff]
      %v3047 = vld [vmem:[%s2507 + $0x89] sm:$0xff]
      %v3048 = vld [vmem:[%s2507 + $0x91] sm:$0xff]
      %v3049 = vld [vmem:[%s2507 + $0xa9] sm:$0xff]
      %v3050 = vld [vmem:[%s2507 + $0xb1] sm:$0xff]
      %v3051 = vld [vmem:[%s2507 + $0xc9] sm:$0xff]
      %v3052 = vld [vmem:[%s2507 + $0xd1] sm:$0xff]
      %v3053 = vld [vmem:[%s2507 + $0xe9] sm:$0xff]
      %v3054 = vld [vmem:[%s2507 + $0xf1] sm:$0xff]
      %v3055 = vld [vmem:[%s2507 + $0x109] sm:$0xff]
      %v3056 = vld [vmem:[%s2507 + $0x111] sm:$0xff]
      %v3057 = vld [vmem:[%s2507 + $0x129] sm:$0xff]
      %v3058 = vld [vmem:[%s2507 + $0x131] sm:$0xff]
      %v3059 = vld [vmem:[%s2507 + $0x149] sm:$0xff]
      %v3060 = vld [vmem:[%s2507 + $0x151] sm:$0xff]
      %v3061 = vld [vmem:[%s2507 + $0x169] sm:$0xff]
      %v3062 = vld [vmem:[%s2507 + $0x171] sm:$0xff]
      %v3063 = vld [vmem:[%s2507 + $0x189] sm:$0xff]
      %v3064 = vld [vmem:[%s2507 + $0x191] sm:$0xff]
      %v3065 = vld [vmem:[%s2507 + $0x1a9] sm:$0xff]
      %v3066 = vld [vmem:[%s2507 + $0x1b1] sm:$0xff]
      %v3067 = vld [vmem:[%s2507 + $0x1c9] sm:$0xff]
      %v3068 = vld [vmem:[%s2507 + $0x1d1] sm:$0xff]
      %v3069 = vld [vmem:[%s2507 + $0x1e9] sm:$0xff]
      %v3070 = vld [vmem:[%s2507 + $0x1f1] sm:$0xff]
      %s3071 = scalar_lea.vmem [#allocation3], 64
      %v3072 = vld [vmem:[%s3071 + $0x7] sm:$0xff]
      %v3073 = vld [vmem:[%s3071 + $0xf] sm:$0xff]
      %v3074 = vld [vmem:[%s3071 + $0x27] sm:$0xff]
      %v3075 = vld [vmem:[%s3071 + $0x2f] sm:$0xff]
      %v3076 = vld [vmem:[%s3071 + $0x47] sm:$0xff]
      %v3077 = vld [vmem:[%s3071 + $0x4f] sm:$0xff]
      %v3078 = vld [vmem:[%s3071 + $0x67] sm:$0xff]
      %v3079 = vld [vmem:[%s3071 + $0x6f] sm:$0xff]
      %v3080 = vld [vmem:[%s3071 + $0x87] sm:$0xff]
      %v3081 = vld [vmem:[%s3071 + $0x8f] sm:$0xff]
      %v3082 = vld [vmem:[%s3071 + $0xa7] sm:$0xff]
      %v3083 = vld [vmem:[%s3071 + $0xaf] sm:$0xff]
      %v3084 = vld [vmem:[%s3071 + $0xc7] sm:$0xff]
      %v3085 = vld [vmem:[%s3071 + $0xcf] sm:$0xff]
      %v3086 = vld [vmem:[%s3071 + $0xe7] sm:$0xff]
      %v3087 = vld [vmem:[%s3071 + $0xef] sm:$0xff]
      %v3088 = vld [vmem:[%s3071 + $0x107] sm:$0xff]
      %v3089 = vld [vmem:[%s3071 + $0x10f] sm:$0xff]
      %v3090 = vld [vmem:[%s3071 + $0x127] sm:$0xff]
      %v3091 = vld [vmem:[%s3071 + $0x12f] sm:$0xff]
      %v3092 = vld [vmem:[%s3071 + $0x147] sm:$0xff]
      %v3093 = vld [vmem:[%s3071 + $0x14f] sm:$0xff]
      %v3094 = vld [vmem:[%s3071 + $0x167] sm:$0xff]
      %v3095 = vld [vmem:[%s3071 + $0x16f] sm:$0xff]
      %v3096 = vld [vmem:[%s3071 + $0x187] sm:$0xff]
      %v3097 = vld [vmem:[%s3071 + $0x18f] sm:$0xff]
      %v3098 = vld [vmem:[%s3071 + $0x1a7] sm:$0xff]
      %v3099 = vld [vmem:[%s3071 + $0x1af] sm:$0xff]
      %v3100 = vld [vmem:[%s3071 + $0x1c7] sm:$0xff]
      %v3101 = vld [vmem:[%s3071 + $0x1cf] sm:$0xff]
      %v3102 = vld [vmem:[%s3071 + $0x1e7] sm:$0xff]
      %v3103 = vld [vmem:[%s3071 + $0x1ef] sm:$0xff]
      %v3104 = vld [vmem:[%s3071 + $0x8] sm:$0xff]
      %v3105 = vld [vmem:[%s3071 + $0x10] sm:$0xff]
      %v3106 = vld [vmem:[%s3071 + $0x28] sm:$0xff]
      %v3107 = vld [vmem:[%s3071 + $0x30] sm:$0xff]
      %v3108 = vld [vmem:[%s3071 + $0x48] sm:$0xff]
      %v3109 = vld [vmem:[%s3071 + $0x50] sm:$0xff]
      %v3110 = vld [vmem:[%s3071 + $0x68] sm:$0xff]
      %v3111 = vld [vmem:[%s3071 + $0x70] sm:$0xff]
      %v3112 = vld [vmem:[%s3071 + $0x88] sm:$0xff]
      %v3113 = vld [vmem:[%s3071 + $0x90] sm:$0xff]
      %v3114 = vld [vmem:[%s3071 + $0xa8] sm:$0xff]
      %v3115 = vld [vmem:[%s3071 + $0xb0] sm:$0xff]
      %v3116 = vld [vmem:[%s3071 + $0xc8] sm:$0xff]
      %v3117 = vld [vmem:[%s3071 + $0xd0] sm:$0xff]
      %v3118 = vld [vmem:[%s3071 + $0xe8] sm:$0xff]
      %v3119 = vld [vmem:[%s3071 + $0xf0] sm:$0xff]
      %v3120 = vld [vmem:[%s3071 + $0x108] sm:$0xff]
      %v3121 = vld [vmem:[%s3071 + $0x110] sm:$0xff]
      %v3122 = vld [vmem:[%s3071 + $0x128] sm:$0xff]
      %v3123 = vld [vmem:[%s3071 + $0x130] sm:$0xff]
      %v3124 = vld [vmem:[%s3071 + $0x148] sm:$0xff]
      %v3125 = vld [vmem:[%s3071 + $0x150] sm:$0xff]
      %v3126 = vld [vmem:[%s3071 + $0x168] sm:$0xff]
      %v3127 = vld [vmem:[%s3071 + $0x170] sm:$0xff]
      %v3128 = vld [vmem:[%s3071 + $0x188] sm:$0xff]
      %v3129 = vld [vmem:[%s3071 + $0x190] sm:$0xff]
      %v3130 = vld [vmem:[%s3071 + $0x1a8] sm:$0xff]
      %v3131 = vld [vmem:[%s3071 + $0x1b0] sm:$0xff]
      %v3132 = vld [vmem:[%s3071 + $0x1c8] sm:$0xff]
      %v3133 = vld [vmem:[%s3071 + $0x1d0] sm:$0xff]
      %v3134 = vld [vmem:[%s3071 + $0x1e8] sm:$0xff]
      %v3135 = vld [vmem:[%s3071 + $0x1f0] sm:$0xff]
      %v3136 = vld [vmem:[%s3071 + $0x9] sm:$0xff]
      %v3137 = vld [vmem:[%s3071 + $0x11] sm:$0xff]
      %v3138 = vld [vmem:[%s3071 + $0x29] sm:$0xff]
      %v3139 = vld [vmem:[%s3071 + $0x31] sm:$0xff]
      %v3140 = vld [vmem:[%s3071 + $0x49] sm:$0xff]
      %v3141 = vld [vmem:[%s3071 + $0x51] sm:$0xff]
      %v3142 = vld [vmem:[%s3071 + $0x69] sm:$0xff]
      %v3143 = vld [vmem:[%s3071 + $0x71] sm:$0xff]
      %v3144 = vld [vmem:[%s3071 + $0x89] sm:$0xff]
      %v3145 = vld [vmem:[%s3071 + $0x91] sm:$0xff]
      %v3146 = vld [vmem:[%s3071 + $0xa9] sm:$0xff]
      %v3147 = vld [vmem:[%s3071 + $0xb1] sm:$0xff]
      %v3148 = vld [vmem:[%s3071 + $0xc9] sm:$0xff]
      %v3149 = vld [vmem:[%s3071 + $0xd1] sm:$0xff]
      %v3150 = vld [vmem:[%s3071 + $0xe9] sm:$0xff]
      %v3151 = vld [vmem:[%s3071 + $0xf1] sm:$0xff]
      %v3152 = vld [vmem:[%s3071 + $0x109] sm:$0xff]
      %v3153 = vld [vmem:[%s3071 + $0x111] sm:$0xff]
      %v3154 = vld [vmem:[%s3071 + $0x129] sm:$0xff]
      %v3155 = vld [vmem:[%s3071 + $0x131] sm:$0xff]
      %v3156 = vld [vmem:[%s3071 + $0x149] sm:$0xff]
      %v3157 = vld [vmem:[%s3071 + $0x151] sm:$0xff]
      %v3158 = vld [vmem:[%s3071 + $0x169] sm:$0xff]
      %v3159 = vld [vmem:[%s3071 + $0x171] sm:$0xff]
      %v3160 = vld [vmem:[%s3071 + $0x189] sm:$0xff]
      %v3161 = vld [vmem:[%s3071 + $0x191] sm:$0xff]
      %v3162 = vld [vmem:[%s3071 + $0x1a9] sm:$0xff]
      %v3163 = vld [vmem:[%s3071 + $0x1b1] sm:$0xff]
      %v3164 = vld [vmem:[%s3071 + $0x1c9] sm:$0xff]
      %v3165 = vld [vmem:[%s3071 + $0x1d1] sm:$0xff]
      %v3166 = vld [vmem:[%s3071 + $0x1e9] sm:$0xff]
      %v3167 = vld [vmem:[%s3071 + $0x1f1] sm:$0xff]
      %3200 = vrot.lane.b32.xlu0 %v2911, 8
      %v3201 = vpop.permute.xlu0 %3200
      %3202 = vrot.lane.b32.xlu0 %v2912, 8
      %v3203 = vpop.permute.xlu0 %3202
      %3204 = vrot.lane.b32.xlu0 %v2913, 8
      %v3205 = vpop.permute.xlu0 %3204
      %3206 = vrot.lane.b32.xlu0 %v2914, 8
      %v3207 = vpop.permute.xlu0 %3206
      %3208 = vrot.lane.b32.xlu0 %v2915, 8
      %v3209 = vpop.permute.xlu0 %3208
      %3210 = vrot.lane.b32.xlu0 %v2916, 8
      %v3211 = vpop.permute.xlu0 %3210
      %3212 = vrot.lane.b32.xlu0 %v2917, 8
      %v3213 = vpop.permute.xlu0 %3212
      %3214 = vrot.lane.b32.xlu0 %v2918, 8
      %v3215 = vpop.permute.xlu0 %3214
      %3216 = vrot.lane.b32.xlu0 %v2919, 8
      %v3217 = vpop.permute.xlu0 %3216
      %3218 = vrot.lane.b32.xlu0 %v2920, 8
      %v3219 = vpop.permute.xlu0 %3218
      %3220 = vrot.lane.b32.xlu0 %v2921, 8
      %v3221 = vpop.permute.xlu0 %3220
      %3222 = vrot.lane.b32.xlu0 %v2922, 8
      %v3223 = vpop.permute.xlu0 %3222
      %3224 = vrot.lane.b32.xlu0 %v2923, 8
      %v3225 = vpop.permute.xlu0 %3224
      %3226 = vrot.lane.b32.xlu0 %v2924, 8
      %v3227 = vpop.permute.xlu0 %3226
      %3228 = vrot.lane.b32.xlu0 %v2925, 8
      %v3229 = vpop.permute.xlu0 %3228
      %3230 = vrot.lane.b32.xlu0 %v2926, 8
      %v3231 = vpop.permute.xlu0 %3230
      %3232 = vrot.lane.b32.xlu0 %v2927, 8
      %v3233 = vpop.permute.xlu0 %3232
      %3234 = vrot.lane.b32.xlu0 %v2928, 8
      %v3235 = vpop.permute.xlu0 %3234
      %3236 = vrot.lane.b32.xlu0 %v2929, 8
      %v3237 = vpop.permute.xlu0 %3236
      %3238 = vrot.lane.b32.xlu0 %v2930, 8
      %v3239 = vpop.permute.xlu0 %3238
      %3240 = vrot.lane.b32.xlu0 %v2931, 8
      %v3241 = vpop.permute.xlu0 %3240
      %3242 = vrot.lane.b32.xlu0 %v2932, 8
      %v3243 = vpop.permute.xlu0 %3242
      %3244 = vrot.lane.b32.xlu0 %v2933, 8
      %v3245 = vpop.permute.xlu0 %3244
      %3246 = vrot.lane.b32.xlu0 %v2934, 8
      %v3247 = vpop.permute.xlu0 %3246
      %3248 = vrot.lane.b32.xlu0 %v2935, 8
      %v3249 = vpop.permute.xlu0 %3248
      %3250 = vrot.lane.b32.xlu0 %v2936, 8
      %v3251 = vpop.permute.xlu0 %3250
      %3252 = vrot.lane.b32.xlu0 %v2937, 8
      %v3253 = vpop.permute.xlu0 %3252
      %3254 = vrot.lane.b32.xlu0 %v2938, 8
      %v3255 = vpop.permute.xlu0 %3254
      %3256 = vrot.lane.b32.xlu0 %v2939, 8
      %v3257 = vpop.permute.xlu0 %3256
      %3258 = vrot.lane.b32.xlu0 %v2940, 8
      %v3259 = vpop.permute.xlu0 %3258
      %3260 = vrot.lane.b32.xlu0 %v2941, 8
      %v3261 = vpop.permute.xlu0 %3260
      %3262 = vrot.lane.b32.xlu0 %v2942, 8
      %v3263 = vpop.permute.xlu0 %3262
      %3328 = vrot.lane.b32.xlu0 %v2943, 16
      %v3329 = vpop.permute.xlu0 %3328
      %3330 = vrot.lane.b32.xlu0 %v2944, 16
      %v3331 = vpop.permute.xlu0 %3330
      %3332 = vrot.lane.b32.xlu0 %v2945, 16
      %v3333 = vpop.permute.xlu0 %3332
      %3334 = vrot.lane.b32.xlu0 %v2946, 16
      %v3335 = vpop.permute.xlu0 %3334
      %3336 = vrot.lane.b32.xlu0 %v2947, 16
      %v3337 = vpop.permute.xlu0 %3336
      %3338 = vrot.lane.b32.xlu0 %v2948, 16
      %v3339 = vpop.permute.xlu0 %3338
      %3340 = vrot.lane.b32.xlu0 %v2949, 16
      %v3341 = vpop.permute.xlu0 %3340
      %3342 = vrot.lane.b32.xlu0 %v2950, 16
      %v3343 = vpop.permute.xlu0 %3342
      %3344 = vrot.lane.b32.xlu0 %v2951, 16
      %v3345 = vpop.permute.xlu0 %3344
      %3346 = vrot.lane.b32.xlu0 %v2952, 16
      %v3347 = vpop.permute.xlu0 %3346
      %3348 = vrot.lane.b32.xlu0 %v2953, 16
      %v3349 = vpop.permute.xlu0 %3348
      %3350 = vrot.lane.b32.xlu0 %v2954, 16
      %v3351 = vpop.permute.xlu0 %3350
      %3352 = vrot.lane.b32.xlu0 %v2955, 16
      %v3353 = vpop.permute.xlu0 %3352
      %3354 = vrot.lane.b32.xlu0 %v2956, 16
      %v3355 = vpop.permute.xlu0 %3354
      %3356 = vrot.lane.b32.xlu0 %v2957, 16
      %v3357 = vpop.permute.xlu0 %3356
      %3358 = vrot.lane.b32.xlu0 %v2958, 16
      %v3359 = vpop.permute.xlu0 %3358
      %3360 = vrot.lane.b32.xlu0 %v2959, 16
      %v3361 = vpop.permute.xlu0 %3360
      %3362 = vrot.lane.b32.xlu0 %v2960, 16
      %v3363 = vpop.permute.xlu0 %3362
      %3364 = vrot.lane.b32.xlu0 %v2961, 16
      %v3365 = vpop.permute.xlu0 %3364
      %3366 = vrot.lane.b32.xlu0 %v2962, 16
      %v3367 = vpop.permute.xlu0 %3366
      %3368 = vrot.lane.b32.xlu0 %v2963, 16
      %v3369 = vpop.permute.xlu0 %3368
      %3370 = vrot.lane.b32.xlu0 %v2964, 16
      %v3371 = vpop.permute.xlu0 %3370
      %3372 = vrot.lane.b32.xlu0 %v2965, 16
      %v3373 = vpop.permute.xlu0 %3372
      %3374 = vrot.lane.b32.xlu0 %v2966, 16
      %v3375 = vpop.permute.xlu0 %3374
      %3376 = vrot.lane.b32.xlu0 %v2967, 16
      %v3377 = vpop.permute.xlu0 %3376
      %3378 = vrot.lane.b32.xlu0 %v2968, 16
      %v3379 = vpop.permute.xlu0 %3378
      %3380 = vrot.lane.b32.xlu0 %v2969, 16
      %v3381 = vpop.permute.xlu0 %3380
      %3382 = vrot.lane.b32.xlu0 %v2970, 16
      %v3383 = vpop.permute.xlu0 %3382
      %3384 = vrot.lane.b32.xlu0 %v2971, 16
      %v3385 = vpop.permute.xlu0 %3384
      %3386 = vrot.lane.b32.xlu0 %v2972, 16
      %v3387 = vpop.permute.xlu0 %3386
      %3388 = vrot.lane.b32.xlu0 %v2973, 16
      %v3389 = vpop.permute.xlu0 %3388
      %3390 = vrot.lane.b32.xlu0 %v2974, 16
      %v3391 = vpop.permute.xlu0 %3390
      %3456 = vrot.lane.b32.xlu0 %v2975, 24
      %v3457 = vpop.permute.xlu0 %3456
      %3458 = vrot.lane.b32.xlu0 %v2976, 24
      %v3459 = vpop.permute.xlu0 %3458
      %3460 = vrot.lane.b32.xlu0 %v2977, 24
      %v3461 = vpop.permute.xlu0 %3460
      %3462 = vrot.lane.b32.xlu0 %v2978, 24
      %v3463 = vpop.permute.xlu0 %3462
      %3464 = vrot.lane.b32.xlu0 %v2979, 24
      %v3465 = vpop.permute.xlu0 %3464
      %3466 = vrot.lane.b32.xlu0 %v2980, 24
      %v3467 = vpop.permute.xlu0 %3466
      %3468 = vrot.lane.b32.xlu0 %v2981, 24
      %v3469 = vpop.permute.xlu0 %3468
      %3470 = vrot.lane.b32.xlu0 %v2982, 24
      %v3471 = vpop.permute.xlu0 %3470
      %3472 = vrot.lane.b32.xlu0 %v2983, 24
      %v3473 = vpop.permute.xlu0 %3472
      %3474 = vrot.lane.b32.xlu0 %v2984, 24
      %v3475 = vpop.permute.xlu0 %3474
      %3476 = vrot.lane.b32.xlu0 %v2985, 24
      %v3477 = vpop.permute.xlu0 %3476
      %3478 = vrot.lane.b32.xlu0 %v2986, 24
      %v3479 = vpop.permute.xlu0 %3478
      %3480 = vrot.lane.b32.xlu0 %v2987, 24
      %v3481 = vpop.permute.xlu0 %3480
      %3482 = vrot.lane.b32.xlu0 %v2988, 24
      %v3483 = vpop.permute.xlu0 %3482
      %3484 = vrot.lane.b32.xlu0 %v2989, 24
      %v3485 = vpop.permute.xlu0 %3484
      %3486 = vrot.lane.b32.xlu0 %v2990, 24
      %v3487 = vpop.permute.xlu0 %3486
      %3488 = vrot.lane.b32.xlu0 %v2991, 24
      %v3489 = vpop.permute.xlu0 %3488
      %3490 = vrot.lane.b32.xlu0 %v2992, 24
      %v3491 = vpop.permute.xlu0 %3490
      %3492 = vrot.lane.b32.xlu0 %v2993, 24
      %v3493 = vpop.permute.xlu0 %3492
      %3494 = vrot.lane.b32.xlu0 %v2994, 24
      %v3495 = vpop.permute.xlu0 %3494
      %3496 = vrot.lane.b32.xlu0 %v2995, 24
      %v3497 = vpop.permute.xlu0 %3496
      %3498 = vrot.lane.b32.xlu0 %v2996, 24
      %v3499 = vpop.permute.xlu0 %3498
      %3500 = vrot.lane.b32.xlu0 %v2997, 24
      %v3501 = vpop.permute.xlu0 %3500
      %3502 = vrot.lane.b32.xlu0 %v2998, 24
      %v3503 = vpop.permute.xlu0 %3502
      %3504 = vrot.lane.b32.xlu0 %v2999, 24
      %v3505 = vpop.permute.xlu0 %3504
      %3506 = vrot.lane.b32.xlu0 %v3000, 24
      %v3507 = vpop.permute.xlu0 %3506
      %3508 = vrot.lane.b32.xlu0 %v3001, 24
      %v3509 = vpop.permute.xlu0 %3508
      %3510 = vrot.lane.b32.xlu0 %v3002, 24
      %v3511 = vpop.permute.xlu0 %3510
      %3512 = vrot.lane.b32.xlu0 %v3003, 24
      %v3513 = vpop.permute.xlu0 %3512
      %3514 = vrot.lane.b32.xlu0 %v3004, 24
      %v3515 = vpop.permute.xlu0 %3514
      %3516 = vrot.lane.b32.xlu0 %v3005, 24
      %v3517 = vpop.permute.xlu0 %3516
      %3518 = vrot.lane.b32.xlu0 %v3006, 24
      %v3519 = vpop.permute.xlu0 %3518
      %3584 = vrot.lane.b32.xlu0 %v3007, 32
      %v3585 = vpop.permute.xlu0 %3584
      %3586 = vrot.lane.b32.xlu0 %v3008, 32
      %v3587 = vpop.permute.xlu0 %3586
      %3588 = vrot.lane.b32.xlu0 %v3009, 32
      %v3589 = vpop.permute.xlu0 %3588
      %3590 = vrot.lane.b32.xlu0 %v3010, 32
      %v3591 = vpop.permute.xlu0 %3590
      %3592 = vrot.lane.b32.xlu0 %v3011, 32
      %v3593 = vpop.permute.xlu0 %3592
      %3594 = vrot.lane.b32.xlu0 %v3012, 32
      %v3595 = vpop.permute.xlu0 %3594
      %3596 = vrot.lane.b32.xlu0 %v3013, 32
      %v3597 = vpop.permute.xlu0 %3596
      %3598 = vrot.lane.b32.xlu0 %v3014, 32
      %v3599 = vpop.permute.xlu0 %3598
      %3600 = vrot.lane.b32.xlu0 %v3015, 32
      %v3601 = vpop.permute.xlu0 %3600
      %3602 = vrot.lane.b32.xlu0 %v3016, 32
      %v3603 = vpop.permute.xlu0 %3602
      %3604 = vrot.lane.b32.xlu0 %v3017, 32
      %v3605 = vpop.permute.xlu0 %3604
      %3606 = vrot.lane.b32.xlu0 %v3018, 32
      %v3607 = vpop.permute.xlu0 %3606
      %3608 = vrot.lane.b32.xlu0 %v3019, 32
      %v3609 = vpop.permute.xlu0 %3608
      %3610 = vrot.lane.b32.xlu0 %v3020, 32
      %v3611 = vpop.permute.xlu0 %3610
      %3612 = vrot.lane.b32.xlu0 %v3021, 32
      %v3613 = vpop.permute.xlu0 %3612
      %3614 = vrot.lane.b32.xlu0 %v3022, 32
      %v3615 = vpop.permute.xlu0 %3614
      %3616 = vrot.lane.b32.xlu0 %v3023, 32
      %v3617 = vpop.permute.xlu0 %3616
      %3618 = vrot.lane.b32.xlu0 %v3024, 32
      %v3619 = vpop.permute.xlu0 %3618
      %3620 = vrot.lane.b32.xlu0 %v3025, 32
      %v3621 = vpop.permute.xlu0 %3620
      %3622 = vrot.lane.b32.xlu0 %v3026, 32
      %v3623 = vpop.permute.xlu0 %3622
      %3624 = vrot.lane.b32.xlu0 %v3027, 32
      %v3625 = vpop.permute.xlu0 %3624
      %3626 = vrot.lane.b32.xlu0 %v3028, 32
      %v3627 = vpop.permute.xlu0 %3626
      %3628 = vrot.lane.b32.xlu0 %v3029, 32
      %v3629 = vpop.permute.xlu0 %3628
      %3630 = vrot.lane.b32.xlu0 %v3030, 32
      %v3631 = vpop.permute.xlu0 %3630
      %3632 = vrot.lane.b32.xlu0 %v3031, 32
      %v3633 = vpop.permute.xlu0 %3632
      %3634 = vrot.lane.b32.xlu0 %v3032, 32
      %v3635 = vpop.permute.xlu0 %3634
      %3636 = vrot.lane.b32.xlu0 %v3033, 32
      %v3637 = vpop.permute.xlu0 %3636
      %3638 = vrot.lane.b32.xlu0 %v3034, 32
      %v3639 = vpop.permute.xlu0 %3638
      %3640 = vrot.lane.b32.xlu0 %v3035, 32
      %v3641 = vpop.permute.xlu0 %3640
      %3642 = vrot.lane.b32.xlu0 %v3036, 32
      %v3643 = vpop.permute.xlu0 %3642
      %3644 = vrot.lane.b32.xlu0 %v3037, 32
      %v3645 = vpop.permute.xlu0 %3644
      %3646 = vrot.lane.b32.xlu0 %v3038, 32
      %v3647 = vpop.permute.xlu0 %3646
      %3712 = vrot.lane.b32.xlu0 %v3039, 40
      %v3713 = vpop.permute.xlu0 %3712
      %3714 = vrot.lane.b32.xlu0 %v3040, 40
      %v3715 = vpop.permute.xlu0 %3714
      %3716 = vrot.lane.b32.xlu0 %v3041, 40
      %v3717 = vpop.permute.xlu0 %3716
      %3718 = vrot.lane.b32.xlu0 %v3042, 40
      %v3719 = vpop.permute.xlu0 %3718
      %3720 = vrot.lane.b32.xlu0 %v3043, 40
      %v3721 = vpop.permute.xlu0 %3720
      %3722 = vrot.lane.b32.xlu0 %v3044, 40
      %v3723 = vpop.permute.xlu0 %3722
      %3724 = vrot.lane.b32.xlu0 %v3045, 40
      %v3725 = vpop.permute.xlu0 %3724
      %3726 = vrot.lane.b32.xlu0 %v3046, 40
      %v3727 = vpop.permute.xlu0 %3726
      %3728 = vrot.lane.b32.xlu0 %v3047, 40
      %v3729 = vpop.permute.xlu0 %3728
      %3730 = vrot.lane.b32.xlu0 %v3048, 40
      %v3731 = vpop.permute.xlu0 %3730
      %3732 = vrot.lane.b32.xlu0 %v3049, 40
      %v3733 = vpop.permute.xlu0 %3732
      %3734 = vrot.lane.b32.xlu0 %v3050, 40
      %v3735 = vpop.permute.xlu0 %3734
      %3736 = vrot.lane.b32.xlu0 %v3051, 40
      %v3737 = vpop.permute.xlu0 %3736
      %3738 = vrot.lane.b32.xlu0 %v3052, 40
      %v3739 = vpop.permute.xlu0 %3738
      %3740 = vrot.lane.b32.xlu0 %v3053, 40
      %v3741 = vpop.permute.xlu0 %3740
      %3742 = vrot.lane.b32.xlu0 %v3054, 40
      %v3743 = vpop.permute.xlu0 %3742
      %3744 = vrot.lane.b32.xlu0 %v3055, 40
      %v3745 = vpop.permute.xlu0 %3744
      %3746 = vrot.lane.b32.xlu0 %v3056, 40
      %v3747 = vpop.permute.xlu0 %3746
      %3748 = vrot.lane.b32.xlu0 %v3057, 40
      %v3749 = vpop.permute.xlu0 %3748
      %3750 = vrot.lane.b32.xlu0 %v3058, 40
      %v3751 = vpop.permute.xlu0 %3750
      %3752 = vrot.lane.b32.xlu0 %v3059, 40
      %v3753 = vpop.permute.xlu0 %3752
      %3754 = vrot.lane.b32.xlu0 %v3060, 40
      %v3755 = vpop.permute.xlu0 %3754
      %3756 = vrot.lane.b32.xlu0 %v3061, 40
      %v3757 = vpop.permute.xlu0 %3756
      %3758 = vrot.lane.b32.xlu0 %v3062, 40
      %v3759 = vpop.permute.xlu0 %3758
      %3760 = vrot.lane.b32.xlu0 %v3063, 40
      %v3761 = vpop.permute.xlu0 %3760
      %3762 = vrot.lane.b32.xlu0 %v3064, 40
      %v3763 = vpop.permute.xlu0 %3762
      %3764 = vrot.lane.b32.xlu0 %v3065, 40
      %v3765 = vpop.permute.xlu0 %3764
      %3766 = vrot.lane.b32.xlu0 %v3066, 40
      %v3767 = vpop.permute.xlu0 %3766
      %3768 = vrot.lane.b32.xlu0 %v3067, 40
      %v3769 = vpop.permute.xlu0 %3768
      %3770 = vrot.lane.b32.xlu0 %v3068, 40
      %v3771 = vpop.permute.xlu0 %3770
      %3772 = vrot.lane.b32.xlu0 %v3069, 40
      %v3773 = vpop.permute.xlu0 %3772
      %3774 = vrot.lane.b32.xlu0 %v3070, 40
      %v3775 = vpop.permute.xlu0 %3774
      %3840 = vrot.lane.b32.xlu0 %v3072, 48
      %v3841 = vpop.permute.xlu0 %3840
      %3842 = vrot.lane.b32.xlu0 %v3073, 48
      %v3843 = vpop.permute.xlu0 %3842
      %3844 = vrot.lane.b32.xlu0 %v3074, 48
      %v3845 = vpop.permute.xlu0 %3844
      %3846 = vrot.lane.b32.xlu0 %v3075, 48
      %v3847 = vpop.permute.xlu0 %3846
      %3848 = vrot.lane.b32.xlu0 %v3076, 48
      %v3849 = vpop.permute.xlu0 %3848
      %3850 = vrot.lane.b32.xlu0 %v3077, 48
      %v3851 = vpop.permute.xlu0 %3850
      %3852 = vrot.lane.b32.xlu0 %v3078, 48
      %v3853 = vpop.permute.xlu0 %3852
      %3854 = vrot.lane.b32.xlu0 %v3079, 48
      %v3855 = vpop.permute.xlu0 %3854
      %3856 = vrot.lane.b32.xlu0 %v3080, 48
      %v3857 = vpop.permute.xlu0 %3856
      %3858 = vrot.lane.b32.xlu0 %v3081, 48
      %v3859 = vpop.permute.xlu0 %3858
      %3860 = vrot.lane.b32.xlu0 %v3082, 48
      %v3861 = vpop.permute.xlu0 %3860
      %3862 = vrot.lane.b32.xlu0 %v3083, 48
      %v3863 = vpop.permute.xlu0 %3862
      %3864 = vrot.lane.b32.xlu0 %v3084, 48
      %v3865 = vpop.permute.xlu0 %3864
      %3866 = vrot.lane.b32.xlu0 %v3085, 48
      %v3867 = vpop.permute.xlu0 %3866
      %3868 = vrot.lane.b32.xlu0 %v3086, 48
      %v3869 = vpop.permute.xlu0 %3868
      %3870 = vrot.lane.b32.xlu0 %v3087, 48
      %v3871 = vpop.permute.xlu0 %3870
      %3872 = vrot.lane.b32.xlu0 %v3088, 48
      %v3873 = vpop.permute.xlu0 %3872
      %3874 = vrot.lane.b32.xlu0 %v3089, 48
      %v3875 = vpop.permute.xlu0 %3874
      %3876 = vrot.lane.b32.xlu0 %v3090, 48
      %v3877 = vpop.permute.xlu0 %3876
      %3878 = vrot.lane.b32.xlu0 %v3091, 48
      %v3879 = vpop.permute.xlu0 %3878
      %3880 = vrot.lane.b32.xlu0 %v3092, 48
      %v3881 = vpop.permute.xlu0 %3880
      %3882 = vrot.lane.b32.xlu0 %v3093, 48
      %v3883 = vpop.permute.xlu0 %3882
      %3884 = vrot.lane.b32.xlu0 %v3094, 48
      %v3885 = vpop.permute.xlu0 %3884
      %3886 = vrot.lane.b32.xlu0 %v3095, 48
      %v3887 = vpop.permute.xlu0 %3886
      %3888 = vrot.lane.b32.xlu0 %v3096, 48
      %v3889 = vpop.permute.xlu0 %3888
      %3890 = vrot.lane.b32.xlu0 %v3097, 48
      %v3891 = vpop.permute.xlu0 %3890
      %3892 = vrot.lane.b32.xlu0 %v3098, 48
      %v3893 = vpop.permute.xlu0 %3892
      %3894 = vrot.lane.b32.xlu0 %v3099, 48
      %v3895 = vpop.permute.xlu0 %3894
      %3896 = vrot.lane.b32.xlu0 %v3100, 48
      %v3897 = vpop.permute.xlu0 %3896
      %3898 = vrot.lane.b32.xlu0 %v3101, 48
      %v3899 = vpop.permute.xlu0 %3898
      %3900 = vrot.lane.b32.xlu0 %v3102, 48
      %v3901 = vpop.permute.xlu0 %3900
      %3902 = vrot.lane.b32.xlu0 %v3103, 48
      %v3903 = vpop.permute.xlu0 %3902
      %3968 = vrot.lane.b32.xlu0 %v3104, 56
      %v3969 = vpop.permute.xlu0 %3968
      %3970 = vrot.lane.b32.xlu0 %v3105, 56
      %v3971 = vpop.permute.xlu0 %3970
      %3972 = vrot.lane.b32.xlu0 %v3106, 56
      %v3973 = vpop.permute.xlu0 %3972
      %3974 = vrot.lane.b32.xlu0 %v3107, 56
      %v3975 = vpop.permute.xlu0 %3974
      %3976 = vrot.lane.b32.xlu0 %v3108, 56
      %v3977 = vpop.permute.xlu0 %3976
      %3978 = vrot.lane.b32.xlu0 %v3109, 56
      %v3979 = vpop.permute.xlu0 %3978
      %3980 = vrot.lane.b32.xlu0 %v3110, 56
      %v3981 = vpop.permute.xlu0 %3980
      %3982 = vrot.lane.b32.xlu0 %v3111, 56
      %v3983 = vpop.permute.xlu0 %3982
      %3984 = vrot.lane.b32.xlu0 %v3112, 56
      %v3985 = vpop.permute.xlu0 %3984
      %3986 = vrot.lane.b32.xlu0 %v3113, 56
      %v3987 = vpop.permute.xlu0 %3986
      %3988 = vrot.lane.b32.xlu0 %v3114, 56
      %v3989 = vpop.permute.xlu0 %3988
      %3990 = vrot.lane.b32.xlu0 %v3115, 56
      %v3991 = vpop.permute.xlu0 %3990
      %3992 = vrot.lane.b32.xlu0 %v3116, 56
      %v3993 = vpop.permute.xlu0 %3992
      %3994 = vrot.lane.b32.xlu0 %v3117, 56
      %v3995 = vpop.permute.xlu0 %3994
      %3996 = vrot.lane.b32.xlu0 %v3118, 56
      %v3997 = vpop.permute.xlu0 %3996
      %3998 = vrot.lane.b32.xlu0 %v3119, 56
      %v3999 = vpop.permute.xlu0 %3998
      %4000 = vrot.lane.b32.xlu0 %v3120, 56
      %v4001 = vpop.permute.xlu0 %4000
      %4002 = vrot.lane.b32.xlu0 %v3121, 56
      %v4003 = vpop.permute.xlu0 %4002
      %4004 = vrot.lane.b32.xlu0 %v3122, 56
      %v4005 = vpop.permute.xlu0 %4004
      %4006 = vrot.lane.b32.xlu0 %v3123, 56
      %v4007 = vpop.permute.xlu0 %4006
      %4008 = vrot.lane.b32.xlu0 %v3124, 56
      %v4009 = vpop.permute.xlu0 %4008
      %4010 = vrot.lane.b32.xlu0 %v3125, 56
      %v4011 = vpop.permute.xlu0 %4010
      %4012 = vrot.lane.b32.xlu0 %v3126, 56
      %v4013 = vpop.permute.xlu0 %4012
      %4014 = vrot.lane.b32.xlu0 %v3127, 56
      %v4015 = vpop.permute.xlu0 %4014
      %4016 = vrot.lane.b32.xlu0 %v3128, 56
      %v4017 = vpop.permute.xlu0 %4016
      %4018 = vrot.lane.b32.xlu0 %v3129, 56
      %v4019 = vpop.permute.xlu0 %4018
      %4020 = vrot.lane.b32.xlu0 %v3130, 56
      %v4021 = vpop.permute.xlu0 %4020
      %4022 = vrot.lane.b32.xlu0 %v3131, 56
      %v4023 = vpop.permute.xlu0 %4022
      %4024 = vrot.lane.b32.xlu0 %v3132, 56
      %v4025 = vpop.permute.xlu0 %4024
      %4026 = vrot.lane.b32.xlu0 %v3133, 56
      %v4027 = vpop.permute.xlu0 %4026
      %4028 = vrot.lane.b32.xlu0 %v3134, 56
      %v4029 = vpop.permute.xlu0 %4028
      %4030 = vrot.lane.b32.xlu0 %v3135, 56
      %v4031 = vpop.permute.xlu0 %4030
      %4096 = vrot.lane.b32.xlu0 %v3136, 64
      %v4097 = vpop.permute.xlu0 %4096
      %4098 = vrot.lane.b32.xlu0 %v3137, 64
      %v4099 = vpop.permute.xlu0 %4098
      %4100 = vrot.lane.b32.xlu0 %v3138, 64
      %v4101 = vpop.permute.xlu0 %4100
      %4102 = vrot.lane.b32.xlu0 %v3139, 64
      %v4103 = vpop.permute.xlu0 %4102
      %4104 = vrot.lane.b32.xlu0 %v3140, 64
      %v4105 = vpop.permute.xlu0 %4104
      %4106 = vrot.lane.b32.xlu0 %v3141, 64
      %v4107 = vpop.permute.xlu0 %4106
      %4108 = vrot.lane.b32.xlu0 %v3142, 64
      %v4109 = vpop.permute.xlu0 %4108
      %4110 = vrot.lane.b32.xlu0 %v3143, 64
      %v4111 = vpop.permute.xlu0 %4110
      %4112 = vrot.lane.b32.xlu0 %v3144, 64
      %v4113 = vpop.permute.xlu0 %4112
      %4114 = vrot.lane.b32.xlu0 %v3145, 64
      %v4115 = vpop.permute.xlu0 %4114
      %4116 = vrot.lane.b32.xlu0 %v3146, 64
      %v4117 = vpop.permute.xlu0 %4116
      %4118 = vrot.lane.b32.xlu0 %v3147, 64
      %v4119 = vpop.permute.xlu0 %4118
      %4120 = vrot.lane.b32.xlu0 %v3148, 64
      %v4121 = vpop.permute.xlu0 %4120
      %4122 = vrot.lane.b32.xlu0 %v3149, 64
      %v4123 = vpop.permute.xlu0 %4122
      %4124 = vrot.lane.b32.xlu0 %v3150, 64
      %v4125 = vpop.permute.xlu0 %4124
      %4126 = vrot.lane.b32.xlu0 %v3151, 64
      %v4127 = vpop.permute.xlu0 %4126
      %4128 = vrot.lane.b32.xlu0 %v3152, 64
      %v4129 = vpop.permute.xlu0 %4128
      %4130 = vrot.lane.b32.xlu0 %v3153, 64
      %v4131 = vpop.permute.xlu0 %4130
      %4132 = vrot.lane.b32.xlu0 %v3154, 64
      %v4133 = vpop.permute.xlu0 %4132
      %4134 = vrot.lane.b32.xlu0 %v3155, 64
      %v4135 = vpop.permute.xlu0 %4134
      %4136 = vrot.lane.b32.xlu0 %v3156, 64
      %v4137 = vpop.permute.xlu0 %4136
      %4138 = vrot.lane.b32.xlu0 %v3157, 64
      %v4139 = vpop.permute.xlu0 %4138
      %4140 = vrot.lane.b32.xlu0 %v3158, 64
      %v4141 = vpop.permute.xlu0 %4140
      %4142 = vrot.lane.b32.xlu0 %v3159, 64
      %v4143 = vpop.permute.xlu0 %4142
      %4144 = vrot.lane.b32.xlu0 %v3160, 64
      %v4145 = vpop.permute.xlu0 %4144
      %4146 = vrot.lane.b32.xlu0 %v3161, 64
      %v4147 = vpop.permute.xlu0 %4146
      %4148 = vrot.lane.b32.xlu0 %v3162, 64
      %v4149 = vpop.permute.xlu0 %4148
      %4150 = vrot.lane.b32.xlu0 %v3163, 64
      %v4151 = vpop.permute.xlu0 %4150
      %4152 = vrot.lane.b32.xlu0 %v3164, 64
      %v4153 = vpop.permute.xlu0 %4152
      %4154 = vrot.lane.b32.xlu0 %v3165, 64
      %v4155 = vpop.permute.xlu0 %4154
      %4156 = vrot.lane.b32.xlu0 %v3166, 64
      %v4157 = vpop.permute.xlu0 %4156
      %4158 = vrot.lane.b32.xlu0 %v3167, 64
      %v4159 = vpop.permute.xlu0 %4158
      %v4192 = vsel %vm1844, %v2879, %v3201
      %v4193 = vsel %vm1844, %v2880, %v3203
      %v4194 = vsel %vm1844, %v2881, %v3205
      %v4195 = vsel %vm1844, %v2882, %v3207
      %v4196 = vsel %vm1844, %v2883, %v3209
      %v4197 = vsel %vm1844, %v2884, %v3211
      %v4198 = vsel %vm1844, %v2885, %v3213
      %v4199 = vsel %vm1844, %v2886, %v3215
      %v4200 = vsel %vm1844, %v2887, %v3217
      %v4201 = vsel %vm1844, %v2888, %v3219
      %v4202 = vsel %vm1844, %v2889, %v3221
      %v4203 = vsel %vm1844, %v2890, %v3223
      %v4204 = vsel %vm1844, %v2891, %v3225
      %v4205 = vsel %vm1844, %v2892, %v3227
      %v4206 = vsel %vm1844, %v2893, %v3229
      %v4207 = vsel %vm1844, %v2894, %v3231
      %v4208 = vsel %vm1844, %v2895, %v3233
      %v4209 = vsel %vm1844, %v2896, %v3235
      %v4210 = vsel %vm1844, %v2897, %v3237
      %v4211 = vsel %vm1844, %v2898, %v3239
      %v4212 = vsel %vm1844, %v2899, %v3241
      %v4213 = vsel %vm1844, %v2900, %v3243
      %v4214 = vsel %vm1844, %v2901, %v3245
      %v4215 = vsel %vm1844, %v2902, %v3247
      %v4216 = vsel %vm1844, %v2903, %v3249
      %v4217 = vsel %vm1844, %v2904, %v3251
      %v4218 = vsel %vm1844, %v2905, %v3253
      %v4219 = vsel %vm1844, %v2906, %v3255
      %v4220 = vsel %vm1844, %v2907, %v3257
      %v4221 = vsel %vm1844, %v2908, %v3259
      %v4222 = vsel %vm1844, %v2909, %v3261
      %v4223 = vsel %vm1844, %v2910, %v3263
      %v4224 = vsel %vm1910, %v4192, %v3329
      %v4225 = vsel %vm1910, %v4193, %v3331
      %v4226 = vsel %vm1910, %v4194, %v3333
      %v4227 = vsel %vm1910, %v4195, %v3335
      %v4228 = vsel %vm1910, %v4196, %v3337
      %v4229 = vsel %vm1910, %v4197, %v3339
      %v4230 = vsel %vm1910, %v4198, %v3341
      %v4231 = vsel %vm1910, %v4199, %v3343
      %v4232 = vsel %vm1910, %v4200, %v3345
      %v4233 = vsel %vm1910, %v4201, %v3347
      %v4234 = vsel %vm1910, %v4202, %v3349
      %v4235 = vsel %vm1910, %v4203, %v3351
      %v4236 = vsel %vm1910, %v4204, %v3353
      %v4237 = vsel %vm1910, %v4205, %v3355
      %v4238 = vsel %vm1910, %v4206, %v3357
      %v4239 = vsel %vm1910, %v4207, %v3359
      %v4240 = vsel %vm1910, %v4208, %v3361
      %v4241 = vsel %vm1910, %v4209, %v3363
      %v4242 = vsel %vm1910, %v4210, %v3365
      %v4243 = vsel %vm1910, %v4211, %v3367
      %v4244 = vsel %vm1910, %v4212, %v3369
      %v4245 = vsel %vm1910, %v4213, %v3371
      %v4246 = vsel %vm1910, %v4214, %v3373
      %v4247 = vsel %vm1910, %v4215, %v3375
      %v4248 = vsel %vm1910, %v4216, %v3377
      %v4249 = vsel %vm1910, %v4217, %v3379
      %v4250 = vsel %vm1910, %v4218, %v3381
      %v4251 = vsel %vm1910, %v4219, %v3383
      %v4252 = vsel %vm1910, %v4220, %v3385
      %v4253 = vsel %vm1910, %v4221, %v3387
      %v4254 = vsel %vm1910, %v4222, %v3389
      %v4255 = vsel %vm1910, %v4223, %v3391
      %v4256 = vsel %vm1976, %v4224, %v3457
      %v4257 = vsel %vm1976, %v4225, %v3459
      %v4258 = vsel %vm1976, %v4226, %v3461
      %v4259 = vsel %vm1976, %v4227, %v3463
      %v4260 = vsel %vm1976, %v4228, %v3465
      %v4261 = vsel %vm1976, %v4229, %v3467
      %v4262 = vsel %vm1976, %v4230, %v3469
      %v4263 = vsel %vm1976, %v4231, %v3471
      %v4264 = vsel %vm1976, %v4232, %v3473
      %v4265 = vsel %vm1976, %v4233, %v3475
      %v4266 = vsel %vm1976, %v4234, %v3477
      %v4267 = vsel %vm1976, %v4235, %v3479
      %v4268 = vsel %vm1976, %v4236, %v3481
      %v4269 = vsel %vm1976, %v4237, %v3483
      %v4270 = vsel %vm1976, %v4238, %v3485
      %v4271 = vsel %vm1976, %v4239, %v3487
      %v4272 = vsel %vm1976, %v4240, %v3489
      %v4273 = vsel %vm1976, %v4241, %v3491
      %v4274 = vsel %vm1976, %v4242, %v3493
      %v4275 = vsel %vm1976, %v4243, %v3495
      %v4276 = vsel %vm1976, %v4244, %v3497
      %v4277 = vsel %vm1976, %v4245, %v3499
      %v4278 = vsel %vm1976, %v4246, %v3501
      %v4279 = vsel %vm1976, %v4247, %v3503
      %v4280 = vsel %vm1976, %v4248, %v3505
      %v4281 = vsel %vm1976, %v4249, %v3507
      %v4282 = vsel %vm1976, %v4250, %v3509
      %v4283 = vsel %vm1976, %v4251, %v3511
      %v4284 = vsel %vm1976, %v4252, %v3513
      %v4285 = vsel %vm1976, %v4253, %v3515
      %v4286 = vsel %vm1976, %v4254, %v3517
      %v4287 = vsel %vm1976, %v4255, %v3519
      %v4288 = vsel %vm2042, %v4256, %v3585
      %v4289 = vsel %vm2042, %v4257, %v3587
      %v4290 = vsel %vm2042, %v4258, %v3589
      %v4291 = vsel %vm2042, %v4259, %v3591
      %v4292 = vsel %vm2042, %v4260, %v3593
      %v4293 = vsel %vm2042, %v4261, %v3595
      %v4294 = vsel %vm2042, %v4262, %v3597
      %v4295 = vsel %vm2042, %v4263, %v3599
      %v4296 = vsel %vm2042, %v4264, %v3601
      %v4297 = vsel %vm2042, %v4265, %v3603
      %v4298 = vsel %vm2042, %v4266, %v3605
      %v4299 = vsel %vm2042, %v4267, %v3607
      %v4300 = vsel %vm2042, %v4268, %v3609
      %v4301 = vsel %vm2042, %v4269, %v3611
      %v4302 = vsel %vm2042, %v4270, %v3613
      %v4303 = vsel %vm2042, %v4271, %v3615
      %v4304 = vsel %vm2042, %v4272, %v3617
      %v4305 = vsel %vm2042, %v4273, %v3619
      %v4306 = vsel %vm2042, %v4274, %v3621
      %v4307 = vsel %vm2042, %v4275, %v3623
      %v4308 = vsel %vm2042, %v4276, %v3625
      %v4309 = vsel %vm2042, %v4277, %v3627
      %v4310 = vsel %vm2042, %v4278, %v3629
      %v4311 = vsel %vm2042, %v4279, %v3631
      %v4312 = vsel %vm2042, %v4280, %v3633
      %v4313 = vsel %vm2042, %v4281, %v3635
      %v4314 = vsel %vm2042, %v4282, %v3637
      %v4315 = vsel %vm2042, %v4283, %v3639
      %v4316 = vsel %vm2042, %v4284, %v3641
      %v4317 = vsel %vm2042, %v4285, %v3643
      %v4318 = vsel %vm2042, %v4286, %v3645
      %v4319 = vsel %vm2042, %v4287, %v3647
      %vm4320 = vcmask 326656
      %v4321 = vsel %vm4320, %v4288, %v3713
      %v4322 = vsel %vm4320, %v4289, %v3715
      %v4323 = vsel %vm4320, %v4290, %v3717
      %v4324 = vsel %vm4320, %v4291, %v3719
      %v4325 = vsel %vm4320, %v4292, %v3721
      %v4326 = vsel %vm4320, %v4293, %v3723
      %v4327 = vsel %vm4320, %v4294, %v3725
      %v4328 = vsel %vm4320, %v4295, %v3727
      %v4329 = vsel %vm4320, %v4296, %v3729
      %v4330 = vsel %vm4320, %v4297, %v3731
      %v4331 = vsel %vm4320, %v4298, %v3733
      %v4332 = vsel %vm4320, %v4299, %v3735
      %v4333 = vsel %vm4320, %v4300, %v3737
      %v4334 = vsel %vm4320, %v4301, %v3739
      %v4335 = vsel %vm4320, %v4302, %v3741
      %v4336 = vsel %vm4320, %v4303, %v3743
      %v4337 = vsel %vm4320, %v4304, %v3745
      %v4338 = vsel %vm4320, %v4305, %v3747
      %v4339 = vsel %vm4320, %v4306, %v3749
      %v4340 = vsel %vm4320, %v4307, %v3751
      %v4341 = vsel %vm4320, %v4308, %v3753
      %v4342 = vsel %vm4320, %v4309, %v3755
      %v4343 = vsel %vm4320, %v4310, %v3757
      %v4344 = vsel %vm4320, %v4311, %v3759
      %v4345 = vsel %vm4320, %v4312, %v3761
      %v4346 = vsel %vm4320, %v4313, %v3763
      %v4347 = vsel %vm4320, %v4314, %v3765
      %v4348 = vsel %vm4320, %v4315, %v3767
      %v4349 = vsel %vm4320, %v4316, %v3769
      %v4350 = vsel %vm4320, %v4317, %v3771
      %v4351 = vsel %vm4320, %v4318, %v3773
      %v4352 = vsel %vm4320, %v4319, %v3775
      %vm4353 = vcmask 392192
      %v4354 = vsel %vm4353, %v4321, %v3841
      %v4355 = vsel %vm4353, %v4322, %v3843
      %v4356 = vsel %vm4353, %v4323, %v3845
      %v4357 = vsel %vm4353, %v4324, %v3847
      %v4358 = vsel %vm4353, %v4325, %v3849
      %v4359 = vsel %vm4353, %v4326, %v3851
      %v4360 = vsel %vm4353, %v4327, %v3853
      %v4361 = vsel %vm4353, %v4328, %v3855
      %v4362 = vsel %vm4353, %v4329, %v3857
      %v4363 = vsel %vm4353, %v4330, %v3859
      %v4364 = vsel %vm4353, %v4331, %v3861
      %v4365 = vsel %vm4353, %v4332, %v3863
      %v4366 = vsel %vm4353, %v4333, %v3865
      %v4367 = vsel %vm4353, %v4334, %v3867
      %v4368 = vsel %vm4353, %v4335, %v3869
      %v4369 = vsel %vm4353, %v4336, %v3871
      %v4370 = vsel %vm4353, %v4337, %v3873
      %v4371 = vsel %vm4353, %v4338, %v3875
      %v4372 = vsel %vm4353, %v4339, %v3877
      %v4373 = vsel %vm4353, %v4340, %v3879
      %v4374 = vsel %vm4353, %v4341, %v3881
      %v4375 = vsel %vm4353, %v4342, %v3883
      %v4376 = vsel %vm4353, %v4343, %v3885
      %v4377 = vsel %vm4353, %v4344, %v3887
      %v4378 = vsel %vm4353, %v4345, %v3889
      %v4379 = vsel %vm4353, %v4346, %v3891
      %v4380 = vsel %vm4353, %v4347, %v3893
      %v4381 = vsel %vm4353, %v4348, %v3895
      %v4382 = vsel %vm4353, %v4349, %v3897
      %v4383 = vsel %vm4353, %v4350, %v3899
      %v4384 = vsel %vm4353, %v4351, %v3901
      %v4385 = vsel %vm4353, %v4352, %v3903
      %vm4386 = vcmask 457728
      %v4387 = vsel %vm4386, %v4354, %v3969
      %v4388 = vsel %vm4386, %v4355, %v3971
      %v4389 = vsel %vm4386, %v4356, %v3973
      %v4390 = vsel %vm4386, %v4357, %v3975
      %v4391 = vsel %vm4386, %v4358, %v3977
      %v4392 = vsel %vm4386, %v4359, %v3979
      %v4393 = vsel %vm4386, %v4360, %v3981
      %v4394 = vsel %vm4386, %v4361, %v3983
      %v4395 = vsel %vm4386, %v4362, %v3985
      %v4396 = vsel %vm4386, %v4363, %v3987
      %v4397 = vsel %vm4386, %v4364, %v3989
      %v4398 = vsel %vm4386, %v4365, %v3991
      %v4399 = vsel %vm4386, %v4366, %v3993
      %v4400 = vsel %vm4386, %v4367, %v3995
      %v4401 = vsel %vm4386, %v4368, %v3997
      %v4402 = vsel %vm4386, %v4369, %v3999
      %v4403 = vsel %vm4386, %v4370, %v4001
      %v4404 = vsel %vm4386, %v4371, %v4003
      %v4405 = vsel %vm4386, %v4372, %v4005
      %v4406 = vsel %vm4386, %v4373, %v4007
      %v4407 = vsel %vm4386, %v4374, %v4009
      %v4408 = vsel %vm4386, %v4375, %v4011
      %v4409 = vsel %vm4386, %v4376, %v4013
      %v4410 = vsel %vm4386, %v4377, %v4015
      %v4411 = vsel %vm4386, %v4378, %v4017
      %v4412 = vsel %vm4386, %v4379, %v4019
      %v4413 = vsel %vm4386, %v4380, %v4021
      %v4414 = vsel %vm4386, %v4381, %v4023
      %v4415 = vsel %vm4386, %v4382, %v4025
      %v4416 = vsel %vm4386, %v4383, %v4027
      %v4417 = vsel %vm4386, %v4384, %v4029
      %v4418 = vsel %vm4386, %v4385, %v4031
      %vm4419 = vcmask 523264
      %v4420 = vsel %vm4419, %v4387, %v4097
      %v4421 = vsel %vm4419, %v4388, %v4099
      %v4422 = vsel %vm4419, %v4389, %v4101
      %v4423 = vsel %vm4419, %v4390, %v4103
      %v4424 = vsel %vm4419, %v4391, %v4105
      %v4425 = vsel %vm4419, %v4392, %v4107
      %v4426 = vsel %vm4419, %v4393, %v4109
      %v4427 = vsel %vm4419, %v4394, %v4111
      %v4428 = vsel %vm4419, %v4395, %v4113
      %v4429 = vsel %vm4419, %v4396, %v4115
      %v4430 = vsel %vm4419, %v4397, %v4117
      %v4431 = vsel %vm4419, %v4398, %v4119
      %v4432 = vsel %vm4419, %v4399, %v4121
      %v4433 = vsel %vm4419, %v4400, %v4123
      %v4434 = vsel %vm4419, %v4401, %v4125
      %v4435 = vsel %vm4419, %v4402, %v4127
      %v4436 = vsel %vm4419, %v4403, %v4129
      %v4437 = vsel %vm4419, %v4404, %v4131
      %v4438 = vsel %vm4419, %v4405, %v4133
      %v4439 = vsel %vm4419, %v4406, %v4135
      %v4440 = vsel %vm4419, %v4407, %v4137
      %v4441 = vsel %vm4419, %v4408, %v4139
      %v4442 = vsel %vm4419, %v4409, %v4141
      %v4443 = vsel %vm4419, %v4410, %v4143
      %v4444 = vsel %vm4419, %v4411, %v4145
      %v4445 = vsel %vm4419, %v4412, %v4147
      %v4446 = vsel %vm4419, %v4413, %v4149
      %v4447 = vsel %vm4419, %v4414, %v4151
      %v4448 = vsel %vm4419, %v4415, %v4153
      %v4449 = vsel %vm4419, %v4416, %v4155
      %v4450 = vsel %vm4419, %v4417, %v4157
      %v4451 = vsel %vm4419, %v4418, %v4159
      %v4452 = vpack.c.bf16 %v4421, %v4420
      %v4453 = vpack.c.bf16 %v4423, %v4422
      %v4454 = vpack.c.bf16 %v4425, %v4424
      %v4455 = vpack.c.bf16 %v4427, %v4426
      %v4456 = vpack.c.bf16 %v4429, %v4428
      %v4457 = vpack.c.bf16 %v4431, %v4430
      %v4458 = vpack.c.bf16 %v4433, %v4432
      %v4459 = vpack.c.bf16 %v4435, %v4434
      %v4460 = vpack.c.bf16 %v4437, %v4436
      %v4461 = vpack.c.bf16 %v4439, %v4438
      %v4462 = vpack.c.bf16 %v4441, %v4440
      %v4463 = vpack.c.bf16 %v4443, %v4442
      %v4464 = vpack.c.bf16 %v4445, %v4444
      %v4465 = vpack.c.bf16 %v4447, %v4446
      %v4466 = vpack.c.bf16 %v4449, %v4448
      %v4467 = vpack.c.bf16 %v4451, %v4450
      %v4468 = vld [vmem:[%s7] sm:$0xf]
      %v4469 = vld [vmem:[%s7 + $0x4] sm:$0xf]
      %v4470 = vld [vmem:[%s7 + $0x8] sm:$0xf]
      %v4471 = vld [vmem:[%s7 + $0xc] sm:$0xf]
      %v4472 = vld [vmem:[%s7 + $0x10] sm:$0xf]
      %v4473 = vld [vmem:[%s7 + $0x14] sm:$0xf]
      %v4474 = vld [vmem:[%s7 + $0x18] sm:$0xf]
      %v4475 = vld [vmem:[%s7 + $0x1c] sm:$0xf]
      %v4476 = vld [vmem:[%s7 + $0x20] sm:$0xf]
      %v4486 = vunpack.c.l.b16 %v4468
      %v4487 = vunpack.c.l.b16 %v4469
      %v4488 = vunpack.c.l.b16 %v4470
      %v4489 = vunpack.c.l.b16 %v4471
      %v4490 = vunpack.c.l.b16 %v4472
      %v4491 = vunpack.c.l.b16 %v4473
      %v4492 = vunpack.c.l.b16 %v4474
      %v4493 = vunpack.c.l.b16 %v4475
      %v4494 = vunpack.c.l.b16 %v4476
      %v4495 = vpack.c.b16 %v4487, %v4486
      %v4496 = vpack.c.b16 %v4489, %v4488
      %v4497 = vpack.c.b16 %v4491, %v4490
      %v4498 = vpack.c.b16 %v4493, %v4492
      %v4499 = vpack.c.b16 %v4494, %v4494
      %vm4504 = vcmask 588800
      %v4506 = vsel %vm4504, %v4452, 0
      %v4509 = vsel %vm4504, %v4453, 0
      %v4512 = vsel %vm4504, %v4454, 0
      %v4515 = vsel %vm4504, %v4455, 0
      %v4518 = vsel %vm4504, %v4456, 0
      %v4521 = vsel %vm4504, %v4457, 0
      %v4524 = vsel %vm4504, %v4458, 0
      %v4527 = vsel %vm4504, %v4459, 0
      %v4530 = vsel %vm4504, %v4460, 0
      %v4533 = vsel %vm4504, %v4461, 0
      %v4536 = vsel %vm4504, %v4462, 0
      %v4539 = vsel %vm4504, %v4463, 0
      %v4542 = vsel %vm4504, %v4464, 0
      %v4545 = vsel %vm4504, %v4465, 0
      %v4548 = vsel %vm4504, %v4466, 0
      %v4551 = vsel %vm4504, %v4467, 0
      %vm4553 = vcmask 1043456
      %v4555 = vsel %vm4553, %v4499, 0
      %4557 = vmatprep.subr.bf16.mxu0 0
      %4558 = vmatpush1.bf16.msra.mxu0 %v4495
      %4559 = vmatprep.subr.bf16.mxu0 0
      %4560 = vmatpush1.bf16.msra.mxu0 %v4496
      %4561 = vmatprep.subr.bf16.mxu0 0
      %4562 = vmatpush1.bf16.msra.mxu0 %v4497
      %4563 = vmatprep.subr.bf16.mxu0 0
      %4564 = vmatpush1.bf16.msra.mxu0 %v4498
      %4565 = vmatprep.subr.bf16.mxu0 0
      %4566 = vmatpush1.bf16.msra.mxu0 %v4555
      %4567 = vmatprep.subr.bf16.mxu0 0
      %4568 = vmatpush1.bf16.msra.mxu0 0
      %4569 = vmatprep.subr.bf16.mxu0 0
      %4570 = vmatpush1.bf16.msra.mxu0 0
      %4571 = vmatprep.subr.bf16.mxu0 0
      %4572 = vmatpush1.bf16.msra.mxu0 0
      %4573 = vmatprep.subr.bf16.mxu0 0
      %4574 = vmatpush1.bf16.msra.mxu0 0
      %4575 = vmatprep.subr.bf16.mxu0 0
      %4576 = vmatpush1.bf16.msra.mxu0 0
      %4577 = vmatprep.subr.bf16.mxu0 0
      %4578 = vmatpush1.bf16.msra.mxu0 0
      %4579 = vmatprep.subr.bf16.mxu0 0
      %4580 = vmatpush1.bf16.msra.mxu0 0
      %4581 = vmatprep.subr.bf16.mxu0 0
      %4582 = vmatpush1.bf16.msra.mxu0 0
      %4583 = vmatprep.subr.bf16.mxu0 0
      %4584 = vmatpush1.bf16.msra.mxu0 0
      %4585 = vmatprep.subr.bf16.mxu0 0
      %4586 = vmatpush1.bf16.msra.mxu0 0
      %4587 = vmatprep.subr.bf16.mxu0 0
      %4588 = vmatpush1.bf16.msra.mxu0 0
      %4589 = vmatprep.mubr.bf16.mxu0 0
      %4590 = vmatmul.mubr.bf16.gmra.mrb[0].mxu0 %v4506
      %v4591 = vpop.f32.mrb[0].mxu0
      %v4592 = vadd.f32 0.0, %v4591
      %v4593 = vpop.f32.mrb[0].mxu0
      %v4594 = vpop.f32.mrb[0].mxu0
      %v4595 = vadd.f32 0.0, %v4594
      %v4596 = vpop.f32.mrb[0].mxu0
      %4597 = vmatprep.mubr.bf16.mxu0 0
      %4598 = vmatmul.mubr.bf16.gmra.mrb[0].mxu0 %v4509
      %v4599 = vpop.f32.mrb[0].mxu0
      %v4600 = vadd.f32 0.0, %v4599
      %v4601 = vpop.f32.mrb[0].mxu0
      %v4602 = vpop.f32.mrb[0].mxu0
      %v4603 = vadd.f32 0.0, %v4602
      %v4604 = vpop.f32.mrb[0].mxu0
      %4605 = vmatprep.mubr.bf16.mxu0 0
      %4606 = vmatmul.mubr.bf16.gmra.mrb[0].mxu0 %v4512
      %v4607 = vpop.f32.mrb[0].mxu0
      %v4608 = vadd.f32 0.0, %v4607
      %v4609 = vpop.f32.mrb[0].mxu0
      %v4610 = vpop.f32.mrb[0].mxu0
      %v4611 = vadd.f32 0.0, %v4610
      %v4612 = vpop.f32.mrb[0].mxu0
      %4613 = vmatprep.mubr.bf16.mxu0 0
      %4614 = vmatmul.mubr.bf16.gmra.mrb[0].mxu0 %v4515
      %v4615 = vpop.f32.mrb[0].mxu0
      %v4616 = vadd.f32 0.0, %v4615
      %v4617 = vpop.f32.mrb[0].mxu0
      %v4618 = vpop.f32.mrb[0].mxu0
      %v4619 = vadd.f32 0.0, %v4618
      %v4620 = vpop.f32.mrb[0].mxu0
      %4621 = vmatprep.mubr.bf16.mxu0 0
      %4622 = vmatmul.mubr.bf16.gmra.mrb[0].mxu0 %v4518
      %v4623 = vpop.f32.mrb[0].mxu0
      %v4624 = vadd.f32 0.0, %v4623
      %v4625 = vpop.f32.mrb[0].mxu0
      %v4626 = vpop.f32.mrb[0].mxu0
      %v4627 = vadd.f32 0.0, %v4626
      %v4628 = vpop.f32.mrb[0].mxu0
      %4629 = vmatprep.mubr.bf16.mxu0 0
      %4630 = vmatmul.mubr.bf16.gmra.mrb[0].mxu0 %v4521
      %v4631 = vpop.f32.mrb[0].mxu0
      %v4632 = vadd.f32 0.0, %v4631
      %v4633 = vpop.f32.mrb[0].mxu0
      %v4634 = vpop.f32.mrb[0].mxu0
      %v4635 = vadd.f32 0.0, %v4634
      %v4636 = vpop.f32.mrb[0].mxu0
      %4637 = vmatprep.mubr.bf16.mxu0 0
      %4638 = vmatmul.mubr.bf16.gmra.mrb[0].mxu0 %v4524
      %v4639 = vpop.f32.mrb[0].mxu0
      %v4640 = vadd.f32 0.0, %v4639
      %v4641 = vpop.f32.mrb[0].mxu0
      %v4642 = vpop.f32.mrb[0].mxu0
      %v4643 = vadd.f32 0.0, %v4642
      %v4644 = vpop.f32.mrb[0].mxu0
      %4645 = vmatprep.mubr.bf16.mxu0 0
      %4646 = vmatmul.mubr.bf16.gmra.mrb[0].mxu0 %v4527
      %v4647 = vpop.f32.mrb[0].mxu0
      %v4648 = vadd.f32 0.0, %v4647
      %v4649 = vpop.f32.mrb[0].mxu0
      %v4650 = vpop.f32.mrb[0].mxu0
      %v4651 = vadd.f32 0.0, %v4650
      %v4652 = vpop.f32.mrb[0].mxu0
      %4653 = vmatprep.mubr.bf16.mxu0 0
      %4654 = vmatmul.mubr.bf16.gmra.mrb[0].mxu0 %v4530
      %v4655 = vpop.f32.mrb[0].mxu0
      %v4656 = vadd.f32 0.0, %v4655
      %v4657 = vpop.f32.mrb[0].mxu0
      %v4658 = vpop.f32.mrb[0].mxu0
      %v4659 = vadd.f32 0.0, %v4658
      %v4660 = vpop.f32.mrb[0].mxu0
      %4661 = vmatprep.mubr.bf16.mxu0 0
      %4662 = vmatmul.mubr.bf16.gmra.mrb[0].mxu0 %v4533
      %v4663 = vpop.f32.mrb[0].mxu0
      %v4664 = vadd.f32 0.0, %v4663
      %v4665 = vpop.f32.mrb[0].mxu0
      %v4666 = vpop.f32.mrb[0].mxu0
      %v4667 = vadd.f32 0.0, %v4666
      %v4668 = vpop.f32.mrb[0].mxu0
      %4669 = vmatprep.mubr.bf16.mxu0 0
      %4670 = vmatmul.mubr.bf16.gmra.mrb[0].mxu0 %v4536
      %v4671 = vpop.f32.mrb[0].mxu0
      %v4672 = vadd.f32 0.0, %v4671
      %v4673 = vpop.f32.mrb[0].mxu0
      %v4674 = vpop.f32.mrb[0].mxu0
      %v4675 = vadd.f32 0.0, %v4674
      %v4676 = vpop.f32.mrb[0].mxu0
      %4677 = vmatprep.mubr.bf16.mxu0 0
      %4678 = vmatmul.mubr.bf16.gmra.mrb[0].mxu0 %v4539
      %v4679 = vpop.f32.mrb[0].mxu0
      %v4680 = vadd.f32 0.0, %v4679
      %v4681 = vpop.f32.mrb[0].mxu0
      %v4682 = vpop.f32.mrb[0].mxu0
      %v4683 = vadd.f32 0.0, %v4682
      %v4684 = vpop.f32.mrb[0].mxu0
      %4685 = vmatprep.mubr.bf16.mxu0 0
      %4686 = vmatmul.mubr.bf16.gmra.mrb[0].mxu0 %v4542
      %v4687 = vpop.f32.mrb[0].mxu0
      %v4688 = vadd.f32 0.0, %v4687
      %v4689 = vpop.f32.mrb[0].mxu0
      %v4690 = vpop.f32.mrb[0].mxu0
      %v4691 = vadd.f32 0.0, %v4690
      %v4692 = vpop.f32.mrb[0].mxu0
      %4693 = vmatprep.mubr.bf16.mxu0 0
      %4694 = vmatmul.mubr.bf16.gmra.mrb[0].mxu0 %v4545
      %v4695 = vpop.f32.mrb[0].mxu0
      %v4696 = vadd.f32 0.0, %v4695
      %v4697 = vpop.f32.mrb[0].mxu0
      %v4698 = vpop.f32.mrb[0].mxu0
      %v4699 = vadd.f32 0.0, %v4698
      %v4700 = vpop.f32.mrb[0].mxu0
      %4701 = vmatprep.mubr.bf16.mxu0 0
      %4702 = vmatmul.mubr.bf16.gmra.mrb[0].mxu0 %v4548
      %v4703 = vpop.f32.mrb[0].mxu0
      %v4704 = vadd.f32 0.0, %v4703
      %v4705 = vpop.f32.mrb[0].mxu0
      %v4706 = vpop.f32.mrb[0].mxu0
      %v4707 = vadd.f32 0.0, %v4706
      %v4708 = vpop.f32.mrb[0].mxu0
      %4709 = vmatprep.mubr.bf16.mxu0 0
      %4710 = vmatmul.mubr.bf16.gmra.mrb[0].mxu0 %v4551
      %v4711 = vpop.f32.mrb[0].mxu0
      %v4712 = vadd.f32 0.0, %v4711
      %v4713 = vpop.f32.mrb[0].mxu0
      %v4714 = vpop.f32.mrb[0].mxu0
      %v4715 = vadd.f32 0.0, %v4714
      %v4716 = vpop.f32.mrb[0].mxu0
      %4717 = vdwg.mxu0
      %v4718 = vld [vmem:[%s8] sm:$0x1]
      %v4720 = vlaneseq
      %v4721 = vshrl.u32 %v4720, 7
      %v4722 = vsub.s32 0, %v4721
      %v4723 = vrot.slane %v4718, %v4722
      %v4725 = vmul.f32 %v4592, %v4723
      %v4726 = vmul.f32 %v4595, %v4723
      %v4727 = vmul.f32 %v4600, %v4723
      %v4728 = vmul.f32 %v4603, %v4723
      %v4729 = vmul.f32 %v4608, %v4723
      %v4730 = vmul.f32 %v4611, %v4723
      %v4731 = vmul.f32 %v4616, %v4723
      %v4732 = vmul.f32 %v4619, %v4723
      %v4733 = vmul.f32 %v4624, %v4723
      %v4734 = vmul.f32 %v4627, %v4723
      %v4735 = vmul.f32 %v4632, %v4723
      %v4736 = vmul.f32 %v4635, %v4723
      %v4737 = vmul.f32 %v4640, %v4723
      %v4738 = vmul.f32 %v4643, %v4723
      %v4739 = vmul.f32 %v4648, %v4723
      %v4740 = vmul.f32 %v4651, %v4723
      %v4741 = vmul.f32 %v4656, %v4723
      %v4742 = vmul.f32 %v4659, %v4723
      %v4743 = vmul.f32 %v4664, %v4723
      %v4744 = vmul.f32 %v4667, %v4723
      %v4745 = vmul.f32 %v4672, %v4723
      %v4746 = vmul.f32 %v4675, %v4723
      %v4747 = vmul.f32 %v4680, %v4723
      %v4748 = vmul.f32 %v4683, %v4723
      %v4749 = vmul.f32 %v4688, %v4723
      %v4750 = vmul.f32 %v4691, %v4723
      %v4751 = vmul.f32 %v4696, %v4723
      %v4752 = vmul.f32 %v4699, %v4723
      %v4753 = vmul.f32 %v4704, %v4723
      %v4754 = vmul.f32 %v4707, %v4723
      %v4755 = vmul.f32 %v4712, %v4723
      %v4756 = vmul.f32 %v4715, %v4723
      %v4757 = vld [vmem:[%s9] sm:$0x1]
      %v4759 = vlaneseq
      %v4760 = vshrl.u32 %v4759, 7
      %v4761 = vsub.s32 0, %v4760
      %v4762 = vrot.slane %v4757, %v4761
      %v4764 = vadd.f32 %v4725, %v4762
      %v4765 = vadd.f32 %v4726, %v4762
      %v4766 = vadd.f32 %v4727, %v4762
      %v4767 = vadd.f32 %v4728, %v4762
      %v4768 = vadd.f32 %v4729, %v4762
      %v4769 = vadd.f32 %v4730, %v4762
      %v4770 = vadd.f32 %v4731, %v4762
      %v4771 = vadd.f32 %v4732, %v4762
      %v4772 = vadd.f32 %v4733, %v4762
      %v4773 = vadd.f32 %v4734, %v4762
      %v4774 = vadd.f32 %v4735, %v4762
      %v4775 = vadd.f32 %v4736, %v4762
      %v4776 = vadd.f32 %v4737, %v4762
      %v4777 = vadd.f32 %v4738, %v4762
      %v4778 = vadd.f32 %v4739, %v4762
      %v4779 = vadd.f32 %v4740, %v4762
      %v4780 = vadd.f32 %v4741, %v4762
      %v4781 = vadd.f32 %v4742, %v4762
      %v4782 = vadd.f32 %v4743, %v4762
      %v4783 = vadd.f32 %v4744, %v4762
      %v4784 = vadd.f32 %v4745, %v4762
      %v4785 = vadd.f32 %v4746, %v4762
      %v4786 = vadd.f32 %v4747, %v4762
      %v4787 = vadd.f32 %v4748, %v4762
      %v4788 = vadd.f32 %v4749, %v4762
      %v4789 = vadd.f32 %v4750, %v4762
      %v4790 = vadd.f32 %v4751, %v4762
      %v4791 = vadd.f32 %v4752, %v4762
      %v4792 = vadd.f32 %v4753, %v4762
      %v4793 = vadd.f32 %v4754, %v4762
      %v4794 = vadd.f32 %v4755, %v4762
      %v4795 = vadd.f32 %v4756, %v4762
      %v4796 = vadd.f32 %v4764, %v2847
      %v4797 = vadd.f32 %v4765, %v2848
      %v4798 = vadd.f32 %v4766, %v2849
      %v4799 = vadd.f32 %v4767, %v2850
      %v4800 = vadd.f32 %v4768, %v2851
      %v4801 = vadd.f32 %v4769, %v2852
      %v4802 = vadd.f32 %v4770, %v2853
      %v4803 = vadd.f32 %v4771, %v2854
      %v4804 = vadd.f32 %v4772, %v2855
      %v4805 = vadd.f32 %v4773, %v2856
      %v4806 = vadd.f32 %v4774, %v2857
      %v4807 = vadd.f32 %v4775, %v2858
      %v4808 = vadd.f32 %v4776, %v2859
      %v4809 = vadd.f32 %v4777, %v2860
      %v4810 = vadd.f32 %v4778, %v2861
      %v4811 = vadd.f32 %v4779, %v2862
      %v4812 = vadd.f32 %v4780, %v2863
      %v4813 = vadd.f32 %v4781, %v2864
      %v4814 = vadd.f32 %v4782, %v2865
      %v4815 = vadd.f32 %v4783, %v2866
      %v4816 = vadd.f32 %v4784, %v2867
      %v4817 = vadd.f32 %v4785, %v2868
      %v4818 = vadd.f32 %v4786, %v2869
      %v4819 = vadd.f32 %v4787, %v2870
      %v4820 = vadd.f32 %v4788, %v2871
      %v4821 = vadd.f32 %v4789, %v2872
      %v4822 = vadd.f32 %v4790, %v2873
      %v4823 = vadd.f32 %v4791, %v2874
      %v4824 = vadd.f32 %v4792, %v2875
      %v4825 = vadd.f32 %v4793, %v2876
      %v4826 = vadd.f32 %v4794, %v2877
      %v4827 = vadd.f32 %v4795, %v2878
      %v4828 = vmax.f32 %v4796, 0.0
      %v4829 = vmax.f32 %v4797, 0.0
      %v4830 = vmax.f32 %v4798, 0.0
      %v4831 = vmax.f32 %v4799, 0.0
      %v4832 = vmax.f32 %v4800, 0.0
      %v4833 = vmax.f32 %v4801, 0.0
      %v4834 = vmax.f32 %v4802, 0.0
      %v4835 = vmax.f32 %v4803, 0.0
      %v4836 = vmax.f32 %v4804, 0.0
      %v4837 = vmax.f32 %v4805, 0.0
      %v4838 = vmax.f32 %v4806, 0.0
      %v4839 = vmax.f32 %v4807, 0.0
      %v4840 = vmax.f32 %v4808, 0.0
      %v4841 = vmax.f32 %v4809, 0.0
      %v4842 = vmax.f32 %v4810, 0.0
      %v4843 = vmax.f32 %v4811, 0.0
      %v4844 = vmax.f32 %v4812, 0.0
      %v4845 = vmax.f32 %v4813, 0.0
      %v4846 = vmax.f32 %v4814, 0.0
      %v4847 = vmax.f32 %v4815, 0.0
      %v4848 = vmax.f32 %v4816, 0.0
      %v4849 = vmax.f32 %v4817, 0.0
      %v4850 = vmax.f32 %v4818, 0.0
      %v4851 = vmax.f32 %v4819, 0.0
      %v4852 = vmax.f32 %v4820, 0.0
      %v4853 = vmax.f32 %v4821, 0.0
      %v4854 = vmax.f32 %v4822, 0.0
      %v4855 = vmax.f32 %v4823, 0.0
      %v4856 = vmax.f32 %v4824, 0.0
      %v4857 = vmax.f32 %v4825, 0.0
      %v4858 = vmax.f32 %v4826, 0.0
      %v4859 = vmax.f32 %v4827, 0.0
      %4860 = vst.msk [vmem:[%s359] sm:$0xff] %vm1844, %v4828
      %4861 = vst.msk [vmem:[%s359 + $0x8] sm:$0xff] %vm1844, %v4829
      %4862 = vst.msk [vmem:[%s359 + $0x10] sm:$0xff] %vm1844, %v4830
      %4863 = vst.msk [vmem:[%s359 + $0x18] sm:$0xff] %vm1844, %v4831
      %4864 = vst.msk [vmem:[%s359 + $0x20] sm:$0xff] %vm1844, %v4832
      %4865 = vst.msk [vmem:[%s359 + $0x28] sm:$0xff] %vm1844, %v4833
      %4866 = vst.msk [vmem:[%s359 + $0x30] sm:$0xff] %vm1844, %v4834
      %4867 = vst.msk [vmem:[%s359 + $0x38] sm:$0xff] %vm1844, %v4835
      %4868 = vst.msk [vmem:[%s359 + $0x40] sm:$0xff] %vm1844, %v4836
      %4869 = vst.msk [vmem:[%s359 + $0x48] sm:$0xff] %vm1844, %v4837
      %4870 = vst.msk [vmem:[%s359 + $0x50] sm:$0xff] %vm1844, %v4838
      %4871 = vst.msk [vmem:[%s359 + $0x58] sm:$0xff] %vm1844, %v4839
      %4872 = vst.msk [vmem:[%s359 + $0x60] sm:$0xff] %vm1844, %v4840
      %4873 = vst.msk [vmem:[%s359 + $0x68] sm:$0xff] %vm1844, %v4841
      %4874 = vst.msk [vmem:[%s359 + $0x70] sm:$0xff] %vm1844, %v4842
      %4875 = vst.msk [vmem:[%s359 + $0x78] sm:$0xff] %vm1844, %v4843
      %4876 = vst.msk [vmem:[%s359 + $0x80] sm:$0xff] %vm1844, %v4844
      %4877 = vst.msk [vmem:[%s359 + $0x88] sm:$0xff] %vm1844, %v4845
      %4878 = vst.msk [vmem:[%s359 + $0x90] sm:$0xff] %vm1844, %v4846
      %4879 = vst.msk [vmem:[%s359 + $0x98] sm:$0xff] %vm1844, %v4847
      %4880 = vst.msk [vmem:[%s359 + $0xa0] sm:$0xff] %vm1844, %v4848
      %4881 = vst.msk [vmem:[%s359 + $0xa8] sm:$0xff] %vm1844, %v4849
      %4882 = vst.msk [vmem:[%s359 + $0xb0] sm:$0xff] %vm1844, %v4850
      %4883 = vst.msk [vmem:[%s359 + $0xb8] sm:$0xff] %vm1844, %v4851
      %4884 = vst.msk [vmem:[%s359 + $0xc0] sm:$0xff] %vm1844, %v4852
      %4885 = vst.msk [vmem:[%s359 + $0xc8] sm:$0xff] %vm1844, %v4853
      %4886 = vst.msk [vmem:[%s359 + $0xd0] sm:$0xff] %vm1844, %v4854
      %4887 = vst.msk [vmem:[%s359 + $0xd8] sm:$0xff] %vm1844, %v4855
      %4888 = vst.msk [vmem:[%s359 + $0xe0] sm:$0xff] %vm1844, %v4856
      %4889 = vst.msk [vmem:[%s359 + $0xe8] sm:$0xff] %vm1844, %v4857
      %4890 = vst.msk [vmem:[%s359 + $0xf0] sm:$0xff] %vm1844, %v4858
      %4891 = vst.msk [vmem:[%s359 + $0xf8] sm:$0xff] %vm1844, %v4859
      %p4892 = scmp.lt.s32.totalorder %s21, 1
      %s4893 = scalar_select %p4892, %s21, 1
      %s4894 = smul.addr %s4893, 32
      %s4895 = smul.addr %s4894, 8
      %s4896 = scalar_lea.vmem %s10, %s4895
      // Predicated region
      $region61: #{basic_block_forward.1} parent=59 // pred_check
        %p4897 = pneg %p254
      $region62: #{basic_block_forward.1} parent=59 // pred_check_branch
        %4899 = sbr.rel (%p4897) target = $region64
      $region63: #{basic_block_forward.1} parent=59 // pred_region
        _
      $region64: #{basic_block_forward.1} parent=59 // pred_fallthru
        _
    $region60: #{basic_block_forward.1} parent=5 // pred_fallthru
      _
    %p4900 = scmp.le.s32.totalorder 2, %s16
    // Predicated region
    $region65: #{basic_block_forward.1} parent=5 // pred_check
      %p4901 = pneg %p4900
    $region66: #{basic_block_forward.1} parent=5 // pred_check_branch
      %4903 = sbr.rel (%p4901) target = $region68
    $region67: #{basic_block_forward.1} parent=5 // pred_region
      %s4904 = ssub.s32 %s16, 2
      // Predicated region
      $region69: #{basic_block_forward.1} parent=67 // pred_check
        %p4905 = pneg %p260
      $region70: #{basic_block_forward.1} parent=67 // pred_check_branch
        %4907 = sbr.rel (%p4905) target = $region72
      $region71: #{basic_block_forward.1} parent=67 // pred_region
        %p4908 = scmp.lt.s32.totalorder %s22, 1
        %s4909 = scalar_select %p4908, %s22, 1
        %s4910 = smul.addr %s4909, 32
        %s4911 = smul.addr %s4910, 8
        %s4912 = scalar_lea.vmem %s10, %s4911
      $region72: #{basic_block_forward.1} parent=67 // pred_fallthru
        _
    $region68: #{basic_block_forward.1} parent=5 // pred_fallthru
      _
  $region6: #{basic_block_forward.1} parent=0 // loop_footer
    %s20 = sadd.s32 1, %s16
  $region7: #{basic_block_forward.1} parent=0 // loop_footer_branch
    %15 = sbr.rel target = $region3
  $region8: #{basic_block_forward.1} parent=0 // loop_exit
    _

</llo_original>
